<compile_context>
chip_gen: v5e
topology: v5e:2x2
jax: 0.10.0
libtpu: 0.0.40
codegen_flags: <defaults>
</compile_context>

<pallas_src>
import functools

import jax
import jax.numpy as jnp
from jax.experimental import pallas as pl
from jax.experimental.pallas import tpu as pltpu

BN_EPS = 1e-5
MXU_DTYPE = jnp.bfloat16          # MXU input dtype; all accumulation / BN math in f32
VMEM_LIMIT = 32 * 1024 * 1024     # explicit scoped-VMEM budget (fits v5e/v6e/v7x)


# ---------------------------------------------------------------------------
# kernels
# ---------------------------------------------------------------------------
def _conv3x3_acc(xpad, w_ref, h, w):
    """3x3 'same' conv as 9 shift-accumulated MXU matmuls.

    xpad : (h+2, w+2, cin) value (zero-padded input tile, MXU dtype)
    w_ref: (9, cin, cout) ref in MXU_DTYPE, tap-major (t = dy*3 + dx)
    returns (h*w, cout) float32
    """
    cin = xpad.shape[-1]
    cout = w_ref.shape[-1]
    acc = jnp.zeros((h * w, cout), jnp.float32)
    for t in range(9):                       # unrolled: 9 small matmuls, f32 accumulate
        dy, dx = divmod(t, 3)
        tap = xpad[dy:dy + h, dx:dx + w, :].reshape(h * w, cin).astype(MXU_DTYPE)
        acc = acc + jnp.dot(tap, w_ref[t], preferred_element_type=jnp.float32)
    return acc


def _store_partial_stats(ps_ref, acc):
    # per-image partial BN statistics: [sum(y), sum(y*y)] over pixels -> (1, 2, cout)
    ps_ref[0, 0:1, :] = jnp.sum(acc, axis=0, keepdims=True)
    ps_ref[0, 1:2, :] = jnp.sum(acc * acc, axis=0, keepdims=True)


def _conv_stats_kernel(xp_ref, w_ref, y_ref, ps_ref, *, h, w):
    """conv1 (bias-free) + per-image partial BN stats. One image per grid step."""
    acc = _conv3x3_acc(xp_ref[0], w_ref, h, w)            # (h*w, cout) f32
    y_ref[0] = acc
    _store_partial_stats(ps_ref, acc)


def _bn_relu_conv_stats_kernel(y1_ref, sc_ref, sh_ref, w_ref, y2_ref, ps_ref,
                               hpad_ref, *, h, w):
    """Fused: h1 = relu(bn1(y1)) kept in VMEM (bf16) -> conv2 + partial BN stats."""
    h1 = jnp.maximum(y1_ref[0] * sc_ref[...] + sh_ref[...], 0.0)   # (h*w, cout) f32
    # zero-padded bf16 staging tile for conv2's 3x3 taps; fully re-zeroed every step
    # so the grid axis stays safely "parallel" (per-core scratch, no cross-step state).
    hpad_ref[...] = jnp.zeros_like(hpad_ref)
    hpad_ref[1:h + 1, 1:w + 1, :] = (
        h1.astype(hpad_ref.dtype).reshape(h, w, h1.shape[-1]))
    acc = _conv3x3_acc(hpad_ref[...], w_ref, h, w)
    y2_ref[0] = acc
    _store_partial_stats(ps_ref, acc)


def _bn_add_relu_kernel(y_ref, sc_ref, sh_ref, res_ref, o_ref):
    """out = relu(y * scale + shift + residual); lane-dense (rows, W*Cout) blocks."""
    o_ref[...] = jnp.maximum(
        y_ref[...] * sc_ref[...] + sh_ref[...] + res_ref[...], 0.0)


# ---------------------------------------------------------------------------
# pallas_call wrappers
# ---------------------------------------------------------------------------
def _conv_stats_call(xp, w_taps, h, w):
    n, hp, wp, cin = xp.shape
    cout = w_taps.shape[-1]
    hw = h * w
    kernel = functools.partial(_conv_stats_kernel, h=h, w=w)
    return pl.pallas_call(
        kernel,
        grid=(n,),
        in_specs=[
            pl.BlockSpec((1, hp, wp, cin), lambda i: (i, 0, 0, 0)),
            pl.BlockSpec((9, cin, cout), lambda i: (0, 0, 0)),   # weights stay VMEM-resident
        ],
        out_specs=(
            pl.BlockSpec((1, hw, cout), lambda i: (i, 0, 0)),
            pl.BlockSpec((1, 2, cout), lambda i: (i, 0, 0)),
        ),
        out_shape=(
            jax.ShapeDtypeStruct((n, hw, cout), jnp.float32),
            jax.ShapeDtypeStruct((n, 2, cout), jnp.float32),
        ),
        compiler_params=pltpu.CompilerParams(
            dimension_semantics=("parallel",), vmem_limit_bytes=VMEM_LIMIT),
    )(xp, w_taps)


def _bn_relu_conv_stats_call(y1, scale1, shift1, w_taps, h, w):
    n, hw, cout = y1.shape
    kernel = functools.partial(_bn_relu_conv_stats_kernel, h=h, w=w)
    return pl.pallas_call(
        kernel,
        grid=(n,),
        in_specs=[
            pl.BlockSpec((1, hw, cout), lambda i: (i, 0, 0)),
            pl.BlockSpec((1, cout), lambda i: (0, 0)),
            pl.BlockSpec((1, cout), lambda i: (0, 0)),
            pl.BlockSpec((9, cout, cout), lambda i: (0, 0, 0)),
        ],
        out_specs=(
            pl.BlockSpec((1, hw, cout), lambda i: (i, 0, 0)),
            pl.BlockSpec((1, 2, cout), lambda i: (i, 0, 0)),
        ),
        out_shape=(
            jax.ShapeDtypeStruct((n, hw, cout), jnp.float32),
            jax.ShapeDtypeStruct((n, 2, cout), jnp.float32),
        ),
        scratch_shapes=[pltpu.VMEM((h + 2, w + 2, cout), MXU_DTYPE)],
        compiler_params=pltpu.CompilerParams(
            dimension_semantics=("parallel",), vmem_limit_bytes=VMEM_LIMIT),
    )(y1, scale1, shift1, w_taps)


def _pick_row_tile(rows):
    # ~512-1024 rows/tile at real sizes (sized so double-buffered tiles fit v7x's
    # 64 MiB VMEM); the demo picks a smaller tile so the grid has >1 step.
    for cand in (1024, 512, 256, 128, 64, 32, 16, 8):
        if rows % cand == 0 and rows // cand >= 2:
            return cand
    return rows


def _bn_add_relu_call(y_rows, scale_row, shift_row, res_rows):
    rows, rowlen = y_rows.shape
    tile_r = _pick_row_tile(rows)
    return pl.pallas_call(
        _bn_add_relu_kernel,
        grid=(rows // tile_r,),
        in_specs=[
            pl.BlockSpec((tile_r, rowlen), lambda i: (i, 0)),
            pl.BlockSpec((1, rowlen), lambda i: (0, 0)),
            pl.BlockSpec((1, rowlen), lambda i: (0, 0)),
            pl.BlockSpec((tile_r, rowlen), lambda i: (i, 0)),
        ],
        out_specs=pl.BlockSpec((tile_r, rowlen), lambda i: (i, 0)),
        out_shape=jax.ShapeDtypeStruct((rows, rowlen), jnp.float32),
        compiler_params=pltpu.CompilerParams(
            dimension_semantics=("parallel",), vmem_limit_bytes=VMEM_LIMIT),
    )(y_rows, scale_row, shift_row, res_rows)


# ---------------------------------------------------------------------------
# forward
# ---------------------------------------------------------------------------
def _bn_affine(partial_stats, gamma, beta, count):
    """Exact global training-mode BN reduced to per-channel scale/shift.

    partial_stats: (N, 2, cout) per-image [sum, sum_sq] from the conv kernels.
    Tiny (2, cout)-sized XLA glue; keeps batch statistics exact under any tiling.
    """
    stats = jnp.sum(partial_stats, axis=0)              # (2, cout)
    mean = stats[0:1, :] / count
    var = stats[1:2, :] / count - mean * mean           # biased var (PyTorch normalization)
    scale = gamma * jax.lax.rsqrt(var + BN_EPS)         # (1, cout)
    shift = beta - mean * scale
    return scale, shift


def residual_block_forward(x_nchw, params):
    """ResidualBlock forward (stride=1, in_channels == out_channels)."""
    # TODO(synk): projection shortcut (stride>1 or channel change: 1x1 conv + BN) not implemented.
    x = jnp.transpose(x_nchw, (0, 2, 3, 1)).astype(jnp.float32)        # NHWC
    n, h, w, cin = x.shape
    cout = params["w1"].shape[0]
    assert cout == cin, "identity-shortcut configuration requires in_channels == out_channels"
    count = n * h * w

    # Conv weights -> (9, Cin, Cout) tap-major, MXU dtype (constant-folded under jit).
    # Conv biases are dropped: they cancel exactly under training-mode BN.
    w1 = jnp.transpose(params["w1"], (2, 3, 1, 0)).reshape(9, cin, cout).astype(MXU_DTYPE)
    w2 = jnp.transpose(params["w2"], (2, 3, 1, 0)).reshape(9, cout, cout).astype(MXU_DTYPE)

    # 1-pixel halo added once in HBM; MXU inputs in bf16 (halves input DMA bytes).
    xp = jnp.pad(x, ((0, 0), (1, 1), (1, 1), (0, 0))).astype(MXU_DTYPE)

    # layer 1: conv1 + batch statistics
    y1, ps1 = _conv_stats_call(xp, w1, h, w)
    sc1, sh1 = _bn_affine(ps1, params["g1"], params["b1"], count)

    # bn1 + relu fused with conv2 + batch statistics (h1 never leaves VMEM)
    y2, ps2 = _bn_relu_conv_stats_call(y1, sc1, sh1, w2, h, w)
    sc2, sh2 = _bn_affine(ps2, params["g2"], params["b2"], count)

    # bn2 + identity residual + relu over a lane-dense (N*H, W*Cout) layout
    rows = n * h
    out_rows = _bn_add_relu_call(
        y2.reshape(rows, w * cout),
        jnp.tile(sc2, (1, w)), jnp.tile(sh2, (1, w)),
        x.reshape(rows, w * cin))

    return jnp.transpose(out_rows.reshape(n, h, w, cout), (0, 3, 1, 2))   # back to NCHW


# ---------------------------------------------------------------------------
# pure-JAX reference (matches the kernel's precision policy: bf16 MXU inputs,
# f32 accumulation / BN; conv bias kept, as in the PyTorch module — it cancels)
# ---------------------------------------------------------------------------
def _reference(x_nchw, params):
    x = jnp.transpose(x_nchw, (0, 2, 3, 1)).astype(jnp.float32)

    def conv(inp, w_oihw, bias):
        w_hwio = jnp.transpose(w_oihw, (2, 3, 1, 0)).astype(MXU_DTYPE)
        y = jax.lax.conv_general_dilated(
            inp.astype(MXU_DTYPE), w_hwio, window_strides=(1, 1),
            padding=((1, 1), (1, 1)),
            dimension_numbers=("NHWC", "HWIO", "NHWC"),
            preferred_element_type=jnp.float32)
        return y + bias.reshape(1, 1, 1, -1)

    def bn(y, g, b):
        mean = jnp.mean(y, axis=(0, 1, 2), keepdims=True)
        var = jnp.mean((y - mean) ** 2, axis=(0, 1, 2), keepdims=True)
        return ((y - mean) * jax.lax.rsqrt(var + BN_EPS)
                * g.reshape(1, 1, 1, -1) + b.reshape(1, 1, 1, -1))

    hid = jax.nn.relu(bn(conv(x, params["w1"], params["cb1"]),
                         params["g1"], params["b1"]))
    o = bn(conv(hid, params["w2"], params["cb2"]),
           params["g2"], params["b2"]) + x
    return jnp.transpose(jax.nn.relu(o), (0, 3, 1, 2))


if __name__ == "__main__":
    key = jax.random.PRNGKey(0)
    n, cin, hh, ww = 2, 4, 16, 16
    cout = cin  # identity-shortcut configuration (stride=1, in == out)
    ks = jax.random.split(key, 9)
    params = {
        "w1":  0.1 * jax.random.normal(ks[0], (cout, cin, 3, 3), jnp.float32),
        "cb1": 0.1 * jax.random.normal(ks[1], (1, cout), jnp.float32),
        "g1":  1.0 + 0.1 * jax.random.normal(ks[2], (1, cout), jnp.float32),
        "b1":  0.1 * jax.random.normal(ks[3], (1, cout), jnp.float32),
        "w2":  0.1 * jax.random.normal(ks[4], (cout, cout, 3, 3), jnp.float32),
        "cb2": 0.1 * jax.random.normal(ks[5], (1, cout), jnp.float32),
        "g2":  1.0 + 0.1 * jax.random.normal(ks[6], (1, cout), jnp.float32),
        "b2":  0.1 * jax.random.normal(ks[7], (1, cout), jnp.float32),
    }
    x = jax.random.normal(ks[8], (n, cin, hh, ww), jnp.float32)

    fwd = jax.jit(residual_block_forward)
    out = jax.block_until_ready(fwd(x, params))
    ref = jax.block_until_ready(_reference(x, params))

    assert out.shape == (n, cout, hh, ww), out.shape
    max_err = float(jnp.max(jnp.abs(out - ref)))
    assert max_err < 2e-2, f"max abs error too large: {max_err}"
    print("KERNEL_OK")
</pallas_src>

<mosaic_0001>
module attributes {stable_mosaic.version = 11 : i64} {
  func.func @_conv_stats_kernel(%arg0: i32, %arg1: memref<1x18x18x4xbf16, #tpu.memory_space<vmem>>, %arg2: memref<9x4x4xbf16, #tpu.memory_space<vmem>>, %arg3: memref<1x256x4xf32, #tpu.memory_space<vmem>>, %arg4: memref<1x2x4xf32, #tpu.memory_space<vmem>>) attributes {dimension_semantics = [#tpu.dimension_semantics<parallel>], iteration_bounds = array<i64: 2>, scalar_prefetch = 0 : i64, scratch_operands = 0 : i64, tpu.core_type = #tpu.core_type<tc>, window_params = [{transform_indices = @transform_0, window_bounds = array<i64: 1, 18, 18, 4>}, {pipeline_mode = #tpu.pipeline_mode<synchronous>, transform_indices = @transform_1, window_bounds = array<i64: 9, 4, 4>}, {transform_indices = @transform_2, window_bounds = array<i64: 1, 256, 4>}, {transform_indices = @transform_3, window_bounds = array<i64: 1, 2, 4>}]} {
    %c0 = arith.constant 0 : index
    %c0_0 = arith.constant 0 : index
    %c0_1 = arith.constant 0 : index
    %c0_2 = arith.constant 0 : index
    %0 = vector.load %arg1[%c0, %c0_0, %c0_1, %c0_2] : memref<1x18x18x4xbf16, #tpu.memory_space<vmem>>, vector<1x18x18x4xbf16>
    %1 = vector.shape_cast %0 : vector<1x18x18x4xbf16> to vector<18x18x4xbf16>
    %cst = arith.constant 0.000000e+00 : f32
    %2 = vector.broadcast %cst : f32 to vector<256x4xf32>
    %3 = vector.extract_strided_slice %1 {offsets = [0, 0, 0], sizes = [16, 16, 4], strides = [1, 1, 1]} : vector<18x18x4xbf16> to vector<16x16x4xbf16>
    %4 = vector.shape_cast %3 : vector<16x16x4xbf16> to vector<256x4xbf16>
    %c0_3 = arith.constant 0 : index
    %c0_4 = arith.constant 0 : index
    %c0_5 = arith.constant 0 : index
    %5 = vector.load %arg2[%c0_3, %c0_4, %c0_5] : memref<9x4x4xbf16, #tpu.memory_space<vmem>>, vector<1x4x4xbf16>
    %6 = vector.shape_cast %5 : vector<1x4x4xbf16> to vector<4x4xbf16>
    %cst_6 = arith.constant dense<0.000000e+00> : vector<256x4xf32>
    %7 = tpu.matmul %4, %6, %cst_6 {dimension_numbers = #tpu.dot_dimension_numbers<[1], [0], [0], [1], [0, 0, 1, 1], [], []>} : vector<256x4xbf16>, vector<4x4xbf16>, vector<256x4xf32> -> vector<256x4xf32>
    %8 = arith.addf %2, %7 : vector<256x4xf32>
    %9 = vector.extract_strided_slice %1 {offsets = [0, 1, 0], sizes = [16, 16, 4], strides = [1, 1, 1]} : vector<18x18x4xbf16> to vector<16x16x4xbf16>
    %10 = vector.shape_cast %9 : vector<16x16x4xbf16> to vector<256x4xbf16>
    %c1 = arith.constant 1 : index
    %c0_7 = arith.constant 0 : index
    %c0_8 = arith.constant 0 : index
    %11 = vector.load %arg2[%c1, %c0_7, %c0_8] : memref<9x4x4xbf16, #tpu.memory_space<vmem>>, vector<1x4x4xbf16>
    %12 = vector.shape_cast %11 : vector<1x4x4xbf16> to vector<4x4xbf16>
    %cst_9 = arith.constant dense<0.000000e+00> : vector<256x4xf32>
    %13 = tpu.matmul %10, %12, %cst_9 {dimension_numbers = #tpu.dot_dimension_numbers<[1], [0], [0], [1], [0, 0, 1, 1], [], []>} : vector<256x4xbf16>, vector<4x4xbf16>, vector<256x4xf32> -> vector<256x4xf32>
    %14 = arith.addf %8, %13 : vector<256x4xf32>
    %15 = vector.extract_strided_slice %1 {offsets = [0, 2, 0], sizes = [16, 16, 4], strides = [1, 1, 1]} : vector<18x18x4xbf16> to vector<16x16x4xbf16>
    %16 = vector.shape_cast %15 : vector<16x16x4xbf16> to vector<256x4xbf16>
    %c2 = arith.constant 2 : index
    %c0_10 = arith.constant 0 : index
    %c0_11 = arith.constant 0 : index
    %17 = vector.load %arg2[%c2, %c0_10, %c0_11] : memref<9x4x4xbf16, #tpu.memory_space<vmem>>, vector<1x4x4xbf16>
    %18 = vector.shape_cast %17 : vector<1x4x4xbf16> to vector<4x4xbf16>
    %cst_12 = arith.constant dense<0.000000e+00> : vector<256x4xf32>
    %19 = tpu.matmul %16, %18, %cst_12 {dimension_numbers = #tpu.dot_dimension_numbers<[1], [0], [0], [1], [0, 0, 1, 1], [], []>} : vector<256x4xbf16>, vector<4x4xbf16>, vector<256x4xf32> -> vector<256x4xf32>
    %20 = arith.addf %14, %19 : vector<256x4xf32>
    %21 = vector.extract_strided_slice %1 {offsets = [1, 0, 0], sizes = [16, 16, 4], strides = [1, 1, 1]} : vector<18x18x4xbf16> to vector<16x16x4xbf16>
    %22 = vector.shape_cast %21 : vector<16x16x4xbf16> to vector<256x4xbf16>
    %c3 = arith.constant 3 : index
    %c0_13 = arith.constant 0 : index
    %c0_14 = arith.constant 0 : index
    %23 = vector.load %arg2[%c3, %c0_13, %c0_14] : memref<9x4x4xbf16, #tpu.memory_space<vmem>>, vector<1x4x4xbf16>
    %24 = vector.shape_cast %23 : vector<1x4x4xbf16> to vector<4x4xbf16>
    %cst_15 = arith.constant dense<0.000000e+00> : vector<256x4xf32>
    %25 = tpu.matmul %22, %24, %cst_15 {dimension_numbers = #tpu.dot_dimension_numbers<[1], [0], [0], [1], [0, 0, 1, 1], [], []>} : vector<256x4xbf16>, vector<4x4xbf16>, vector<256x4xf32> -> vector<256x4xf32>
    %26 = arith.addf %20, %25 : vector<256x4xf32>
    %27 = vector.extract_strided_slice %1 {offsets = [1, 1, 0], sizes = [16, 16, 4], strides = [1, 1, 1]} : vector<18x18x4xbf16> to vector<16x16x4xbf16>
    %28 = vector.shape_cast %27 : vector<16x16x4xbf16> to vector<256x4xbf16>
    %c4 = arith.constant 4 : index
    %c0_16 = arith.constant 0 : index
    %c0_17 = arith.constant 0 : index
    %29 = vector.load %arg2[%c4, %c0_16, %c0_17] : memref<9x4x4xbf16, #tpu.memory_space<vmem>>, vector<1x4x4xbf16>
    %30 = vector.shape_cast %29 : vector<1x4x4xbf16> to vector<4x4xbf16>
    %cst_18 = arith.constant dense<0.000000e+00> : vector<256x4xf32>
    %31 = tpu.matmul %28, %30, %cst_18 {dimension_numbers = #tpu.dot_dimension_numbers<[1], [0], [0], [1], [0, 0, 1, 1], [], []>} : vector<256x4xbf16>, vector<4x4xbf16>, vector<256x4xf32> -> vector<256x4xf32>
    %32 = arith.addf %26, %31 : vector<256x4xf32>
    %33 = vector.extract_strided_slice %1 {offsets = [1, 2, 0], sizes = [16, 16, 4], strides = [1, 1, 1]} : vector<18x18x4xbf16> to vector<16x16x4xbf16>
    %34 = vector.shape_cast %33 : vector<16x16x4xbf16> to vector<256x4xbf16>
    %c5 = arith.constant 5 : index
    %c0_19 = arith.constant 0 : index
    %c0_20 = arith.constant 0 : index
    %35 = vector.load %arg2[%c5, %c0_19, %c0_20] : memref<9x4x4xbf16, #tpu.memory_space<vmem>>, vector<1x4x4xbf16>
    %36 = vector.shape_cast %35 : vector<1x4x4xbf16> to vector<4x4xbf16>
    %cst_21 = arith.constant dense<0.000000e+00> : vector<256x4xf32>
    %37 = tpu.matmul %34, %36, %cst_21 {dimension_numbers = #tpu.dot_dimension_numbers<[1], [0], [0], [1], [0, 0, 1, 1], [], []>} : vector<256x4xbf16>, vector<4x4xbf16>, vector<256x4xf32> -> vector<256x4xf32>
    %38 = arith.addf %32, %37 : vector<256x4xf32>
    %39 = vector.extract_strided_slice %1 {offsets = [2, 0, 0], sizes = [16, 16, 4], strides = [1, 1, 1]} : vector<18x18x4xbf16> to vector<16x16x4xbf16>
    %40 = vector.shape_cast %39 : vector<16x16x4xbf16> to vector<256x4xbf16>
    %c6 = arith.constant 6 : index
    %c0_22 = arith.constant 0 : index
    %c0_23 = arith.constant 0 : index
    %41 = vector.load %arg2[%c6, %c0_22, %c0_23] : memref<9x4x4xbf16, #tpu.memory_space<vmem>>, vector<1x4x4xbf16>
    %42 = vector.shape_cast %41 : vector<1x4x4xbf16> to vector<4x4xbf16>
    %cst_24 = arith.constant dense<0.000000e+00> : vector<256x4xf32>
    %43 = tpu.matmul %40, %42, %cst_24 {dimension_numbers = #tpu.dot_dimension_numbers<[1], [0], [0], [1], [0, 0, 1, 1], [], []>} : vector<256x4xbf16>, vector<4x4xbf16>, vector<256x4xf32> -> vector<256x4xf32>
    %44 = arith.addf %38, %43 : vector<256x4xf32>
    %45 = vector.extract_strided_slice %1 {offsets = [2, 1, 0], sizes = [16, 16, 4], strides = [1, 1, 1]} : vector<18x18x4xbf16> to vector<16x16x4xbf16>
    %46 = vector.shape_cast %45 : vector<16x16x4xbf16> to vector<256x4xbf16>
    %c7 = arith.constant 7 : index
    %c0_25 = arith.constant 0 : index
    %c0_26 = arith.constant 0 : index
    %47 = vector.load %arg2[%c7, %c0_25, %c0_26] : memref<9x4x4xbf16, #tpu.memory_space<vmem>>, vector<1x4x4xbf16>
    %48 = vector.shape_cast %47 : vector<1x4x4xbf16> to vector<4x4xbf16>
    %cst_27 = arith.constant dense<0.000000e+00> : vector<256x4xf32>
    %49 = tpu.matmul %46, %48, %cst_27 {dimension_numbers = #tpu.dot_dimension_numbers<[1], [0], [0], [1], [0, 0, 1, 1], [], []>} : vector<256x4xbf16>, vector<4x4xbf16>, vector<256x4xf32> -> vector<256x4xf32>
    %50 = arith.addf %44, %49 : vector<256x4xf32>
    %51 = vector.extract_strided_slice %1 {offsets = [2, 2, 0], sizes = [16, 16, 4], strides = [1, 1, 1]} : vector<18x18x4xbf16> to vector<16x16x4xbf16>
    %52 = vector.shape_cast %51 : vector<16x16x4xbf16> to vector<256x4xbf16>
    %c8 = arith.constant 8 : index
    %c0_28 = arith.constant 0 : index
    %c0_29 = arith.constant 0 : index
    %53 = vector.load %arg2[%c8, %c0_28, %c0_29] : memref<9x4x4xbf16, #tpu.memory_space<vmem>>, vector<1x4x4xbf16>
    %54 = vector.shape_cast %53 : vector<1x4x4xbf16> to vector<4x4xbf16>
    %cst_30 = arith.constant dense<0.000000e+00> : vector<256x4xf32>
    %55 = tpu.matmul %52, %54, %cst_30 {dimension_numbers = #tpu.dot_dimension_numbers<[1], [0], [0], [1], [0, 0, 1, 1], [], []>} : vector<256x4xbf16>, vector<4x4xbf16>, vector<256x4xf32> -> vector<256x4xf32>
    %56 = arith.addf %50, %55 : vector<256x4xf32>
    %c0_31 = arith.constant 0 : index
    %c0_32 = arith.constant 0 : index
    %c0_33 = arith.constant 0 : index
    %57 = vector.load %arg3[%c0_31, %c0_32, %c0_33] : memref<1x256x4xf32, #tpu.memory_space<vmem>>, vector<1x256x4xf32>
    %58 = vector.shape_cast %57 : vector<1x256x4xf32> to vector<256x4xf32>
    %59 = vector.shape_cast %56 : vector<256x4xf32> to vector<1x256x4xf32>
    tpu.vector_store %arg3[%c0_31, %c0_32, %c0_33], %59 {strides = array<i32>} : memref<1x256x4xf32, #tpu.memory_space<vmem>>, vector<1x256x4xf32>,
    %cst_34 = arith.constant dense<0.000000e+00> : vector<4xf32>
    %60 = vector.multi_reduction <add>, %56, %cst_34 [0] : vector<256x4xf32> to vector<4xf32>
    %61 = vector.shape_cast %60 : vector<4xf32> to vector<1x4xf32>
    %c0_35 = arith.constant 0 : index
    %c0_36 = arith.constant 0 : index
    %c0_37 = arith.constant 0 : index
    %62 = vector.load %arg4[%c0_35, %c0_36, %c0_37] : memref<1x2x4xf32, #tpu.memory_space<vmem>>, vector<1x1x4xf32>
    %63 = vector.shape_cast %62 : vector<1x1x4xf32> to vector<1x4xf32>
    %64 = vector.shape_cast %61 : vector<1x4xf32> to vector<1x1x4xf32>
    tpu.vector_store %arg4[%c0_35, %c0_36, %c0_37], %64 {strides = array<i32>} : memref<1x2x4xf32, #tpu.memory_space<vmem>>, vector<1x1x4xf32>,
    %65 = arith.mulf %56, %56 : vector<256x4xf32>
    %cst_38 = arith.constant dense<0.000000e+00> : vector<4xf32>
    %66 = vector.multi_reduction <add>, %65, %cst_38 [0] : vector<256x4xf32> to vector<4xf32>
    %67 = vector.shape_cast %66 : vector<4xf32> to vector<1x4xf32>
    %c0_39 = arith.constant 0 : index
    %c1_40 = arith.constant 1 : index
    %c0_41 = arith.constant 0 : index
    %68 = vector.load %arg4[%c0_39, %c1_40, %c0_41] : memref<1x2x4xf32, #tpu.memory_space<vmem>>, vector<1x1x4xf32>
    %69 = vector.shape_cast %68 : vector<1x1x4xf32> to vector<1x4xf32>
    %70 = vector.shape_cast %67 : vector<1x4xf32> to vector<1x1x4xf32>
    tpu.vector_store %arg4[%c0_39, %c1_40, %c0_41], %70 {strides = array<i32>} : memref<1x2x4xf32, #tpu.memory_space<vmem>>, vector<1x1x4xf32>,
    return
  }
  func.func @transform_0(%arg0: i32) -> (i32, i32, i32, i32) {
    %c0_i32 = arith.constant 0 : i32
    %c0_i32_0 = arith.constant 0 : i32
    %c0_i32_1 = arith.constant 0 : i32
    %c0_i32_2 = arith.constant 0 : i32
    return %arg0, %c0_i32, %c0_i32_0, %c0_i32_1 : i32, i32, i32, i32
  }
  func.func @transform_1(%arg0: i32) -> (i32, i32, i32) {
    %c0_i32 = arith.constant 0 : i32
    %c0_i32_0 = arith.constant 0 : i32
    %c0_i32_1 = arith.constant 0 : i32
    %c0_i32_2 = arith.constant 0 : i32
    return %c0_i32, %c0_i32_0, %c0_i32_1 : i32, i32, i32
  }
  func.func @transform_2(%arg0: i32) -> (i32, i32, i32) {
    %c0_i32 = arith.constant 0 : i32
    %c0_i32_0 = arith.constant 0 : i32
    %c0_i32_1 = arith.constant 0 : i32
    return %arg0, %c0_i32, %c0_i32_0 : i32, i32, i32
  }
  func.func @transform_3(%arg0: i32) -> (i32, i32, i32) {
    %c0_i32 = arith.constant 0 : i32
    %c0_i32_0 = arith.constant 0 : i32
    %c0_i32_1 = arith.constant 0 : i32
    return %arg0, %c0_i32, %c0_i32_0 : i32, i32, i32
  }
}

module attributes {stable_mosaic.version = 11 : i64} {
  func.func @_bn_relu_conv_stats_kernel(%arg0: i32, %arg1: memref<1x256x4xf32, #tpu.memory_space<vmem>>, %arg2: memref<1x4xf32, #tpu.memory_space<vmem>>, %arg3: memref<1x4xf32, #tpu.memory_space<vmem>>, %arg4: memref<9x4x4xbf16, #tpu.memory_space<vmem>>, %arg5: memref<1x256x4xf32, #tpu.memory_space<vmem>>, %arg6: memref<1x2x4xf32, #tpu.memory_space<vmem>>, %arg7: memref<18x18x4xbf16, #tpu.memory_space<vmem>>) attributes {dimension_semantics = [#tpu.dimension_semantics<parallel>], iteration_bounds = array<i64: 2>, scalar_prefetch = 0 : i64, scratch_operands = 1 : i64, tpu.core_type = #tpu.core_type<tc>, window_params = [{transform_indices = @transform_0, window_bounds = array<i64: 1, 256, 4>}, {pipeline_mode = #tpu.pipeline_mode<synchronous>, transform_indices = @transform_1, window_bounds = array<i64: 1, 4>}, {pipeline_mode = #tpu.pipeline_mode<synchronous>, transform_indices = @transform_2, window_bounds = array<i64: 1, 4>}, {pipeline_mode = #tpu.pipeline_mode<synchronous>, transform_indices = @transform_3, window_bounds = array<i64: 9, 4, 4>}, {transform_indices = @transform_4, window_bounds = array<i64: 1, 256, 4>}, {transform_indices = @transform_5, window_bounds = array<i64: 1, 2, 4>}]} {
    %c0 = arith.constant 0 : index
    %c0_0 = arith.constant 0 : index
    %c0_1 = arith.constant 0 : index
    %0 = vector.load %arg1[%c0, %c0_0, %c0_1] : memref<1x256x4xf32, #tpu.memory_space<vmem>>, vector<1x256x4xf32>
    %1 = vector.shape_cast %0 : vector<1x256x4xf32> to vector<256x4xf32>
    %c0_2 = arith.constant 0 : index
    %c0_3 = arith.constant 0 : index
    %2 = vector.load %arg2[%c0_2, %c0_3] : memref<1x4xf32, #tpu.memory_space<vmem>>, vector<1x4xf32>
    %3 = vector.broadcast %2 : vector<1x4xf32> to vector<256x4xf32>
    %4 = arith.mulf %1, %3 : vector<256x4xf32>
    %c0_4 = arith.constant 0 : index
    %c0_5 = arith.constant 0 : index
    %5 = vector.load %arg3[%c0_4, %c0_5] : memref<1x4xf32, #tpu.memory_space<vmem>>, vector<1x4xf32>
    %6 = vector.broadcast %5 : vector<1x4xf32> to vector<256x4xf32>
    %7 = arith.addf %4, %6 : vector<256x4xf32>
    %cst = arith.constant 0.000000e+00 : f32
    %8 = vector.broadcast %cst : f32 to vector<256x4xf32>
    %9 = arith.maximumf %7, %8 : vector<256x4xf32>
    %cst_6 = arith.constant 0.000000e+00 : bf16
    %10 = vector.broadcast %cst_6 : bf16 to vector<18x18x4xbf16>
    %c0_7 = arith.constant 0 : index
    %c0_8 = arith.constant 0 : index
    %c0_9 = arith.constant 0 : index
    %11 = vector.load %arg7[%c0_7, %c0_8, %c0_9] : memref<18x18x4xbf16, #tpu.memory_space<vmem>>, vector<18x18x4xbf16>
    tpu.vector_store %arg7[%c0_7, %c0_8, %c0_9], %10 {strides = array<i32>} : memref<18x18x4xbf16, #tpu.memory_space<vmem>>, vector<18x18x4xbf16>,
    %12 = arith.truncf %9 : vector<256x4xf32> to vector<256x4xbf16>
    %13 = vector.shape_cast %12 : vector<256x4xbf16> to vector<16x16x4xbf16>
    %c1 = arith.constant 1 : index
    %c1_10 = arith.constant 1 : index
    %c0_11 = arith.constant 0 : index
    %14 = vector.load %arg7[%c1, %c1_10, %c0_11] : memref<18x18x4xbf16, #tpu.memory_space<vmem>>, vector<16x16x4xbf16>
    tpu.vector_store %arg7[%c1, %c1_10, %c0_11], %13 {strides = array<i32>} : memref<18x18x4xbf16, #tpu.memory_space<vmem>>, vector<16x16x4xbf16>,
    %c0_12 = arith.constant 0 : index
    %c0_13 = arith.constant 0 : index
    %c0_14 = arith.constant 0 : index
    %15 = vector.load %arg7[%c0_12, %c0_13, %c0_14] : memref<18x18x4xbf16, #tpu.memory_space<vmem>>, vector<18x18x4xbf16>
    %cst_15 = arith.constant 0.000000e+00 : f32
    %16 = vector.broadcast %cst_15 : f32 to vector<256x4xf32>
    %17 = vector.extract_strided_slice %15 {offsets = [0, 0, 0], sizes = [16, 16, 4], strides = [1, 1, 1]} : vector<18x18x4xbf16> to vector<16x16x4xbf16>
    %18 = vector.shape_cast %17 : vector<16x16x4xbf16> to vector<256x4xbf16>
    %c0_16 = arith.constant 0 : index
    %c0_17 = arith.constant 0 : index
    %c0_18 = arith.constant 0 : index
    %19 = vector.load %arg4[%c0_16, %c0_17, %c0_18] : memref<9x4x4xbf16, #tpu.memory_space<vmem>>, vector<1x4x4xbf16>
    %20 = vector.shape_cast %19 : vector<1x4x4xbf16> to vector<4x4xbf16>
    %cst_19 = arith.constant dense<0.000000e+00> : vector<256x4xf32>
    %21 = tpu.matmul %18, %20, %cst_19 {dimension_numbers = #tpu.dot_dimension_numbers<[1], [0], [0], [1], [0, 0, 1, 1], [], []>} : vector<256x4xbf16>, vector<4x4xbf16>, vector<256x4xf32> -> vector<256x4xf32>
    %22 = arith.addf %16, %21 : vector<256x4xf32>
    %23 = vector.extract_strided_slice %15 {offsets = [0, 1, 0], sizes = [16, 16, 4], strides = [1, 1, 1]} : vector<18x18x4xbf16> to vector<16x16x4xbf16>
    %24 = vector.shape_cast %23 : vector<16x16x4xbf16> to vector<256x4xbf16>
    %c1_20 = arith.constant 1 : index
    %c0_21 = arith.constant 0 : index
    %c0_22 = arith.constant 0 : index
    %25 = vector.load %arg4[%c1_20, %c0_21, %c0_22] : memref<9x4x4xbf16, #tpu.memory_space<vmem>>, vector<1x4x4xbf16>
    %26 = vector.shape_cast %25 : vector<1x4x4xbf16> to vector<4x4xbf16>
    %cst_23 = arith.constant dense<0.000000e+00> : vector<256x4xf32>
    %27 = tpu.matmul %24, %26, %cst_23 {dimension_numbers = #tpu.dot_dimension_numbers<[1], [0], [0], [1], [0, 0, 1, 1], [], []>} : vector<256x4xbf16>, vector<4x4xbf16>, vector<256x4xf32> -> vector<256x4xf32>
    %28 = arith.addf %22, %27 : vector<256x4xf32>
    %29 = vector.extract_strided_slice %15 {offsets = [0, 2, 0], sizes = [16, 16, 4], strides = [1, 1, 1]} : vector<18x18x4xbf16> to vector<16x16x4xbf16>
    %30 = vector.shape_cast %29 : vector<16x16x4xbf16> to vector<256x4xbf16>
    %c2 = arith.constant 2 : index
    %c0_24 = arith.constant 0 : index
    %c0_25 = arith.constant 0 : index
    %31 = vector.load %arg4[%c2, %c0_24, %c0_25] : memref<9x4x4xbf16, #tpu.memory_space<vmem>>, vector<1x4x4xbf16>
    %32 = vector.shape_cast %31 : vector<1x4x4xbf16> to vector<4x4xbf16>
    %cst_26 = arith.constant dense<0.000000e+00> : vector<256x4xf32>
    %33 = tpu.matmul %30, %32, %cst_26 {dimension_numbers = #tpu.dot_dimension_numbers<[1], [0], [0], [1], [0, 0, 1, 1], [], []>} : vector<256x4xbf16>, vector<4x4xbf16>, vector<256x4xf32> -> vector<256x4xf32>
    %34 = arith.addf %28, %33 : vector<256x4xf32>
    %35 = vector.extract_strided_slice %15 {offsets = [1, 0, 0], sizes = [16, 16, 4], strides = [1, 1, 1]} : vector<18x18x4xbf16> to vector<16x16x4xbf16>
    %36 = vector.shape_cast %35 : vector<16x16x4xbf16> to vector<256x4xbf16>
    %c3 = arith.constant 3 : index
    %c0_27 = arith.constant 0 : index
    %c0_28 = arith.constant 0 : index
    %37 = vector.load %arg4[%c3, %c0_27, %c0_28] : memref<9x4x4xbf16, #tpu.memory_space<vmem>>, vector<1x4x4xbf16>
    %38 = vector.shape_cast %37 : vector<1x4x4xbf16> to vector<4x4xbf16>
    %cst_29 = arith.constant dense<0.000000e+00> : vector<256x4xf32>
    %39 = tpu.matmul %36, %38, %cst_29 {dimension_numbers = #tpu.dot_dimension_numbers<[1], [0], [0], [1], [0, 0, 1, 1], [], []>} : vector<256x4xbf16>, vector<4x4xbf16>, vector<256x4xf32> -> vector<256x4xf32>
    %40 = arith.addf %34, %39 : vector<256x4xf32>
    %41 = vector.extract_strided_slice %15 {offsets = [1, 1, 0], sizes = [16, 16, 4], strides = [1, 1, 1]} : vector<18x18x4xbf16> to vector<16x16x4xbf16>
    %42 = vector.shape_cast %41 : vector<16x16x4xbf16> to vector<256x4xbf16>
    %c4 = arith.constant 4 : index
    %c0_30 = arith.constant 0 : index
    %c0_31 = arith.constant 0 : index
    %43 = vector.load %arg4[%c4, %c0_30, %c0_31] : memref<9x4x4xbf16, #tpu.memory_space<vmem>>, vector<1x4x4xbf16>
    %44 = vector.shape_cast %43 : vector<1x4x4xbf16> to vector<4x4xbf16>
    %cst_32 = arith.constant dense<0.000000e+00> : vector<256x4xf32>
    %45 = tpu.matmul %42, %44, %cst_32 {dimension_numbers = #tpu.dot_dimension_numbers<[1], [0], [0], [1], [0, 0, 1, 1], [], []>} : vector<256x4xbf16>, vector<4x4xbf16>, vector<256x4xf32> -> vector<256x4xf32>
    %46 = arith.addf %40, %45 : vector<256x4xf32>
    %47 = vector.extract_strided_slice %15 {offsets = [1, 2, 0], sizes = [16, 16, 4], strides = [1, 1, 1]} : vector<18x18x4xbf16> to vector<16x16x4xbf16>
    %48 = vector.shape_cast %47 : vector<16x16x4xbf16> to vector<256x4xbf16>
    %c5 = arith.constant 5 : index
    %c0_33 = arith.constant 0 : index
    %c0_34 = arith.constant 0 : index
    %49 = vector.load %arg4[%c5, %c0_33, %c0_34] : memref<9x4x4xbf16, #tpu.memory_space<vmem>>, vector<1x4x4xbf16>
    %50 = vector.shape_cast %49 : vector<1x4x4xbf16> to vector<4x4xbf16>
    %cst_35 = arith.constant dense<0.000000e+00> : vector<256x4xf32>
    %51 = tpu.matmul %48, %50, %cst_35 {dimension_numbers = #tpu.dot_dimension_numbers<[1], [0], [0], [1], [0, 0, 1, 1], [], []>} : vector<256x4xbf16>, vector<4x4xbf16>, vector<256x4xf32> -> vector<256x4xf32>
    %52 = arith.addf %46, %51 : vector<256x4xf32>
    %53 = vector.extract_strided_slice %15 {offsets = [2, 0, 0], sizes = [16, 16, 4], strides = [1, 1, 1]} : vector<18x18x4xbf16> to vector<16x16x4xbf16>
    %54 = vector.shape_cast %53 : vector<16x16x4xbf16> to vector<256x4xbf16>
    %c6 = arith.constant 6 : index
    %c0_36 = arith.constant 0 : index
    %c0_37 = arith.constant 0 : index
    %55 = vector.load %arg4[%c6, %c0_36, %c0_37] : memref<9x4x4xbf16, #tpu.memory_space<vmem>>, vector<1x4x4xbf16>
    %56 = vector.shape_cast %55 : vector<1x4x4xbf16> to vector<4x4xbf16>
    %cst_38 = arith.constant dense<0.000000e+00> : vector<256x4xf32>
    %57 = tpu.matmul %54, %56, %cst_38 {dimension_numbers = #tpu.dot_dimension_numbers<[1], [0], [0], [1], [0, 0, 1, 1], [], []>} : vector<256x4xbf16>, vector<4x4xbf16>, vector<256x4xf32> -> vector<256x4xf32>
    %58 = arith.addf %52, %57 : vector<256x4xf32>
    %59 = vector.extract_strided_slice %15 {offsets = [2, 1, 0], sizes = [16, 16, 4], strides = [1, 1, 1]} : vector<18x18x4xbf16> to vector<16x16x4xbf16>
    %60 = vector.shape_cast %59 : vector<16x16x4xbf16> to vector<256x4xbf16>
    %c7 = arith.constant 7 : index
    %c0_39 = arith.constant 0 : index
    %c0_40 = arith.constant 0 : index
    %61 = vector.load %arg4[%c7, %c0_39, %c0_40] : memref<9x4x4xbf16, #tpu.memory_space<vmem>>, vector<1x4x4xbf16>
    %62 = vector.shape_cast %61 : vector<1x4x4xbf16> to vector<4x4xbf16>
    %cst_41 = arith.constant dense<0.000000e+00> : vector<256x4xf32>
    %63 = tpu.matmul %60, %62, %cst_41 {dimension_numbers = #tpu.dot_dimension_numbers<[1], [0], [0], [1], [0, 0, 1, 1], [], []>} : vector<256x4xbf16>, vector<4x4xbf16>, vector<256x4xf32> -> vector<256x4xf32>
    %64 = arith.addf %58, %63 : vector<256x4xf32>
    %65 = vector.extract_strided_slice %15 {offsets = [2, 2, 0], sizes = [16, 16, 4], strides = [1, 1, 1]} : vector<18x18x4xbf16> to vector<16x16x4xbf16>
    %66 = vector.shape_cast %65 : vector<16x16x4xbf16> to vector<256x4xbf16>
    %c8 = arith.constant 8 : index
    %c0_42 = arith.constant 0 : index
    %c0_43 = arith.constant 0 : index
    %67 = vector.load %arg4[%c8, %c0_42, %c0_43] : memref<9x4x4xbf16, #tpu.memory_space<vmem>>, vector<1x4x4xbf16>
    %68 = vector.shape_cast %67 : vector<1x4x4xbf16> to vector<4x4xbf16>
    %cst_44 = arith.constant dense<0.000000e+00> : vector<256x4xf32>
    %69 = tpu.matmul %66, %68, %cst_44 {dimension_numbers = #tpu.dot_dimension_numbers<[1], [0], [0], [1], [0, 0, 1, 1], [], []>} : vector<256x4xbf16>, vector<4x4xbf16>, vector<256x4xf32> -> vector<256x4xf32>
    %70 = arith.addf %64, %69 : vector<256x4xf32>
    %c0_45 = arith.constant 0 : index
    %c0_46 = arith.constant 0 : index
    %c0_47 = arith.constant 0 : index
    %71 = vector.load %arg5[%c0_45, %c0_46, %c0_47] : memref<1x256x4xf32, #tpu.memory_space<vmem>>, vector<1x256x4xf32>
    %72 = vector.shape_cast %71 : vector<1x256x4xf32> to vector<256x4xf32>
    %73 = vector.shape_cast %70 : vector<256x4xf32> to vector<1x256x4xf32>
    tpu.vector_store %arg5[%c0_45, %c0_46, %c0_47], %73 {strides = array<i32>} : memref<1x256x4xf32, #tpu.memory_space<vmem>>, vector<1x256x4xf32>,
    %cst_48 = arith.constant dense<0.000000e+00> : vector<4xf32>
    %74 = vector.multi_reduction <add>, %70, %cst_48 [0] : vector<256x4xf32> to vector<4xf32>
    %75 = vector.shape_cast %74 : vector<4xf32> to vector<1x4xf32>
    %c0_49 = arith.constant 0 : index
    %c0_50 = arith.constant 0 : index
    %c0_51 = arith.constant 0 : index
    %76 = vector.load %arg6[%c0_49, %c0_50, %c0_51] : memref<1x2x4xf32, #tpu.memory_space<vmem>>, vector<1x1x4xf32>
    %77 = vector.shape_cast %76 : vector<1x1x4xf32> to vector<1x4xf32>
    %78 = vector.shape_cast %75 : vector<1x4xf32> to vector<1x1x4xf32>
    tpu.vector_store %arg6[%c0_49, %c0_50, %c0_51], %78 {strides = array<i32>} : memref<1x2x4xf32, #tpu.memory_space<vmem>>, vector<1x1x4xf32>,
    %79 = arith.mulf %70, %70 : vector<256x4xf32>
    %cst_52 = arith.constant dense<0.000000e+00> : vector<4xf32>
    %80 = vector.multi_reduction <add>, %79, %cst_52 [0] : vector<256x4xf32> to vector<4xf32>
    %81 = vector.shape_cast %80 : vector<4xf32> to vector<1x4xf32>
    %c0_53 = arith.constant 0 : index
    %c1_54 = arith.constant 1 : index
    %c0_55 = arith.constant 0 : index
    %82 = vector.load %arg6[%c0_53, %c1_54, %c0_55] : memref<1x2x4xf32, #tpu.memory_space<vmem>>, vector<1x1x4xf32>
    %83 = vector.shape_cast %82 : vector<1x1x4xf32> to vector<1x4xf32>
    %84 = vector.shape_cast %81 : vector<1x4xf32> to vector<1x1x4xf32>
    tpu.vector_store %arg6[%c0_53, %c1_54, %c0_55], %84 {strides = array<i32>} : memref<1x2x4xf32, #tpu.memory_space<vmem>>, vector<1x1x4xf32>,
    return
  }
  func.func @transform_0(%arg0: i32) -> (i32, i32, i32) {
    %c0_i32 = arith.constant 0 : i32
    %c0_i32_0 = arith.constant 0 : i32
    %c0_i32_1 = arith.constant 0 : i32
    return %arg0, %c0_i32, %c0_i32_0 : i32, i32, i32
  }
  func.func @transform_1(%arg0: i32) -> (i32, i32) {
    %c0_i32 = arith.constant 0 : i32
    %c0_i32_0 = arith.constant 0 : i32
    %c0_i32_1 = arith.constant 0 : i32
    return %c0_i32, %c0_i32_0 : i32, i32
  }
  func.func @transform_2(%arg0: i32) -> (i32, i32) {
    %c0_i32 = arith.constant 0 : i32
    %c0_i32_0 = arith.constant 0 : i32
    %c0_i32_1 = arith.constant 0 : i32
    return %c0_i32, %c0_i32_0 : i32, i32
  }
  func.func @transform_3(%arg0: i32) -> (i32, i32, i32) {
    %c0_i32 = arith.constant 0 : i32
    %c0_i32_0 = arith.constant 0 : i32
    %c0_i32_1 = arith.constant 0 : i32
    %c0_i32_2 = arith.constant 0 : i32
    return %c0_i32, %c0_i32_0, %c0_i32_1 : i32, i32, i32
  }
  func.func @transform_4(%arg0: i32) -> (i32, i32, i32) {
    %c0_i32 = arith.constant 0 : i32
    %c0_i32_0 = arith.constant 0 : i32
    %c0_i32_1 = arith.constant 0 : i32
    return %arg0, %c0_i32, %c0_i32_0 : i32, i32, i32
  }
  func.func @transform_5(%arg0: i32) -> (i32, i32, i32) {
    %c0_i32 = arith.constant 0 : i32
    %c0_i32_0 = arith.constant 0 : i32
    %c0_i32_1 = arith.constant 0 : i32
    return %arg0, %c0_i32, %c0_i32_0 : i32, i32, i32
  }
}

module attributes {stable_mosaic.version = 11 : i64} {
  func.func @_bn_add_relu_kernel(%arg0: i32, %arg1: memref<16x64xf32, #tpu.memory_space<vmem>>, %arg2: memref<1x64xf32, #tpu.memory_space<vmem>>, %arg3: memref<1x64xf32, #tpu.memory_space<vmem>>, %arg4: memref<16x64xf32, #tpu.memory_space<vmem>>, %arg5: memref<16x64xf32, #tpu.memory_space<vmem>>) attributes {dimension_semantics = [#tpu.dimension_semantics<parallel>], iteration_bounds = array<i64: 2>, scalar_prefetch = 0 : i64, scratch_operands = 0 : i64, tpu.core_type = #tpu.core_type<tc>, window_params = [{transform_indices = @transform_0, window_bounds = array<i64: 16, 64>}, {pipeline_mode = #tpu.pipeline_mode<synchronous>, transform_indices = @transform_1, window_bounds = array<i64: 1, 64>}, {pipeline_mode = #tpu.pipeline_mode<synchronous>, transform_indices = @transform_2, window_bounds = array<i64: 1, 64>}, {transform_indices = @transform_3, window_bounds = array<i64: 16, 64>}, {transform_indices = @transform_4, window_bounds = array<i64: 16, 64>}]} {
    %c0 = arith.constant 0 : index
    %c0_0 = arith.constant 0 : index
    %0 = vector.load %arg1[%c0, %c0_0] : memref<16x64xf32, #tpu.memory_space<vmem>>, vector<16x64xf32>
    %c0_1 = arith.constant 0 : index
    %c0_2 = arith.constant 0 : index
    %1 = vector.load %arg2[%c0_1, %c0_2] : memref<1x64xf32, #tpu.memory_space<vmem>>, vector<1x64xf32>
    %2 = vector.broadcast %1 : vector<1x64xf32> to vector<16x64xf32>
    %3 = arith.mulf %0, %2 : vector<16x64xf32>
    %c0_3 = arith.constant 0 : index
    %c0_4 = arith.constant 0 : index
    %4 = vector.load %arg3[%c0_3, %c0_4] : memref<1x64xf32, #tpu.memory_space<vmem>>, vector<1x64xf32>
    %5 = vector.broadcast %4 : vector<1x64xf32> to vector<16x64xf32>
    %6 = arith.addf %3, %5 : vector<16x64xf32>
    %c0_5 = arith.constant 0 : index
    %c0_6 = arith.constant 0 : index
    %7 = vector.load %arg4[%c0_5, %c0_6] : memref<16x64xf32, #tpu.memory_space<vmem>>, vector<16x64xf32>
    %8 = arith.addf %6, %7 : vector<16x64xf32>
    %cst = arith.constant 0.000000e+00 : f32
    %9 = vector.broadcast %cst : f32 to vector<16x64xf32>
    %10 = arith.maximumf %8, %9 : vector<16x64xf32>
    %c0_7 = arith.constant 0 : index
    %c0_8 = arith.constant 0 : index
    %11 = vector.load %arg5[%c0_7, %c0_8] : memref<16x64xf32, #tpu.memory_space<vmem>>, vector<16x64xf32>
    tpu.vector_store %arg5[%c0_7, %c0_8], %10 {strides = array<i32>} : memref<16x64xf32, #tpu.memory_space<vmem>>, vector<16x64xf32>,
    return
  }
  func.func @transform_0(%arg0: i32) -> (i32, i32) {
    %c0_i32 = arith.constant 0 : i32
    %c0_i32_0 = arith.constant 0 : i32
    return %arg0, %c0_i32 : i32, i32
  }
  func.func @transform_1(%arg0: i32) -> (i32, i32) {
    %c0_i32 = arith.constant 0 : i32
    %c0_i32_0 = arith.constant 0 : i32
    %c0_i32_1 = arith.constant 0 : i32
    return %c0_i32, %c0_i32_0 : i32, i32
  }
  func.func @transform_2(%arg0: i32) -> (i32, i32) {
    %c0_i32 = arith.constant 0 : i32
    %c0_i32_0 = arith.constant 0 : i32
    %c0_i32_1 = arith.constant 0 : i32
    return %c0_i32, %c0_i32_0 : i32, i32
  }
  func.func @transform_3(%arg0: i32) -> (i32, i32) {
    %c0_i32 = arith.constant 0 : i32
    %c0_i32_0 = arith.constant 0 : i32
    return %arg0, %c0_i32 : i32, i32
  }
  func.func @transform_4(%arg0: i32) -> (i32, i32) {
    %c0_i32 = arith.constant 0 : i32
    %c0_i32_0 = arith.constant 0 : i32
    return %arg0, %c0_i32 : i32, i32
  }
}

</mosaic_0001>

<llo_original>
// kernel: residual_block_forward.5
$region0: #{residual_block_forward.5}
  #allocation0 [shape = 'u32[]', space=smem, size = 0x4, offset = 0x4, fixed_abs, tag = 'smem constant byte address 0x4 - core index']
  #allocation1 [shape = 'u32[72,128]{1,0:T(1,128)}', space=vmem, size = 0x9000, scoped, tag = 'internal scratch']
  %s0 = inlined_call_operand.vmem [shape: f32[32,64], index: 0, kind: input, shape index: {}]
  %s1 = inlined_call_operand.vmem [shape: f32[1,64], index: 1, kind: input, shape index: {}]
  %s2 = inlined_call_operand.vmem [shape: f32[1,64], index: 2, kind: input, shape index: {}]
  %s3 = inlined_call_operand.vmem [shape: f32[32,64], index: 3, kind: input, shape index: {}]
  %s4 = inlined_call_operand.vmem [shape: f32[32,64], index: 4, kind: output, shape index: {}]
  %s5 = sld [smem:[#allocation0]]
  $region49: #{residual_block_forward.5} parent=0
    _
  %s7 = ssub.s32 1, %s5
  %s8 = scalar_select 0, %s7, %s5
  loop: start=0, step=1, limit=4
  $region2: #{residual_block_forward.5} parent=0 // loop_pre_header
    _
  $region3: #{residual_block_forward.5} parent=0 // loop_header
    %s10 = sphi 0, %s14
    %p11 = scmp.ge.s32.totalorder %s10, 4
    %s20 = sphi 0, %s22
    %s23 = sphi 0, %s20
    %s24 = sphi 0, %s23
    %s40 = sphi 0, %s24
    %s44 = sphi 0, %s44
    %s46 = sphi 0, %s44
    %s47 = sphi 0, %s46
    %s61 = sphi 0, %s47
    %s65 = sphi 0, %s65
    %s67 = sphi 0, %s65
    %s68 = sphi 0, %s67
    %s82 = sphi 0, %s68
    %s88 = sphi 0, %s90
    %s91 = sphi 0, %s88
    %s92 = sphi 0, %s91
    %s108 = sphi 0, %s92
    %s114 = sphi 0, %s116
    %s117 = sphi 0, %s114
    %s118 = sphi 0, %s117
    %s134 = sphi 0, %s118
  $region4: #{residual_block_forward.5} parent=0 // loop_header_branch
    %13 = sbr.rel (%p11) target = $region8
  $region5: #{residual_block_forward.5} parent=0 // loop_body
    %s15 = ssub.s32 %s10, 1
    %s16 = ssub.s32 %s10, 2
    %s17 = sadd.s32 %s10, 1
    %s18 = ssub.s32 %s10, %s17
    %p19 = scmp.eq.s32.totalorder %s18, 0
    %s21 = sadd.s32 %s20, 1
    %s22 = scalar_select %p19, %s20, %s21
    %p25 = pneg %p19
    %p26 = scmp.eq.s32.totalorder %s10, 1
    %p27 = por %p25, %p26
    %p28 = scmp.ne.s32.totalorder %s20, %s23
    %p29 = scmp.eq.s32.totalorder %s10, 0
    %p30 = por %p28, %p29
    %p31 = scmp.ne.s32.totalorder %s20, %s23
    %p32 = scmp.eq.s32.totalorder %s15, 1
    %p33 = por %p31, %p32
    %p34 = scmp.ne.s32.totalorder %s23, %s24
    %p35 = scmp.eq.s32.totalorder %s15, 0
    %p36 = por %p34, %p35
    %p37 = scmp.ne.s32.totalorder %s23, %s24
    %p38 = scmp.eq.s32.totalorder %s16, 1
    %p39 = por %p37, %p38
    %p41 = scmp.ne.s32.totalorder %s24, %s40
    %p42 = scmp.eq.s32.totalorder %s16, 0
    %p43 = por %p41, %p42
    %s45 = sadd.s32 %s44, 1
    %p48 = scmp.eq.s32.totalorder %s10, 1
    %p49 = scmp.ne.s32.totalorder %s44, %s46
    %p50 = scmp.eq.s32.totalorder %s10, 0
    %p51 = por %p49, %p50
    %p52 = scmp.ne.s32.totalorder %s44, %s46
    %p53 = scmp.eq.s32.totalorder %s15, 1
    %p54 = por %p52, %p53
    %p55 = scmp.ne.s32.totalorder %s46, %s47
    %p56 = scmp.eq.s32.totalorder %s15, 0
    %p57 = por %p55, %p56
    %p58 = scmp.ne.s32.totalorder %s46, %s47
    %p59 = scmp.eq.s32.totalorder %s16, 1
    %p60 = por %p58, %p59
    %p62 = scmp.ne.s32.totalorder %s47, %s61
    %p63 = scmp.eq.s32.totalorder %s16, 0
    %p64 = por %p62, %p63
    %s66 = sadd.s32 %s65, 1
    %p69 = scmp.eq.s32.totalorder %s10, 1
    %p70 = scmp.ne.s32.totalorder %s65, %s67
    %p71 = scmp.eq.s32.totalorder %s10, 0
    %p72 = por %p70, %p71
    %p73 = scmp.ne.s32.totalorder %s65, %s67
    %p74 = scmp.eq.s32.totalorder %s15, 1
    %p75 = por %p73, %p74
    %p76 = scmp.ne.s32.totalorder %s67, %s68
    %p77 = scmp.eq.s32.totalorder %s15, 0
    %p78 = por %p76, %p77
    %p79 = scmp.ne.s32.totalorder %s67, %s68
    %p80 = scmp.eq.s32.totalorder %s16, 1
    %p81 = por %p79, %p80
    %p83 = scmp.ne.s32.totalorder %s68, %s82
    %p84 = scmp.eq.s32.totalorder %s16, 0
    %p85 = por %p83, %p84
    %s86 = ssub.s32 %s10, %s17
    %p87 = scmp.eq.s32.totalorder %s86, 0
    %s89 = sadd.s32 %s88, 1
    %s90 = scalar_select %p87, %s88, %s89
    %p93 = pneg %p87
    %p94 = scmp.eq.s32.totalorder %s10, 1
    %p95 = por %p93, %p94
    %p96 = scmp.ne.s32.totalorder %s88, %s91
    %p97 = scmp.eq.s32.totalorder %s10, 0
    %p98 = por %p96, %p97
    %p99 = scmp.ne.s32.totalorder %s88, %s91
    %p100 = scmp.eq.s32.totalorder %s15, 1
    %p101 = por %p99, %p100
    %p102 = scmp.ne.s32.totalorder %s91, %s92
    %p103 = scmp.eq.s32.totalorder %s15, 0
    %p104 = por %p102, %p103
    %p105 = scmp.ne.s32.totalorder %s91, %s92
    %p106 = scmp.eq.s32.totalorder %s16, 1
    %p107 = por %p105, %p106
    %p109 = scmp.ne.s32.totalorder %s92, %s108
    %p110 = scmp.eq.s32.totalorder %s16, 0
    %p111 = por %p109, %p110
    %s112 = ssub.s32 %s10, %s17
    %p113 = scmp.eq.s32.totalorder %s112, 0
    %s115 = sadd.s32 %s114, 1
    %s116 = scalar_select %p113, %s114, %s115
    %p119 = pneg %p113
    %p120 = scmp.eq.s32.totalorder %s10, 1
    %p121 = por %p119, %p120
    %p122 = scmp.ne.s32.totalorder %s114, %s117
    %p123 = scmp.eq.s32.totalorder %s10, 0
    %p124 = por %p122, %p123
    %p125 = scmp.ne.s32.totalorder %s114, %s117
    %p126 = scmp.eq.s32.totalorder %s15, 1
    %p127 = por %p125, %p126
    %p128 = scmp.ne.s32.totalorder %s117, %s118
    %p129 = scmp.eq.s32.totalorder %s15, 0
    %p130 = por %p128, %p129
    %p131 = scmp.ne.s32.totalorder %s117, %s118
    %p132 = scmp.eq.s32.totalorder %s16, 1
    %p133 = por %p131, %p132
    %p135 = scmp.ne.s32.totalorder %s118, %s134
    %p136 = scmp.eq.s32.totalorder %s16, 0
    %p137 = por %p135, %p136
    %p138 = scmp.le.s32.totalorder 1, %s10
    %p139 = scmp.lt.s32.totalorder %s10, 3
    %p140 = pnand %p138, %p139
    %p141 = pneg %p140
    // Predicated region
    $region9: #{residual_block_forward.5} parent=5 // pred_check
      _
    $region10: #{residual_block_forward.5} parent=5 // pred_check_branch
      %143 = sbr.rel (%p140) target = $region12
    $region11: #{residual_block_forward.5} parent=5 // pred_region
      %s144 = ssub.s32 %s10, 1
      // Predicated region
      $region13: #{residual_block_forward.5} parent=11 // pred_check
        %p145 = pneg %p57
      $region14: #{residual_block_forward.5} parent=11 // pred_check_branch
        %147 = sbr.rel (%p145) target = $region16
      $region15: #{residual_block_forward.5} parent=11 // pred_region
        _
      $region16: #{residual_block_forward.5} parent=11 // pred_fallthru
        _
      // Predicated region
      $region17: #{residual_block_forward.5} parent=11 // pred_check
        %p148 = pneg %p78
      $region18: #{residual_block_forward.5} parent=11 // pred_check_branch
        %150 = sbr.rel (%p148) target = $region20
      $region19: #{residual_block_forward.5} parent=11 // pred_region
        _
      $region20: #{residual_block_forward.5} parent=11 // pred_fallthru
        _
    $region12: #{residual_block_forward.5} parent=5 // pred_fallthru
      _
    %p151 = scmp.lt.s32.totalorder %s10, 2
    // Predicated region
    $region21: #{residual_block_forward.5} parent=5 // pred_check
      %p152 = pneg %p151
    $region22: #{residual_block_forward.5} parent=5 // pred_check_branch
      %154 = sbr.rel (%p152) target = $region24
    $region23: #{residual_block_forward.5} parent=5 // pred_region
      // Predicated region
      $region25: #{residual_block_forward.5} parent=23 // pred_check
        %p155 = pneg %p30
      $region26: #{residual_block_forward.5} parent=23 // pred_check_branch
        %157 = sbr.rel (%p155) target = $region28
      $region27: #{residual_block_forward.5} parent=23 // pred_region
        %s158 = smul.u32 2, %s10
        %p159 = scmp.lt.s32.totalorder %s158, 3
        %s160 = scalar_select %p159, %s158, 3
        %s161 = smul.addr %s160, 8
        %s162 = scalar_lea.vmem %s0, %s161
        %s163 = smul.u32 2, %s10
      $region28: #{residual_block_forward.5} parent=23 // pred_fallthru
        _
      // Predicated region
      $region29: #{residual_block_forward.5} parent=23 // pred_check
        %p164 = pneg %p98
      $region30: #{residual_block_forward.5} parent=23 // pred_check_branch
        %166 = sbr.rel (%p164) target = $region32
      $region31: #{residual_block_forward.5} parent=23 // pred_region
        %s167 = smul.u32 2, %s10
        %p168 = scmp.lt.s32.totalorder %s167, 3
        %s169 = scalar_select %p168, %s167, 3
        %s170 = smul.addr %s169, 8
        %s171 = scalar_lea.vmem %s3, %s170
        %s172 = smul.u32 2, %s10
      $region32: #{residual_block_forward.5} parent=23 // pred_fallthru
        _
    $region24: #{residual_block_forward.5} parent=5 // pred_fallthru
      _
    %p173 = scmp.le.s32.totalorder 1, %s10
    %p174 = scmp.lt.s32.totalorder %s10, 3
    %p175 = pnand %p173, %p174
    %p176 = pneg %p175
    // Predicated region
    $region33: #{residual_block_forward.5} parent=5 // pred_check
      _
    $region34: #{residual_block_forward.5} parent=5 // pred_check_branch
      %178 = sbr.rel (%p175) target = $region36
    $region35: #{residual_block_forward.5} parent=5 // pred_region
      %s179 = ssub.s32 %s10, 1
      %s180 = smul.u32 2, %s15
      %p181 = scmp.lt.s32.totalorder %s180, 3
      %s182 = scalar_select %p181, %s180, 3
      %s183 = smul.addr %s182, 8
      %s184 = scalar_lea.vmem %s0, %s183
      %p185 = pneg %p36
      %p186 = pneg %p33
      %p187 = pneg %p57
      %p188 = pneg %p54
      %p189 = pneg %p78
      %p190 = pneg %p75
      %s191 = smul.u32 2, %s15
      %p192 = scmp.lt.s32.totalorder %s191, 3
      %s193 = scalar_select %p192, %s191, 3
      %s194 = smul.addr %s193, 8
      %s195 = scalar_lea.vmem %s3, %s194
      %p196 = pneg %p104
      %p197 = pneg %p101
      %p198 = pneg %p130
      %p199 = pneg %p127
      %s200 = smul.u32 2, %s15
      %p201 = scmp.lt.s32.totalorder %s200, 3
      %s202 = scalar_select %p201, %s200, 3
      %s203 = smul.addr %s202, 8
      %s204 = scalar_lea.vmem %s4, %s203
      %s205 = smul.u32 2, %s15
      %p206 = scmp.lt.s32.totalorder %s205, 3
      %s207 = scalar_select %p206, %s205, 3
      %s208 = smul.addr %s207, 8
      %s209 = scalar_lea.vmem %s0, %s208
      %s210 = smul.u32 2, %s15
      %s211 = smul.u32 2, %s15
      %p212 = scmp.lt.s32.totalorder %s211, 3
      %s213 = scalar_select %p212, %s211, 3
      %s214 = smul.addr %s213, 8
      %s215 = scalar_lea.vmem %s3, %s214
      %s216 = smul.u32 2, %s15
      %s217 = smul.u32 2, %s15
      %p218 = scmp.lt.s32.totalorder %s217, 3
      %s219 = scalar_select %p218, %s217, 3
      %s220 = smul.addr %s219, 8
      %s221 = scalar_lea.vmem %s4, %s220
      %s222 = smul.u32 2, %s15
      %v223 = vld [vmem:[%s209] sm:$0xff]
      %v224 = vld [vmem:[%s209 + $0x8] sm:$0xff]
      %v225 = vld [vmem:[%s1] sm:$0x1]
      %v227 = vperm.slane %v225, 0
      %v229 = vmul.f32 %v223, %v227
      %v230 = vmul.f32 %v224, %v227
      %v231 = vld [vmem:[%s2] sm:$0x1]
      %v233 = vperm.slane %v231, 0
      %v235 = vadd.f32 %v229, %v233
      %v236 = vadd.f32 %v230, %v233
      %v237 = vld [vmem:[%s215] sm:$0xff]
      %v238 = vld [vmem:[%s215 + $0x8] sm:$0xff]
      %v239 = vadd.f32 %v235, %v237
      %v240 = vadd.f32 %v236, %v238
      %v241 = vmax.f32 %v239, 0.0
      %v242 = vmax.f32 %v240, 0.0
      %vm243 = vcmask 523264
      %244 = vst.msk [vmem:[%s221] sm:$0xff] %vm243, %v241
      %245 = vst.msk [vmem:[%s221 + $0x8] sm:$0xff] %vm243, %v242
      %s246 = smul.u32 2, %s15
      %p247 = scmp.lt.s32.totalorder %s246, 3
      %s248 = scalar_select %p247, %s246, 3
      %s249 = smul.addr %s248, 8
      %s250 = scalar_lea.vmem %s4, %s249
      // Predicated region
      $region37: #{residual_block_forward.5} parent=35 // pred_check
        %p251 = pneg %p127
      $region38: #{residual_block_forward.5} parent=35 // pred_check_branch
        %253 = sbr.rel (%p251) target = $region40
      $region39: #{residual_block_forward.5} parent=35 // pred_region
        %s254 = smul.u32 2, %s15
      $region40: #{residual_block_forward.5} parent=35 // pred_fallthru
        _
    $region36: #{residual_block_forward.5} parent=5 // pred_fallthru
      _
    %p255 = scmp.le.s32.totalorder 2, %s10
    // Predicated region
    $region41: #{residual_block_forward.5} parent=5 // pred_check
      %p256 = pneg %p255
    $region42: #{residual_block_forward.5} parent=5 // pred_check_branch
      %258 = sbr.rel (%p256) target = $region44
    $region43: #{residual_block_forward.5} parent=5 // pred_region
      %s259 = ssub.s32 %s10, 2
      // Predicated region
      $region45: #{residual_block_forward.5} parent=43 // pred_check
        %p260 = pneg %p133
      $region46: #{residual_block_forward.5} parent=43 // pred_check_branch
        %262 = sbr.rel (%p260) target = $region48
      $region47: #{residual_block_forward.5} parent=43 // pred_region
        %s263 = smul.u32 2, %s16
        %p264 = scmp.lt.s32.totalorder %s263, 3
        %s265 = scalar_select %p264, %s263, 3
        %s266 = smul.addr %s265, 8
        %s267 = scalar_lea.vmem %s4, %s266
      $region48: #{residual_block_forward.5} parent=43 // pred_fallthru
        _
    $region44: #{residual_block_forward.5} parent=5 // pred_fallthru
      _
  $region6: #{residual_block_forward.5} parent=0 // loop_footer
    %s14 = sadd.s32 1, %s10
  $region7: #{residual_block_forward.5} parent=0 // loop_footer_branch
    %9 = sbr.rel target = $region3
  $region8: #{residual_block_forward.5} parent=0 // loop_exit
    _

// kernel: residual_block_forward.3
$region0: #{residual_block_forward.3}
  #allocation0 [shape = 'u32[]', space=smem, size = 0x4, offset = 0x4, fixed_abs, tag = 'smem constant byte address 0x4 - core index']
  #allocation1 [shape = 'u32[72,128]{1,0:T(1,128)}', space=vmem, size = 0x9000, scoped, tag = 'internal scratch']
  %s0 = inlined_call_operand.vmem [shape: bf16[2,18,18,4], index: 0, kind: input, shape index: {}]
  %s1 = inlined_call_operand.vmem [shape: bf16[9,4,4], index: 1, kind: input, shape index: {}]
  %s2 = inlined_call_operand.vmem [shape: f32[2,256,4], index: 2, kind: output, shape index: {0}]
  %s3 = inlined_call_operand.vmem [shape: f32[2,2,4], index: 3, kind: output, shape index: {1}]
  %4 = xla_tuple %s2, %s3
  %s5 = sld [smem:[#allocation0]]
  $region49: #{residual_block_forward.3} parent=0
    _
  %s7 = ssub.s32 1, %s5
  %s8 = scalar_select 0, %s7, %s5
  loop: start=0, step=1, limit=4
  $region2: #{residual_block_forward.3} parent=0 // loop_pre_header
    _
  $region3: #{residual_block_forward.3} parent=0 // loop_header
    %s10 = sphi 0, %s14
    %p11 = scmp.ge.s32.totalorder %s10, 4
    %s20 = sphi 0, %s22
    %s23 = sphi 0, %s20
    %s24 = sphi 0, %s23
    %s40 = sphi 0, %s24
    %s44 = sphi 0, %s44
    %s46 = sphi 0, %s44
    %s47 = sphi 0, %s46
    %s61 = sphi 0, %s47
    %s67 = sphi 0, %s69
    %s70 = sphi 0, %s67
    %s71 = sphi 0, %s70
    %s87 = sphi 0, %s71
    %s93 = sphi 0, %s95
    %s96 = sphi 0, %s93
    %s97 = sphi 0, %s96
    %s113 = sphi 0, %s97
  $region4: #{residual_block_forward.3} parent=0 // loop_header_branch
    %13 = sbr.rel (%p11) target = $region8
  $region5: #{residual_block_forward.3} parent=0 // loop_body
    %s15 = ssub.s32 %s10, 1
    %s16 = ssub.s32 %s10, 2
    %s17 = sadd.s32 %s10, 1
    %s18 = ssub.s32 %s10, %s17
    %p19 = scmp.eq.s32.totalorder %s18, 0
    %s21 = sadd.s32 %s20, 1
    %s22 = scalar_select %p19, %s20, %s21
    %p25 = pneg %p19
    %p26 = scmp.eq.s32.totalorder %s10, 1
    %p27 = por %p25, %p26
    %p28 = scmp.ne.s32.totalorder %s20, %s23
    %p29 = scmp.eq.s32.totalorder %s10, 0
    %p30 = por %p28, %p29
    %p31 = scmp.ne.s32.totalorder %s20, %s23
    %p32 = scmp.eq.s32.totalorder %s15, 1
    %p33 = por %p31, %p32
    %p34 = scmp.ne.s32.totalorder %s23, %s24
    %p35 = scmp.eq.s32.totalorder %s15, 0
    %p36 = por %p34, %p35
    %p37 = scmp.ne.s32.totalorder %s23, %s24
    %p38 = scmp.eq.s32.totalorder %s16, 1
    %p39 = por %p37, %p38
    %p41 = scmp.ne.s32.totalorder %s24, %s40
    %p42 = scmp.eq.s32.totalorder %s16, 0
    %p43 = por %p41, %p42
    %s45 = sadd.s32 %s44, 1
    %p48 = scmp.eq.s32.totalorder %s10, 1
    %p49 = scmp.ne.s32.totalorder %s44, %s46
    %p50 = scmp.eq.s32.totalorder %s10, 0
    %p51 = por %p49, %p50
    %p52 = scmp.ne.s32.totalorder %s44, %s46
    %p53 = scmp.eq.s32.totalorder %s15, 1
    %p54 = por %p52, %p53
    %p55 = scmp.ne.s32.totalorder %s46, %s47
    %p56 = scmp.eq.s32.totalorder %s15, 0
    %p57 = por %p55, %p56
    %p58 = scmp.ne.s32.totalorder %s46, %s47
    %p59 = scmp.eq.s32.totalorder %s16, 1
    %p60 = por %p58, %p59
    %p62 = scmp.ne.s32.totalorder %s47, %s61
    %p63 = scmp.eq.s32.totalorder %s16, 0
    %p64 = por %p62, %p63
    %s65 = ssub.s32 %s10, %s17
    %p66 = scmp.eq.s32.totalorder %s65, 0
    %s68 = sadd.s32 %s67, 1
    %s69 = scalar_select %p66, %s67, %s68
    %p72 = pneg %p66
    %p73 = scmp.eq.s32.totalorder %s10, 1
    %p74 = por %p72, %p73
    %p75 = scmp.ne.s32.totalorder %s67, %s70
    %p76 = scmp.eq.s32.totalorder %s10, 0
    %p77 = por %p75, %p76
    %p78 = scmp.ne.s32.totalorder %s67, %s70
    %p79 = scmp.eq.s32.totalorder %s15, 1
    %p80 = por %p78, %p79
    %p81 = scmp.ne.s32.totalorder %s70, %s71
    %p82 = scmp.eq.s32.totalorder %s15, 0
    %p83 = por %p81, %p82
    %p84 = scmp.ne.s32.totalorder %s70, %s71
    %p85 = scmp.eq.s32.totalorder %s16, 1
    %p86 = por %p84, %p85
    %p88 = scmp.ne.s32.totalorder %s71, %s87
    %p89 = scmp.eq.s32.totalorder %s16, 0
    %p90 = por %p88, %p89
    %s91 = ssub.s32 %s10, %s17
    %p92 = scmp.eq.s32.totalorder %s91, 0
    %s94 = sadd.s32 %s93, 1
    %s95 = scalar_select %p92, %s93, %s94
    %p98 = pneg %p92
    %p99 = scmp.eq.s32.totalorder %s10, 1
    %p100 = por %p98, %p99
    %p101 = scmp.ne.s32.totalorder %s93, %s96
    %p102 = scmp.eq.s32.totalorder %s10, 0
    %p103 = por %p101, %p102
    %p104 = scmp.ne.s32.totalorder %s93, %s96
    %p105 = scmp.eq.s32.totalorder %s15, 1
    %p106 = por %p104, %p105
    %p107 = scmp.ne.s32.totalorder %s96, %s97
    %p108 = scmp.eq.s32.totalorder %s15, 0
    %p109 = por %p107, %p108
    %p110 = scmp.ne.s32.totalorder %s96, %s97
    %p111 = scmp.eq.s32.totalorder %s16, 1
    %p112 = por %p110, %p111
    %p114 = scmp.ne.s32.totalorder %s97, %s113
    %p115 = scmp.eq.s32.totalorder %s16, 0
    %p116 = por %p114, %p115
    %p117 = scmp.le.s32.totalorder 1, %s10
    %p118 = scmp.lt.s32.totalorder %s10, 3
    %p119 = pnand %p117, %p118
    %p120 = pneg %p119
    // Predicated region
    $region9: #{residual_block_forward.3} parent=5 // pred_check
      _
    $region10: #{residual_block_forward.3} parent=5 // pred_check_branch
      %122 = sbr.rel (%p119) target = $region12
    $region11: #{residual_block_forward.3} parent=5 // pred_region
      %s123 = ssub.s32 %s10, 1
      // Predicated region
      $region13: #{residual_block_forward.3} parent=11 // pred_check
        %p124 = pneg %p57
      $region14: #{residual_block_forward.3} parent=11 // pred_check_branch
        %126 = sbr.rel (%p124) target = $region16
      $region15: #{residual_block_forward.3} parent=11 // pred_region
        _
      $region16: #{residual_block_forward.3} parent=11 // pred_fallthru
        _
    $region12: #{residual_block_forward.3} parent=5 // pred_fallthru
      _
    %p127 = scmp.lt.s32.totalorder %s10, 2
    // Predicated region
    $region17: #{residual_block_forward.3} parent=5 // pred_check
      %p128 = pneg %p127
    $region18: #{residual_block_forward.3} parent=5 // pred_check_branch
      %130 = sbr.rel (%p128) target = $region20
    $region19: #{residual_block_forward.3} parent=5 // pred_region
      // Predicated region
      $region21: #{residual_block_forward.3} parent=19 // pred_check
        %p131 = pneg %p30
      $region22: #{residual_block_forward.3} parent=19 // pred_check_branch
        %133 = sbr.rel (%p131) target = $region24
      $region23: #{residual_block_forward.3} parent=19 // pred_region
        %p134 = scmp.lt.s32.totalorder %s10, 1
        %s135 = scalar_select %p134, %s10, 1
        %s136 = smul.addr %s135, 54
        %s137 = smul.addr %s136, 4
        %s138 = scalar_lea.vmem %s0, %s137
      $region24: #{residual_block_forward.3} parent=19 // pred_fallthru
        _
    $region20: #{residual_block_forward.3} parent=5 // pred_fallthru
      _
    %p139 = scmp.le.s32.totalorder 1, %s10
    %p140 = scmp.lt.s32.totalorder %s10, 3
    %p141 = pnand %p139, %p140
    %p142 = pneg %p141
    // Predicated region
    $region25: #{residual_block_forward.3} parent=5 // pred_check
      _
    $region26: #{residual_block_forward.3} parent=5 // pred_check_branch
      %144 = sbr.rel (%p141) target = $region28
    $region27: #{residual_block_forward.3} parent=5 // pred_region
      %s145 = ssub.s32 %s10, 1
      %p146 = scmp.lt.s32.totalorder %s15, 1
      %s147 = scalar_select %p146, %s15, 1
      %s148 = smul.addr %s147, 54
      %s149 = smul.addr %s148, 4
      %s150 = scalar_lea.vmem %s0, %s149
      %p151 = pneg %p36
      %p152 = pneg %p33
      %p153 = pneg %p57
      %p154 = pneg %p54
      %p155 = pneg %p83
      %p156 = pneg %p80
      %p157 = scmp.lt.s32.totalorder %s15, 1
      %s158 = scalar_select %p157, %s15, 1
      %s159 = smul.addr %s158, 32
      %s160 = smul.addr %s159, 8
      %s161 = scalar_lea.vmem %s2, %s160
      %p162 = pneg %p109
      %p163 = pneg %p106
      %p164 = scmp.lt.s32.totalorder %s15, 1
      %s165 = scalar_select %p164, %s15, 1
      %s166 = smul.addr %s165, 2
      %s167 = scalar_lea.vmem %s3, %s166
      %p168 = scmp.lt.s32.totalorder %s15, 1
      %s169 = scalar_select %p168, %s15, 1
      %s170 = smul.addr %s169, 54
      %s171 = smul.addr %s170, 4
      %s172 = scalar_lea.vmem %s0, %s171
      %p173 = scmp.lt.s32.totalorder %s15, 1
      %s174 = scalar_select %p173, %s15, 1
      %s175 = smul.addr %s174, 32
      %s176 = smul.addr %s175, 8
      %s177 = scalar_lea.vmem %s2, %s176
      %p178 = scmp.lt.s32.totalorder %s15, 1
      %s179 = scalar_select %p178, %s15, 1
      %s180 = smul.addr %s179, 2
      %s181 = scalar_lea.vmem %s3, %s180
      %v183 = vld [vmem:[%s172] sm:$0xf]
      %v184 = vld [vmem:[%s172 + $0x4] sm:$0xf]
      %v185 = vld [vmem:[%s172 + $0x8] sm:$0x1]
      %v186 = vld [vmem:[%s172 + $0xc] sm:$0xf]
      %v187 = vld [vmem:[%s172 + $0x10] sm:$0xf]
      %v188 = vld [vmem:[%s172 + $0x14] sm:$0x1]
      %v189 = vld [vmem:[%s172 + $0x18] sm:$0xf]
      %v190 = vld [vmem:[%s172 + $0x1c] sm:$0xf]
      %v191 = vld [vmem:[%s172 + $0x20] sm:$0x1]
      %v192 = vld [vmem:[%s172 + $0x24] sm:$0xf]
      %v193 = vld [vmem:[%s172 + $0x28] sm:$0xf]
      %v194 = vld [vmem:[%s172 + $0x2c] sm:$0x1]
      %v195 = vld [vmem:[%s172 + $0x30] sm:$0xf]
      %v196 = vld [vmem:[%s172 + $0x34] sm:$0xf]
      %v197 = vld [vmem:[%s172 + $0x38] sm:$0x1]
      %v198 = vld [vmem:[%s172 + $0x3c] sm:$0xf]
      %v199 = vld [vmem:[%s172 + $0x40] sm:$0xf]
      %v200 = vld [vmem:[%s172 + $0x44] sm:$0x1]
      %v201 = vld [vmem:[%s172 + $0x48] sm:$0xf]
      %v202 = vld [vmem:[%s172 + $0x4c] sm:$0xf]
      %v203 = vld [vmem:[%s172 + $0x50] sm:$0x1]
      %v204 = vld [vmem:[%s172 + $0x54] sm:$0xf]
      %v205 = vld [vmem:[%s172 + $0x58] sm:$0xf]
      %v206 = vld [vmem:[%s172 + $0x5c] sm:$0x1]
      %v207 = vld [vmem:[%s172 + $0x60] sm:$0xf]
      %v208 = vld [vmem:[%s172 + $0x64] sm:$0xf]
      %v209 = vld [vmem:[%s172 + $0x68] sm:$0x1]
      %v210 = vld [vmem:[%s172 + $0x6c] sm:$0xf]
      %v211 = vld [vmem:[%s172 + $0x70] sm:$0xf]
      %v212 = vld [vmem:[%s172 + $0x74] sm:$0x1]
      %v213 = vld [vmem:[%s172 + $0x78] sm:$0xf]
      %v214 = vld [vmem:[%s172 + $0x7c] sm:$0xf]
      %v215 = vld [vmem:[%s172 + $0x80] sm:$0x1]
      %v216 = vld [vmem:[%s172 + $0x84] sm:$0xf]
      %v217 = vld [vmem:[%s172 + $0x88] sm:$0xf]
      %v218 = vld [vmem:[%s172 + $0x8c] sm:$0x1]
      %v219 = vld [vmem:[%s172 + $0x90] sm:$0xf]
      %v220 = vld [vmem:[%s172 + $0x94] sm:$0xf]
      %v221 = vld [vmem:[%s172 + $0x98] sm:$0x1]
      %v222 = vld [vmem:[%s172 + $0x9c] sm:$0xf]
      %v223 = vld [vmem:[%s172 + $0xa0] sm:$0xf]
      %v224 = vld [vmem:[%s172 + $0xa4] sm:$0x1]
      %v225 = vld [vmem:[%s172 + $0xa8] sm:$0xf]
      %v226 = vld [vmem:[%s172 + $0xac] sm:$0xf]
      %v227 = vld [vmem:[%s172 + $0xb0] sm:$0x1]
      %v228 = vld [vmem:[%s172 + $0xb4] sm:$0xf]
      %v229 = vld [vmem:[%s172 + $0xb8] sm:$0xf]
      %v230 = vld [vmem:[%s172 + $0xbc] sm:$0x1]
      %v231 = vld [vmem:[%s172 + $0xc0] sm:$0xf]
      %v232 = vld [vmem:[%s172 + $0xc4] sm:$0xf]
      %v233 = vld [vmem:[%s172 + $0xc8] sm:$0x1]
      %v234 = vld [vmem:[%s172 + $0xcc] sm:$0xf]
      %v235 = vld [vmem:[%s172 + $0xd0] sm:$0xf]
      %v236 = vld [vmem:[%s172 + $0xd4] sm:$0x1]
      %v237 = vld [vmem:[%s1] sm:$0x3]
      %vm238 = vsmask.f32 3328
      %vm239 = vsmask.f32 7440
      %vm240 = vmor %vm238, %vm239
      %v242 = vshrl.u32 %v183, 16
      %v244 = vrot.slane %v242, 4
      %v245 = vshll.u32 %v183, 16
      %v247 = vrot.slane %v245, 5
      %v248 = vor.u32 %v244, %v247
      %v249 = vrot.slane %v248, 4
      %v251 = vshll.u32 %v184, 16
      %v253 = vrot.slane %v251, 5
      %v254 = vsel %vm240, %v249, %v253
      %v255 = vshrl.u32 %v184, 16
      %v257 = vrot.slane %v255, 4
      %v258 = vor.u32 %v257, %v253
      %v259 = vrot.slane %v258, 4
      %v261 = vshll.u32 %v185, 16
      %v263 = vrot.slane %v261, 5
      %v264 = vsel %vm240, %v259, %v263
      %v266 = vshrl.u32 %v186, 16
      %v268 = vrot.slane %v266, 4
      %v269 = vshll.u32 %v186, 16
      %v271 = vrot.slane %v269, 5
      %v272 = vor.u32 %v268, %v271
      %v273 = vrot.slane %v272, 4
      %v275 = vshll.u32 %v187, 16
      %v277 = vrot.slane %v275, 5
      %v278 = vsel %vm240, %v273, %v277
      %v279 = vshrl.u32 %v187, 16
      %v281 = vrot.slane %v279, 4
      %v282 = vor.u32 %v281, %v277
      %v283 = vrot.slane %v282, 4
      %v285 = vshll.u32 %v188, 16
      %v287 = vrot.slane %v285, 5
      %v288 = vsel %vm240, %v283, %v287
      %v290 = vshrl.u32 %v189, 16
      %v292 = vrot.slane %v290, 4
      %v293 = vshll.u32 %v189, 16
      %v295 = vrot.slane %v293, 5
      %v296 = vor.u32 %v292, %v295
      %v297 = vrot.slane %v296, 4
      %v299 = vshll.u32 %v190, 16
      %v301 = vrot.slane %v299, 5
      %v302 = vsel %vm240, %v297, %v301
      %v303 = vshrl.u32 %v190, 16
      %v305 = vrot.slane %v303, 4
      %v306 = vor.u32 %v305, %v301
      %v307 = vrot.slane %v306, 4
      %v309 = vshll.u32 %v191, 16
      %v311 = vrot.slane %v309, 5
      %v312 = vsel %vm240, %v307, %v311
      %v314 = vshrl.u32 %v192, 16
      %v316 = vrot.slane %v314, 4
      %v317 = vshll.u32 %v192, 16
      %v319 = vrot.slane %v317, 5
      %v320 = vor.u32 %v316, %v319
      %v321 = vrot.slane %v320, 4
      %v323 = vshll.u32 %v193, 16
      %v325 = vrot.slane %v323, 5
      %v326 = vsel %vm240, %v321, %v325
      %v327 = vshrl.u32 %v193, 16
      %v329 = vrot.slane %v327, 4
      %v330 = vor.u32 %v329, %v325
      %v331 = vrot.slane %v330, 4
      %v333 = vshll.u32 %v194, 16
      %v335 = vrot.slane %v333, 5
      %v336 = vsel %vm240, %v331, %v335
      %v338 = vshrl.u32 %v195, 16
      %v340 = vrot.slane %v338, 4
      %v341 = vshll.u32 %v195, 16
      %v343 = vrot.slane %v341, 5
      %v344 = vor.u32 %v340, %v343
      %v345 = vrot.slane %v344, 4
      %v347 = vshll.u32 %v196, 16
      %v349 = vrot.slane %v347, 5
      %v350 = vsel %vm240, %v345, %v349
      %v351 = vshrl.u32 %v196, 16
      %v353 = vrot.slane %v351, 4
      %v354 = vor.u32 %v353, %v349
      %v355 = vrot.slane %v354, 4
      %v357 = vshll.u32 %v197, 16
      %v359 = vrot.slane %v357, 5
      %v360 = vsel %vm240, %v355, %v359
      %v362 = vshrl.u32 %v198, 16
      %v364 = vrot.slane %v362, 4
      %v365 = vshll.u32 %v198, 16
      %v367 = vrot.slane %v365, 5
      %v368 = vor.u32 %v364, %v367
      %v369 = vrot.slane %v368, 4
      %v371 = vshll.u32 %v199, 16
      %v373 = vrot.slane %v371, 5
      %v374 = vsel %vm240, %v369, %v373
      %v375 = vshrl.u32 %v199, 16
      %v377 = vrot.slane %v375, 4
      %v378 = vor.u32 %v377, %v373
      %v379 = vrot.slane %v378, 4
      %v381 = vshll.u32 %v200, 16
      %v383 = vrot.slane %v381, 5
      %v384 = vsel %vm240, %v379, %v383
      %v386 = vshrl.u32 %v201, 16
      %v388 = vrot.slane %v386, 4
      %v389 = vshll.u32 %v201, 16
      %v391 = vrot.slane %v389, 5
      %v392 = vor.u32 %v388, %v391
      %v393 = vrot.slane %v392, 4
      %v395 = vshll.u32 %v202, 16
      %v397 = vrot.slane %v395, 5
      %v398 = vsel %vm240, %v393, %v397
      %v399 = vshrl.u32 %v202, 16
      %v401 = vrot.slane %v399, 4
      %v402 = vor.u32 %v401, %v397
      %v403 = vrot.slane %v402, 4
      %v405 = vshll.u32 %v203, 16
      %v407 = vrot.slane %v405, 5
      %v408 = vsel %vm240, %v403, %v407
      %v410 = vshrl.u32 %v204, 16
      %v412 = vrot.slane %v410, 4
      %v413 = vshll.u32 %v204, 16
      %v415 = vrot.slane %v413, 5
      %v416 = vor.u32 %v412, %v415
      %v417 = vrot.slane %v416, 4
      %v419 = vshll.u32 %v205, 16
      %v421 = vrot.slane %v419, 5
      %v422 = vsel %vm240, %v417, %v421
      %v423 = vshrl.u32 %v205, 16
      %v425 = vrot.slane %v423, 4
      %v426 = vor.u32 %v425, %v421
      %v427 = vrot.slane %v426, 4
      %v429 = vshll.u32 %v206, 16
      %v431 = vrot.slane %v429, 5
      %v432 = vsel %vm240, %v427, %v431
      %v434 = vshrl.u32 %v207, 16
      %v436 = vrot.slane %v434, 4
      %v437 = vshll.u32 %v207, 16
      %v439 = vrot.slane %v437, 5
      %v440 = vor.u32 %v436, %v439
      %v441 = vrot.slane %v440, 4
      %v443 = vshll.u32 %v208, 16
      %v445 = vrot.slane %v443, 5
      %v446 = vsel %vm240, %v441, %v445
      %v447 = vshrl.u32 %v208, 16
      %v449 = vrot.slane %v447, 4
      %v450 = vor.u32 %v449, %v445
      %v451 = vrot.slane %v450, 4
      %v453 = vshll.u32 %v209, 16
      %v455 = vrot.slane %v453, 5
      %v456 = vsel %vm240, %v451, %v455
      %v458 = vshrl.u32 %v210, 16
      %v460 = vrot.slane %v458, 4
      %v461 = vshll.u32 %v210, 16
      %v463 = vrot.slane %v461, 5
      %v464 = vor.u32 %v460, %v463
      %v465 = vrot.slane %v464, 4
      %v467 = vshll.u32 %v211, 16
      %v469 = vrot.slane %v467, 5
      %v470 = vsel %vm240, %v465, %v469
      %v471 = vshrl.u32 %v211, 16
      %v473 = vrot.slane %v471, 4
      %v474 = vor.u32 %v473, %v469
      %v475 = vrot.slane %v474, 4
      %v477 = vshll.u32 %v212, 16
      %v479 = vrot.slane %v477, 5
      %v480 = vsel %vm240, %v475, %v479
      %v482 = vshrl.u32 %v213, 16
      %v484 = vrot.slane %v482, 4
      %v485 = vshll.u32 %v213, 16
      %v487 = vrot.slane %v485, 5
      %v488 = vor.u32 %v484, %v487
      %v489 = vrot.slane %v488, 4
      %v491 = vshll.u32 %v214, 16
      %v493 = vrot.slane %v491, 5
      %v494 = vsel %vm240, %v489, %v493
      %v495 = vshrl.u32 %v214, 16
      %v497 = vrot.slane %v495, 4
      %v498 = vor.u32 %v497, %v493
      %v499 = vrot.slane %v498, 4
      %v501 = vshll.u32 %v215, 16
      %v503 = vrot.slane %v501, 5
      %v504 = vsel %vm240, %v499, %v503
      %v506 = vshrl.u32 %v216, 16
      %v508 = vrot.slane %v506, 4
      %v509 = vshll.u32 %v216, 16
      %v511 = vrot.slane %v509, 5
      %v512 = vor.u32 %v508, %v511
      %v513 = vrot.slane %v512, 4
      %v515 = vshll.u32 %v217, 16
      %v517 = vrot.slane %v515, 5
      %v518 = vsel %vm240, %v513, %v517
      %v519 = vshrl.u32 %v217, 16
      %v521 = vrot.slane %v519, 4
      %v522 = vor.u32 %v521, %v517
      %v523 = vrot.slane %v522, 4
      %v525 = vshll.u32 %v218, 16
      %v527 = vrot.slane %v525, 5
      %v528 = vsel %vm240, %v523, %v527
      %v530 = vshrl.u32 %v219, 16
      %v532 = vrot.slane %v530, 4
      %v533 = vshll.u32 %v219, 16
      %v535 = vrot.slane %v533, 5
      %v536 = vor.u32 %v532, %v535
      %v537 = vrot.slane %v536, 4
      %v539 = vshll.u32 %v220, 16
      %v541 = vrot.slane %v539, 5
      %v542 = vsel %vm240, %v537, %v541
      %v543 = vshrl.u32 %v220, 16
      %v545 = vrot.slane %v543, 4
      %v546 = vor.u32 %v545, %v541
      %v547 = vrot.slane %v546, 4
      %v549 = vshll.u32 %v221, 16
      %v551 = vrot.slane %v549, 5
      %v552 = vsel %vm240, %v547, %v551
      %v554 = vshrl.u32 %v222, 16
      %v556 = vrot.slane %v554, 4
      %v557 = vshll.u32 %v222, 16
      %v559 = vrot.slane %v557, 5
      %v560 = vor.u32 %v556, %v559
      %v561 = vrot.slane %v560, 4
      %v563 = vshll.u32 %v223, 16
      %v565 = vrot.slane %v563, 5
      %v566 = vsel %vm240, %v561, %v565
      %v567 = vshrl.u32 %v223, 16
      %v569 = vrot.slane %v567, 4
      %v570 = vor.u32 %v569, %v565
      %v571 = vrot.slane %v570, 4
      %v573 = vshll.u32 %v224, 16
      %v575 = vrot.slane %v573, 5
      %v576 = vsel %vm240, %v571, %v575
      %v578 = vshrl.u32 %v225, 16
      %v580 = vrot.slane %v578, 4
      %v581 = vshll.u32 %v225, 16
      %v583 = vrot.slane %v581, 5
      %v584 = vor.u32 %v580, %v583
      %v585 = vrot.slane %v584, 4
      %v587 = vshll.u32 %v226, 16
      %v589 = vrot.slane %v587, 5
      %v590 = vsel %vm240, %v585, %v589
      %v591 = vshrl.u32 %v226, 16
      %v593 = vrot.slane %v591, 4
      %v594 = vor.u32 %v593, %v589
      %v595 = vrot.slane %v594, 4
      %v597 = vshll.u32 %v227, 16
      %v599 = vrot.slane %v597, 5
      %v600 = vsel %vm240, %v595, %v599
      %v602 = vshrl.u32 %v228, 16
      %v604 = vrot.slane %v602, 4
      %v605 = vshll.u32 %v228, 16
      %v607 = vrot.slane %v605, 5
      %v608 = vor.u32 %v604, %v607
      %v609 = vrot.slane %v608, 4
      %v611 = vshll.u32 %v229, 16
      %v613 = vrot.slane %v611, 5
      %v614 = vsel %vm240, %v609, %v613
      %v615 = vshrl.u32 %v229, 16
      %v617 = vrot.slane %v615, 4
      %v618 = vor.u32 %v617, %v613
      %v619 = vrot.slane %v618, 4
      %v621 = vshll.u32 %v230, 16
      %v623 = vrot.slane %v621, 5
      %v624 = vsel %vm240, %v619, %v623
      %s625 = scalar_lea.vmem %s1, 2
      %v626 = vld [vmem:[%s625] sm:$0x3]
      %v627 = vunpack.c.l.b16 %v254
      %v628 = vunpack.c.l.b16 %v264
      %v629 = vunpack.c.l.b16 %v278
      %v630 = vunpack.c.l.b16 %v288
      %v631 = vunpack.c.l.b16 %v302
      %v632 = vunpack.c.l.b16 %v312
      %v633 = vunpack.c.l.b16 %v326
      %v634 = vunpack.c.l.b16 %v336
      %v635 = vunpack.c.l.b16 %v350
      %v636 = vunpack.c.l.b16 %v360
      %v637 = vunpack.c.l.b16 %v374
      %v638 = vunpack.c.l.b16 %v384
      %v639 = vunpack.c.l.b16 %v398
      %v640 = vunpack.c.l.b16 %v408
      %v641 = vunpack.c.l.b16 %v422
      %v642 = vunpack.c.l.b16 %v432
      %v643 = vunpack.c.l.b16 %v446
      %v644 = vunpack.c.l.b16 %v456
      %v645 = vunpack.c.l.b16 %v470
      %v646 = vunpack.c.l.b16 %v480
      %v647 = vunpack.c.l.b16 %v494
      %v648 = vunpack.c.l.b16 %v504
      %v649 = vunpack.c.l.b16 %v518
      %v650 = vunpack.c.l.b16 %v528
      %v651 = vunpack.c.l.b16 %v542
      %v652 = vunpack.c.l.b16 %v552
      %v653 = vunpack.c.l.b16 %v566
      %v654 = vunpack.c.l.b16 %v576
      %v655 = vunpack.c.l.b16 %v590
      %v656 = vunpack.c.l.b16 %v600
      %v657 = vunpack.c.l.b16 %v614
      %v658 = vunpack.c.l.b16 %v624
      %v659 = vpack.c.b16 %v628, %v627
      %v660 = vpack.c.b16 %v630, %v629
      %v661 = vpack.c.b16 %v632, %v631
      %v662 = vpack.c.b16 %v634, %v633
      %v663 = vpack.c.b16 %v636, %v635
      %v664 = vpack.c.b16 %v638, %v637
      %v665 = vpack.c.b16 %v640, %v639
      %v666 = vpack.c.b16 %v642, %v641
      %v667 = vpack.c.b16 %v644, %v643
      %v668 = vpack.c.b16 %v646, %v645
      %v669 = vpack.c.b16 %v648, %v647
      %v670 = vpack.c.b16 %v650, %v649
      %v671 = vpack.c.b16 %v652, %v651
      %v672 = vpack.c.b16 %v654, %v653
      %v673 = vpack.c.b16 %v656, %v655
      %v674 = vpack.c.b16 %v658, %v657
      %vm675 = vcmask 31744
      %v677 = vsel %vm675, %v659, 0
      %v680 = vsel %vm675, %v660, 0
      %v683 = vsel %vm675, %v661, 0
      %v686 = vsel %vm675, %v662, 0
      %v689 = vsel %vm675, %v663, 0
      %v692 = vsel %vm675, %v664, 0
      %v695 = vsel %vm675, %v665, 0
      %v698 = vsel %vm675, %v666, 0
      %v701 = vsel %vm675, %v667, 0
      %v704 = vsel %vm675, %v668, 0
      %v707 = vsel %vm675, %v669, 0
      %v710 = vsel %vm675, %v670, 0
      %v713 = vsel %vm675, %v671, 0
      %v716 = vsel %vm675, %v672, 0
      %v719 = vsel %vm675, %v673, 0
      %v722 = vsel %vm675, %v674, 0
      %vm724 = vcmask 1041408
      %v726 = vsel %vm724, %v626, 0
      %728 = vmatpush.bf16.msra.mxu0 0
      %729 = vmatpush.bf16.msra.mxu0 0
      %730 = vmatpush.bf16.msra.mxu0 0
      %731 = vmatpush.bf16.msra.mxu0 0
      %732 = vmatpush.bf16.msra.mxu0 0
      %733 = vmatpush.bf16.msra.mxu0 0
      %734 = vmatpush.bf16.msra.mxu0 0
      %735 = vmatpush.bf16.msra.mxu0 %v726
      %736 = vmatmul.bf16.gmra.mxu0 %v677
      %v737 = vpop.f32.mrf.mxu0
      %v738 = vadd.f32 0.0, %v737
      %v739 = vpop.f32.mrf.mxu0
      %v740 = vadd.f32 0.0, %v739
      %741 = vmatmul.bf16.gmra.mxu0 %v680
      %v742 = vpop.f32.mrf.mxu0
      %v743 = vadd.f32 0.0, %v742
      %v744 = vpop.f32.mrf.mxu0
      %v745 = vadd.f32 0.0, %v744
      %746 = vmatmul.bf16.gmra.mxu0 %v683
      %v747 = vpop.f32.mrf.mxu0
      %v748 = vadd.f32 0.0, %v747
      %v749 = vpop.f32.mrf.mxu0
      %v750 = vadd.f32 0.0, %v749
      %751 = vmatmul.bf16.gmra.mxu0 %v686
      %v752 = vpop.f32.mrf.mxu0
      %v753 = vadd.f32 0.0, %v752
      %v754 = vpop.f32.mrf.mxu0
      %v755 = vadd.f32 0.0, %v754
      %756 = vmatmul.bf16.gmra.mxu0 %v689
      %v757 = vpop.f32.mrf.mxu0
      %v758 = vadd.f32 0.0, %v757
      %v759 = vpop.f32.mrf.mxu0
      %v760 = vadd.f32 0.0, %v759
      %761 = vmatmul.bf16.gmra.mxu0 %v692
      %v762 = vpop.f32.mrf.mxu0
      %v763 = vadd.f32 0.0, %v762
      %v764 = vpop.f32.mrf.mxu0
      %v765 = vadd.f32 0.0, %v764
      %766 = vmatmul.bf16.gmra.mxu0 %v695
      %v767 = vpop.f32.mrf.mxu0
      %v768 = vadd.f32 0.0, %v767
      %v769 = vpop.f32.mrf.mxu0
      %v770 = vadd.f32 0.0, %v769
      %771 = vmatmul.bf16.gmra.mxu0 %v698
      %v772 = vpop.f32.mrf.mxu0
      %v773 = vadd.f32 0.0, %v772
      %v774 = vpop.f32.mrf.mxu0
      %v775 = vadd.f32 0.0, %v774
      %776 = vmatmul.bf16.gmra.mxu0 %v701
      %v777 = vpop.f32.mrf.mxu0
      %v778 = vadd.f32 0.0, %v777
      %v779 = vpop.f32.mrf.mxu0
      %v780 = vadd.f32 0.0, %v779
      %781 = vmatmul.bf16.gmra.mxu0 %v704
      %v782 = vpop.f32.mrf.mxu0
      %v783 = vadd.f32 0.0, %v782
      %v784 = vpop.f32.mrf.mxu0
      %v785 = vadd.f32 0.0, %v784
      %786 = vmatmul.bf16.gmra.mxu0 %v707
      %v787 = vpop.f32.mrf.mxu0
      %v788 = vadd.f32 0.0, %v787
      %v789 = vpop.f32.mrf.mxu0
      %v790 = vadd.f32 0.0, %v789
      %791 = vmatmul.bf16.gmra.mxu0 %v710
      %v792 = vpop.f32.mrf.mxu0
      %v793 = vadd.f32 0.0, %v792
      %v794 = vpop.f32.mrf.mxu0
      %v795 = vadd.f32 0.0, %v794
      %796 = vmatmul.bf16.gmra.mxu0 %v713
      %v797 = vpop.f32.mrf.mxu0
      %v798 = vadd.f32 0.0, %v797
      %v799 = vpop.f32.mrf.mxu0
      %v800 = vadd.f32 0.0, %v799
      %801 = vmatmul.bf16.gmra.mxu0 %v716
      %v802 = vpop.f32.mrf.mxu0
      %v803 = vadd.f32 0.0, %v802
      %v804 = vpop.f32.mrf.mxu0
      %v805 = vadd.f32 0.0, %v804
      %806 = vmatmul.bf16.gmra.mxu0 %v719
      %v807 = vpop.f32.mrf.mxu0
      %v808 = vadd.f32 0.0, %v807
      %v809 = vpop.f32.mrf.mxu0
      %v810 = vadd.f32 0.0, %v809
      %811 = vmatmul.bf16.gmra.mxu0 %v722
      %v812 = vpop.f32.mrf.mxu0
      %v813 = vadd.f32 0.0, %v812
      %v814 = vpop.f32.mrf.mxu0
      %v815 = vadd.f32 0.0, %v814
      %816 = vdwg.mxu0
      %v849 = vunpack.c.l.b16 %v183
      %v850 = vunpack.c.l.b16 %v184
      %v851 = vunpack.c.l.b16 %v186
      %v852 = vunpack.c.l.b16 %v187
      %v853 = vunpack.c.l.b16 %v189
      %v854 = vunpack.c.l.b16 %v190
      %v855 = vunpack.c.l.b16 %v192
      %v856 = vunpack.c.l.b16 %v193
      %v857 = vunpack.c.l.b16 %v195
      %v858 = vunpack.c.l.b16 %v196
      %v859 = vunpack.c.l.b16 %v198
      %v860 = vunpack.c.l.b16 %v199
      %v861 = vunpack.c.l.b16 %v201
      %v862 = vunpack.c.l.b16 %v202
      %v863 = vunpack.c.l.b16 %v204
      %v864 = vunpack.c.l.b16 %v205
      %v865 = vunpack.c.l.b16 %v207
      %v866 = vunpack.c.l.b16 %v208
      %v867 = vunpack.c.l.b16 %v210
      %v868 = vunpack.c.l.b16 %v211
      %v869 = vunpack.c.l.b16 %v213
      %v870 = vunpack.c.l.b16 %v214
      %v871 = vunpack.c.l.b16 %v216
      %v872 = vunpack.c.l.b16 %v217
      %v873 = vunpack.c.l.b16 %v219
      %v874 = vunpack.c.l.b16 %v220
      %v875 = vunpack.c.l.b16 %v222
      %v876 = vunpack.c.l.b16 %v223
      %v877 = vunpack.c.l.b16 %v225
      %v878 = vunpack.c.l.b16 %v226
      %v879 = vunpack.c.l.b16 %v228
      %v880 = vunpack.c.l.b16 %v229
      %v881 = vpack.c.b16 %v850, %v849
      %v882 = vpack.c.b16 %v852, %v851
      %v883 = vpack.c.b16 %v854, %v853
      %v884 = vpack.c.b16 %v856, %v855
      %v885 = vpack.c.b16 %v858, %v857
      %v886 = vpack.c.b16 %v860, %v859
      %v887 = vpack.c.b16 %v862, %v861
      %v888 = vpack.c.b16 %v864, %v863
      %v889 = vpack.c.b16 %v866, %v865
      %v890 = vpack.c.b16 %v868, %v867
      %v891 = vpack.c.b16 %v870, %v869
      %v892 = vpack.c.b16 %v872, %v871
      %v893 = vpack.c.b16 %v874, %v873
      %v894 = vpack.c.b16 %v876, %v875
      %v895 = vpack.c.b16 %v878, %v877
      %v896 = vpack.c.b16 %v880, %v879
      %v898 = vsel %vm675, %v881, 0
      %v901 = vsel %vm675, %v882, 0
      %v904 = vsel %vm675, %v883, 0
      %v907 = vsel %vm675, %v884, 0
      %v910 = vsel %vm675, %v885, 0
      %v913 = vsel %vm675, %v886, 0
      %v916 = vsel %vm675, %v887, 0
      %v919 = vsel %vm675, %v888, 0
      %v922 = vsel %vm675, %v889, 0
      %v925 = vsel %vm675, %v890, 0
      %v928 = vsel %vm675, %v891, 0
      %v931 = vsel %vm675, %v892, 0
      %v934 = vsel %vm675, %v893, 0
      %v937 = vsel %vm675, %v894, 0
      %v940 = vsel %vm675, %v895, 0
      %v943 = vsel %vm675, %v896, 0
      %v946 = vsel %vm724, %v237, 0
      %948 = vmatpush.bf16.msra.mxu0 0
      %949 = vmatpush.bf16.msra.mxu0 0
      %950 = vmatpush.bf16.msra.mxu0 0
      %951 = vmatpush.bf16.msra.mxu0 0
      %952 = vmatpush.bf16.msra.mxu0 0
      %953 = vmatpush.bf16.msra.mxu0 0
      %954 = vmatpush.bf16.msra.mxu0 0
      %955 = vmatpush.bf16.msra.mxu0 %v946
      %956 = vmatmul.bf16.gmra.mxu0 %v898
      %v957 = vpop.f32.mrf.mxu0
      %v958 = vadd.f32 %v738, %v957
      %v959 = vpop.f32.mrf.mxu0
      %v960 = vadd.f32 %v740, %v959
      %961 = vmatmul.bf16.gmra.mxu0 %v901
      %v962 = vpop.f32.mrf.mxu0
      %v963 = vadd.f32 %v743, %v962
      %v964 = vpop.f32.mrf.mxu0
      %v965 = vadd.f32 %v745, %v964
      %966 = vmatmul.bf16.gmra.mxu0 %v904
      %v967 = vpop.f32.mrf.mxu0
      %v968 = vadd.f32 %v748, %v967
      %v969 = vpop.f32.mrf.mxu0
      %v970 = vadd.f32 %v750, %v969
      %971 = vmatmul.bf16.gmra.mxu0 %v907
      %v972 = vpop.f32.mrf.mxu0
      %v973 = vadd.f32 %v753, %v972
      %v974 = vpop.f32.mrf.mxu0
      %v975 = vadd.f32 %v755, %v974
      %976 = vmatmul.bf16.gmra.mxu0 %v910
      %v977 = vpop.f32.mrf.mxu0
      %v978 = vadd.f32 %v758, %v977
      %v979 = vpop.f32.mrf.mxu0
      %v980 = vadd.f32 %v760, %v979
      %981 = vmatmul.bf16.gmra.mxu0 %v913
      %v982 = vpop.f32.mrf.mxu0
      %v983 = vadd.f32 %v763, %v982
      %v984 = vpop.f32.mrf.mxu0
      %v985 = vadd.f32 %v765, %v984
      %986 = vmatmul.bf16.gmra.mxu0 %v916
      %v987 = vpop.f32.mrf.mxu0
      %v988 = vadd.f32 %v768, %v987
      %v989 = vpop.f32.mrf.mxu0
      %v990 = vadd.f32 %v770, %v989
      %991 = vmatmul.bf16.gmra.mxu0 %v919
      %v992 = vpop.f32.mrf.mxu0
      %v993 = vadd.f32 %v773, %v992
      %v994 = vpop.f32.mrf.mxu0
      %v995 = vadd.f32 %v775, %v994
      %996 = vmatmul.bf16.gmra.mxu0 %v922
      %v997 = vpop.f32.mrf.mxu0
      %v998 = vadd.f32 %v778, %v997
      %v999 = vpop.f32.mrf.mxu0
      %v1000 = vadd.f32 %v780, %v999
      %1001 = vmatmul.bf16.gmra.mxu0 %v925
      %v1002 = vpop.f32.mrf.mxu0
      %v1003 = vadd.f32 %v783, %v1002
      %v1004 = vpop.f32.mrf.mxu0
      %v1005 = vadd.f32 %v785, %v1004
      %1006 = vmatmul.bf16.gmra.mxu0 %v928
      %v1007 = vpop.f32.mrf.mxu0
      %v1008 = vadd.f32 %v788, %v1007
      %v1009 = vpop.f32.mrf.mxu0
      %v1010 = vadd.f32 %v790, %v1009
      %1011 = vmatmul.bf16.gmra.mxu0 %v931
      %v1012 = vpop.f32.mrf.mxu0
      %v1013 = vadd.f32 %v793, %v1012
      %v1014 = vpop.f32.mrf.mxu0
      %v1015 = vadd.f32 %v795, %v1014
      %1016 = vmatmul.bf16.gmra.mxu0 %v934
      %v1017 = vpop.f32.mrf.mxu0
      %v1018 = vadd.f32 %v798, %v1017
      %v1019 = vpop.f32.mrf.mxu0
      %v1020 = vadd.f32 %v800, %v1019
      %1021 = vmatmul.bf16.gmra.mxu0 %v937
      %v1022 = vpop.f32.mrf.mxu0
      %v1023 = vadd.f32 %v803, %v1022
      %v1024 = vpop.f32.mrf.mxu0
      %v1025 = vadd.f32 %v805, %v1024
      %1026 = vmatmul.bf16.gmra.mxu0 %v940
      %v1027 = vpop.f32.mrf.mxu0
      %v1028 = vadd.f32 %v808, %v1027
      %v1029 = vpop.f32.mrf.mxu0
      %v1030 = vadd.f32 %v810, %v1029
      %1031 = vmatmul.bf16.gmra.mxu0 %v943
      %v1032 = vpop.f32.mrf.mxu0
      %v1033 = vadd.f32 %v813, %v1032
      %v1034 = vpop.f32.mrf.mxu0
      %v1035 = vadd.f32 %v815, %v1034
      %1036 = vdwg.mxu0
      %vm1053 = vcmask 1042432
      %vm1054 = vcmask 1046532
      %vm1055 = vmor %vm1053, %vm1054
      %v1056 = vrot.slane %v183, 5
      %v1057 = vrot.slane %v1056, 4
      %v1058 = vrot.slane %v184, 5
      %v1059 = vsel %vm1055, %v1057, %v1058
      %v1060 = vrot.slane %v1058, 4
      %v1061 = vrot.slane %v185, 5
      %v1062 = vsel %vm1055, %v1060, %v1061
      %v1063 = vrot.slane %v186, 5
      %v1064 = vrot.slane %v1063, 4
      %v1065 = vrot.slane %v187, 5
      %v1066 = vsel %vm1055, %v1064, %v1065
      %v1067 = vrot.slane %v1065, 4
      %v1068 = vrot.slane %v188, 5
      %v1069 = vsel %vm1055, %v1067, %v1068
      %v1070 = vrot.slane %v189, 5
      %v1071 = vrot.slane %v1070, 4
      %v1072 = vrot.slane %v190, 5
      %v1073 = vsel %vm1055, %v1071, %v1072
      %v1074 = vrot.slane %v1072, 4
      %v1075 = vrot.slane %v191, 5
      %v1076 = vsel %vm1055, %v1074, %v1075
      %v1077 = vrot.slane %v192, 5
      %v1078 = vrot.slane %v1077, 4
      %v1079 = vrot.slane %v193, 5
      %v1080 = vsel %vm1055, %v1078, %v1079
      %v1081 = vrot.slane %v1079, 4
      %v1082 = vrot.slane %v194, 5
      %v1083 = vsel %vm1055, %v1081, %v1082
      %v1084 = vrot.slane %v195, 5
      %v1085 = vrot.slane %v1084, 4
      %v1086 = vrot.slane %v196, 5
      %v1087 = vsel %vm1055, %v1085, %v1086
      %v1088 = vrot.slane %v1086, 4
      %v1089 = vrot.slane %v197, 5
      %v1090 = vsel %vm1055, %v1088, %v1089
      %v1091 = vrot.slane %v198, 5
      %v1092 = vrot.slane %v1091, 4
      %v1093 = vrot.slane %v199, 5
      %v1094 = vsel %vm1055, %v1092, %v1093
      %v1095 = vrot.slane %v1093, 4
      %v1096 = vrot.slane %v200, 5
      %v1097 = vsel %vm1055, %v1095, %v1096
      %v1098 = vrot.slane %v201, 5
      %v1099 = vrot.slane %v1098, 4
      %v1100 = vrot.slane %v202, 5
      %v1101 = vsel %vm1055, %v1099, %v1100
      %v1102 = vrot.slane %v1100, 4
      %v1103 = vrot.slane %v203, 5
      %v1104 = vsel %vm1055, %v1102, %v1103
      %v1105 = vrot.slane %v204, 5
      %v1106 = vrot.slane %v1105, 4
      %v1107 = vrot.slane %v205, 5
      %v1108 = vsel %vm1055, %v1106, %v1107
      %v1109 = vrot.slane %v1107, 4
      %v1110 = vrot.slane %v206, 5
      %v1111 = vsel %vm1055, %v1109, %v1110
      %v1112 = vrot.slane %v207, 5
      %v1113 = vrot.slane %v1112, 4
      %v1114 = vrot.slane %v208, 5
      %v1115 = vsel %vm1055, %v1113, %v1114
      %v1116 = vrot.slane %v1114, 4
      %v1117 = vrot.slane %v209, 5
      %v1118 = vsel %vm1055, %v1116, %v1117
      %v1119 = vrot.slane %v210, 5
      %v1120 = vrot.slane %v1119, 4
      %v1121 = vrot.slane %v211, 5
      %v1122 = vsel %vm1055, %v1120, %v1121
      %v1123 = vrot.slane %v1121, 4
      %v1124 = vrot.slane %v212, 5
      %v1125 = vsel %vm1055, %v1123, %v1124
      %v1126 = vrot.slane %v213, 5
      %v1127 = vrot.slane %v1126, 4
      %v1128 = vrot.slane %v214, 5
      %v1129 = vsel %vm1055, %v1127, %v1128
      %v1130 = vrot.slane %v1128, 4
      %v1131 = vrot.slane %v215, 5
      %v1132 = vsel %vm1055, %v1130, %v1131
      %v1133 = vrot.slane %v216, 5
      %v1134 = vrot.slane %v1133, 4
      %v1135 = vrot.slane %v217, 5
      %v1136 = vsel %vm1055, %v1134, %v1135
      %v1137 = vrot.slane %v1135, 4
      %v1138 = vrot.slane %v218, 5
      %v1139 = vsel %vm1055, %v1137, %v1138
      %v1140 = vrot.slane %v219, 5
      %v1141 = vrot.slane %v1140, 4
      %v1142 = vrot.slane %v220, 5
      %v1143 = vsel %vm1055, %v1141, %v1142
      %v1144 = vrot.slane %v1142, 4
      %v1145 = vrot.slane %v221, 5
      %v1146 = vsel %vm1055, %v1144, %v1145
      %v1147 = vrot.slane %v222, 5
      %v1148 = vrot.slane %v1147, 4
      %v1149 = vrot.slane %v223, 5
      %v1150 = vsel %vm1055, %v1148, %v1149
      %v1151 = vrot.slane %v1149, 4
      %v1152 = vrot.slane %v224, 5
      %v1153 = vsel %vm1055, %v1151, %v1152
      %v1154 = vrot.slane %v225, 5
      %v1155 = vrot.slane %v1154, 4
      %v1156 = vrot.slane %v226, 5
      %v1157 = vsel %vm1055, %v1155, %v1156
      %v1158 = vrot.slane %v1156, 4
      %v1159 = vrot.slane %v227, 5
      %v1160 = vsel %vm1055, %v1158, %v1159
      %v1161 = vrot.slane %v228, 5
      %v1162 = vrot.slane %v1161, 4
      %v1163 = vrot.slane %v229, 5
      %v1164 = vsel %vm1055, %v1162, %v1163
      %v1165 = vrot.slane %v1163, 4
      %v1166 = vrot.slane %v230, 5
      %v1167 = vsel %vm1055, %v1165, %v1166
      %s1168 = scalar_lea.vmem %s1, 4
      %v1169 = vld [vmem:[%s1168] sm:$0x3]
      %v1170 = vunpack.c.l.b16 %v1059
      %v1171 = vunpack.c.l.b16 %v1062
      %v1172 = vunpack.c.l.b16 %v1066
      %v1173 = vunpack.c.l.b16 %v1069
      %v1174 = vunpack.c.l.b16 %v1073
      %v1175 = vunpack.c.l.b16 %v1076
      %v1176 = vunpack.c.l.b16 %v1080
      %v1177 = vunpack.c.l.b16 %v1083
      %v1178 = vunpack.c.l.b16 %v1087
      %v1179 = vunpack.c.l.b16 %v1090
      %v1180 = vunpack.c.l.b16 %v1094
      %v1181 = vunpack.c.l.b16 %v1097
      %v1182 = vunpack.c.l.b16 %v1101
      %v1183 = vunpack.c.l.b16 %v1104
      %v1184 = vunpack.c.l.b16 %v1108
      %v1185 = vunpack.c.l.b16 %v1111
      %v1186 = vunpack.c.l.b16 %v1115
      %v1187 = vunpack.c.l.b16 %v1118
      %v1188 = vunpack.c.l.b16 %v1122
      %v1189 = vunpack.c.l.b16 %v1125
      %v1190 = vunpack.c.l.b16 %v1129
      %v1191 = vunpack.c.l.b16 %v1132
      %v1192 = vunpack.c.l.b16 %v1136
      %v1193 = vunpack.c.l.b16 %v1139
      %v1194 = vunpack.c.l.b16 %v1143
      %v1195 = vunpack.c.l.b16 %v1146
      %v1196 = vunpack.c.l.b16 %v1150
      %v1197 = vunpack.c.l.b16 %v1153
      %v1198 = vunpack.c.l.b16 %v1157
      %v1199 = vunpack.c.l.b16 %v1160
      %v1200 = vunpack.c.l.b16 %v1164
      %v1201 = vunpack.c.l.b16 %v1167
      %v1202 = vpack.c.b16 %v1171, %v1170
      %v1203 = vpack.c.b16 %v1173, %v1172
      %v1204 = vpack.c.b16 %v1175, %v1174
      %v1205 = vpack.c.b16 %v1177, %v1176
      %v1206 = vpack.c.b16 %v1179, %v1178
      %v1207 = vpack.c.b16 %v1181, %v1180
      %v1208 = vpack.c.b16 %v1183, %v1182
      %v1209 = vpack.c.b16 %v1185, %v1184
      %v1210 = vpack.c.b16 %v1187, %v1186
      %v1211 = vpack.c.b16 %v1189, %v1188
      %v1212 = vpack.c.b16 %v1191, %v1190
      %v1213 = vpack.c.b16 %v1193, %v1192
      %v1214 = vpack.c.b16 %v1195, %v1194
      %v1215 = vpack.c.b16 %v1197, %v1196
      %v1216 = vpack.c.b16 %v1199, %v1198
      %v1217 = vpack.c.b16 %v1201, %v1200
      %v1219 = vsel %vm675, %v1202, 0
      %v1222 = vsel %vm675, %v1203, 0
      %v1225 = vsel %vm675, %v1204, 0
      %v1228 = vsel %vm675, %v1205, 0
      %v1231 = vsel %vm675, %v1206, 0
      %v1234 = vsel %vm675, %v1207, 0
      %v1237 = vsel %vm675, %v1208, 0
      %v1240 = vsel %vm675, %v1209, 0
      %v1243 = vsel %vm675, %v1210, 0
      %v1246 = vsel %vm675, %v1211, 0
      %v1249 = vsel %vm675, %v1212, 0
      %v1252 = vsel %vm675, %v1213, 0
      %v1255 = vsel %vm675, %v1214, 0
      %v1258 = vsel %vm675, %v1215, 0
      %v1261 = vsel %vm675, %v1216, 0
      %v1264 = vsel %vm675, %v1217, 0
      %v1267 = vsel %vm724, %v1169, 0
      %1269 = vmatpush.bf16.msra.mxu0 0
      %1270 = vmatpush.bf16.msra.mxu0 0
      %1271 = vmatpush.bf16.msra.mxu0 0
      %1272 = vmatpush.bf16.msra.mxu0 0
      %1273 = vmatpush.bf16.msra.mxu0 0
      %1274 = vmatpush.bf16.msra.mxu0 0
      %1275 = vmatpush.bf16.msra.mxu0 0
      %1276 = vmatpush.bf16.msra.mxu0 %v1267
      %1277 = vmatmul.bf16.gmra.mxu0 %v1219
      %v1278 = vpop.f32.mrf.mxu0
      %v1279 = vadd.f32 0.0, %v1278
      %v1280 = vpop.f32.mrf.mxu0
      %v1281 = vadd.f32 0.0, %v1280
      %1282 = vmatmul.bf16.gmra.mxu0 %v1222
      %v1283 = vpop.f32.mrf.mxu0
      %v1284 = vadd.f32 0.0, %v1283
      %v1285 = vpop.f32.mrf.mxu0
      %v1286 = vadd.f32 0.0, %v1285
      %1287 = vmatmul.bf16.gmra.mxu0 %v1225
      %v1288 = vpop.f32.mrf.mxu0
      %v1289 = vadd.f32 0.0, %v1288
      %v1290 = vpop.f32.mrf.mxu0
      %v1291 = vadd.f32 0.0, %v1290
      %1292 = vmatmul.bf16.gmra.mxu0 %v1228
      %v1293 = vpop.f32.mrf.mxu0
      %v1294 = vadd.f32 0.0, %v1293
      %v1295 = vpop.f32.mrf.mxu0
      %v1296 = vadd.f32 0.0, %v1295
      %1297 = vmatmul.bf16.gmra.mxu0 %v1231
      %v1298 = vpop.f32.mrf.mxu0
      %v1299 = vadd.f32 0.0, %v1298
      %v1300 = vpop.f32.mrf.mxu0
      %v1301 = vadd.f32 0.0, %v1300
      %1302 = vmatmul.bf16.gmra.mxu0 %v1234
      %v1303 = vpop.f32.mrf.mxu0
      %v1304 = vadd.f32 0.0, %v1303
      %v1305 = vpop.f32.mrf.mxu0
      %v1306 = vadd.f32 0.0, %v1305
      %1307 = vmatmul.bf16.gmra.mxu0 %v1237
      %v1308 = vpop.f32.mrf.mxu0
      %v1309 = vadd.f32 0.0, %v1308
      %v1310 = vpop.f32.mrf.mxu0
      %v1311 = vadd.f32 0.0, %v1310
      %1312 = vmatmul.bf16.gmra.mxu0 %v1240
      %v1313 = vpop.f32.mrf.mxu0
      %v1314 = vadd.f32 0.0, %v1313
      %v1315 = vpop.f32.mrf.mxu0
      %v1316 = vadd.f32 0.0, %v1315
      %1317 = vmatmul.bf16.gmra.mxu0 %v1243
      %v1318 = vpop.f32.mrf.mxu0
      %v1319 = vadd.f32 0.0, %v1318
      %v1320 = vpop.f32.mrf.mxu0
      %v1321 = vadd.f32 0.0, %v1320
      %1322 = vmatmul.bf16.gmra.mxu0 %v1246
      %v1323 = vpop.f32.mrf.mxu0
      %v1324 = vadd.f32 0.0, %v1323
      %v1325 = vpop.f32.mrf.mxu0
      %v1326 = vadd.f32 0.0, %v1325
      %1327 = vmatmul.bf16.gmra.mxu0 %v1249
      %v1328 = vpop.f32.mrf.mxu0
      %v1329 = vadd.f32 0.0, %v1328
      %v1330 = vpop.f32.mrf.mxu0
      %v1331 = vadd.f32 0.0, %v1330
      %1332 = vmatmul.bf16.gmra.mxu0 %v1252
      %v1333 = vpop.f32.mrf.mxu0
      %v1334 = vadd.f32 0.0, %v1333
      %v1335 = vpop.f32.mrf.mxu0
      %v1336 = vadd.f32 0.0, %v1335
      %1337 = vmatmul.bf16.gmra.mxu0 %v1255
      %v1338 = vpop.f32.mrf.mxu0
      %v1339 = vadd.f32 0.0, %v1338
      %v1340 = vpop.f32.mrf.mxu0
      %v1341 = vadd.f32 0.0, %v1340
      %1342 = vmatmul.bf16.gmra.mxu0 %v1258
      %v1343 = vpop.f32.mrf.mxu0
      %v1344 = vadd.f32 0.0, %v1343
      %v1345 = vpop.f32.mrf.mxu0
      %v1346 = vadd.f32 0.0, %v1345
      %1347 = vmatmul.bf16.gmra.mxu0 %v1261
      %v1348 = vpop.f32.mrf.mxu0
      %v1349 = vadd.f32 0.0, %v1348
      %v1350 = vpop.f32.mrf.mxu0
      %v1351 = vadd.f32 0.0, %v1350
      %1352 = vmatmul.bf16.gmra.mxu0 %v1264
      %v1353 = vpop.f32.mrf.mxu0
      %v1354 = vadd.f32 0.0, %v1353
      %v1355 = vpop.f32.mrf.mxu0
      %v1356 = vadd.f32 0.0, %v1355
      %1357 = vdwg.mxu0
      %v1358 = vadd.f32 %v958, %v1279
      %v1359 = vadd.f32 %v960, %v1281
      %v1360 = vadd.f32 %v963, %v1284
      %v1361 = vadd.f32 %v965, %v1286
      %v1362 = vadd.f32 %v968, %v1289
      %v1363 = vadd.f32 %v970, %v1291
      %v1364 = vadd.f32 %v973, %v1294
      %v1365 = vadd.f32 %v975, %v1296
      %v1366 = vadd.f32 %v978, %v1299
      %v1367 = vadd.f32 %v980, %v1301
      %v1368 = vadd.f32 %v983, %v1304
      %v1369 = vadd.f32 %v985, %v1306
      %v1370 = vadd.f32 %v988, %v1309
      %v1371 = vadd.f32 %v990, %v1311
      %v1372 = vadd.f32 %v993, %v1314
      %v1373 = vadd.f32 %v995, %v1316
      %v1374 = vadd.f32 %v998, %v1319
      %v1375 = vadd.f32 %v1000, %v1321
      %v1376 = vadd.f32 %v1003, %v1324
      %v1377 = vadd.f32 %v1005, %v1326
      %v1378 = vadd.f32 %v1008, %v1329
      %v1379 = vadd.f32 %v1010, %v1331
      %v1380 = vadd.f32 %v1013, %v1334
      %v1381 = vadd.f32 %v1015, %v1336
      %v1382 = vadd.f32 %v1018, %v1339
      %v1383 = vadd.f32 %v1020, %v1341
      %v1384 = vadd.f32 %v1023, %v1344
      %v1385 = vadd.f32 %v1025, %v1346
      %v1386 = vadd.f32 %v1028, %v1349
      %v1387 = vadd.f32 %v1030, %v1351
      %v1388 = vadd.f32 %v1033, %v1354
      %v1389 = vadd.f32 %v1035, %v1356
      %s1390 = scalar_lea.vmem %s1, 6
      %v1391 = vld [vmem:[%s1390] sm:$0x3]
      %v1394 = vunpack.c.l.b16 %v231
      %v1395 = vunpack.c.l.b16 %v232
      %v1396 = vpack.c.b16 %v1395, %v1394
      %v1398 = vsel %vm675, %v1396, 0
      %v1401 = vsel %vm724, %v1391, 0
      %1403 = vmatpush.bf16.msra.mxu0 0
      %1404 = vmatpush.bf16.msra.mxu0 0
      %1405 = vmatpush.bf16.msra.mxu0 0
      %1406 = vmatpush.bf16.msra.mxu0 0
      %1407 = vmatpush.bf16.msra.mxu0 0
      %1408 = vmatpush.bf16.msra.mxu0 0
      %1409 = vmatpush.bf16.msra.mxu0 0
      %1410 = vmatpush.bf16.msra.mxu0 %v1401
      %1411 = vmatmul.bf16.gmra.mxu0 %v901
      %v1412 = vpop.f32.mrf.mxu0
      %v1413 = vadd.f32 0.0, %v1412
      %v1414 = vpop.f32.mrf.mxu0
      %v1415 = vadd.f32 0.0, %v1414
      %1416 = vmatmul.bf16.gmra.mxu0 %v904
      %v1417 = vpop.f32.mrf.mxu0
      %v1418 = vadd.f32 0.0, %v1417
      %v1419 = vpop.f32.mrf.mxu0
      %v1420 = vadd.f32 0.0, %v1419
      %1421 = vmatmul.bf16.gmra.mxu0 %v907
      %v1422 = vpop.f32.mrf.mxu0
      %v1423 = vadd.f32 0.0, %v1422
      %v1424 = vpop.f32.mrf.mxu0
      %v1425 = vadd.f32 0.0, %v1424
      %1426 = vmatmul.bf16.gmra.mxu0 %v910
      %v1427 = vpop.f32.mrf.mxu0
      %v1428 = vadd.f32 0.0, %v1427
      %v1429 = vpop.f32.mrf.mxu0
      %v1430 = vadd.f32 0.0, %v1429
      %1431 = vmatmul.bf16.gmra.mxu0 %v913
      %v1432 = vpop.f32.mrf.mxu0
      %v1433 = vadd.f32 0.0, %v1432
      %v1434 = vpop.f32.mrf.mxu0
      %v1435 = vadd.f32 0.0, %v1434
      %1436 = vmatmul.bf16.gmra.mxu0 %v916
      %v1437 = vpop.f32.mrf.mxu0
      %v1438 = vadd.f32 0.0, %v1437
      %v1439 = vpop.f32.mrf.mxu0
      %v1440 = vadd.f32 0.0, %v1439
      %1441 = vmatmul.bf16.gmra.mxu0 %v919
      %v1442 = vpop.f32.mrf.mxu0
      %v1443 = vadd.f32 0.0, %v1442
      %v1444 = vpop.f32.mrf.mxu0
      %v1445 = vadd.f32 0.0, %v1444
      %1446 = vmatmul.bf16.gmra.mxu0 %v922
      %v1447 = vpop.f32.mrf.mxu0
      %v1448 = vadd.f32 0.0, %v1447
      %v1449 = vpop.f32.mrf.mxu0
      %v1450 = vadd.f32 0.0, %v1449
      %1451 = vmatmul.bf16.gmra.mxu0 %v925
      %v1452 = vpop.f32.mrf.mxu0
      %v1453 = vadd.f32 0.0, %v1452
      %v1454 = vpop.f32.mrf.mxu0
      %v1455 = vadd.f32 0.0, %v1454
      %1456 = vmatmul.bf16.gmra.mxu0 %v928
      %v1457 = vpop.f32.mrf.mxu0
      %v1458 = vadd.f32 0.0, %v1457
      %v1459 = vpop.f32.mrf.mxu0
      %v1460 = vadd.f32 0.0, %v1459
      %1461 = vmatmul.bf16.gmra.mxu0 %v931
      %v1462 = vpop.f32.mrf.mxu0
      %v1463 = vadd.f32 0.0, %v1462
      %v1464 = vpop.f32.mrf.mxu0
      %v1465 = vadd.f32 0.0, %v1464
      %1466 = vmatmul.bf16.gmra.mxu0 %v934
      %v1467 = vpop.f32.mrf.mxu0
      %v1468 = vadd.f32 0.0, %v1467
      %v1469 = vpop.f32.mrf.mxu0
      %v1470 = vadd.f32 0.0, %v1469
      %1471 = vmatmul.bf16.gmra.mxu0 %v937
      %v1472 = vpop.f32.mrf.mxu0
      %v1473 = vadd.f32 0.0, %v1472
      %v1474 = vpop.f32.mrf.mxu0
      %v1475 = vadd.f32 0.0, %v1474
      %1476 = vmatmul.bf16.gmra.mxu0 %v940
      %v1477 = vpop.f32.mrf.mxu0
      %v1478 = vadd.f32 0.0, %v1477
      %v1479 = vpop.f32.mrf.mxu0
      %v1480 = vadd.f32 0.0, %v1479
      %1481 = vmatmul.bf16.gmra.mxu0 %v943
      %v1482 = vpop.f32.mrf.mxu0
      %v1483 = vadd.f32 0.0, %v1482
      %v1484 = vpop.f32.mrf.mxu0
      %v1485 = vadd.f32 0.0, %v1484
      %1486 = vmatmul.bf16.gmra.mxu0 %v1398
      %v1487 = vpop.f32.mrf.mxu0
      %v1488 = vadd.f32 0.0, %v1487
      %v1489 = vpop.f32.mrf.mxu0
      %v1490 = vadd.f32 0.0, %v1489
      %1491 = vdwg.mxu0
      %v1492 = vadd.f32 %v1358, %v1413
      %v1493 = vadd.f32 %v1359, %v1415
      %v1494 = vadd.f32 %v1360, %v1418
      %v1495 = vadd.f32 %v1361, %v1420
      %v1496 = vadd.f32 %v1362, %v1423
      %v1497 = vadd.f32 %v1363, %v1425
      %v1498 = vadd.f32 %v1364, %v1428
      %v1499 = vadd.f32 %v1365, %v1430
      %v1500 = vadd.f32 %v1366, %v1433
      %v1501 = vadd.f32 %v1367, %v1435
      %v1502 = vadd.f32 %v1368, %v1438
      %v1503 = vadd.f32 %v1369, %v1440
      %v1504 = vadd.f32 %v1370, %v1443
      %v1505 = vadd.f32 %v1371, %v1445
      %v1506 = vadd.f32 %v1372, %v1448
      %v1507 = vadd.f32 %v1373, %v1450
      %v1508 = vadd.f32 %v1374, %v1453
      %v1509 = vadd.f32 %v1375, %v1455
      %v1510 = vadd.f32 %v1376, %v1458
      %v1511 = vadd.f32 %v1377, %v1460
      %v1512 = vadd.f32 %v1378, %v1463
      %v1513 = vadd.f32 %v1379, %v1465
      %v1514 = vadd.f32 %v1380, %v1468
      %v1515 = vadd.f32 %v1381, %v1470
      %v1516 = vadd.f32 %v1382, %v1473
      %v1517 = vadd.f32 %v1383, %v1475
      %v1518 = vadd.f32 %v1384, %v1478
      %v1519 = vadd.f32 %v1385, %v1480
      %v1520 = vadd.f32 %v1386, %v1483
      %v1521 = vadd.f32 %v1387, %v1485
      %v1522 = vadd.f32 %v1388, %v1488
      %v1523 = vadd.f32 %v1389, %v1490
      %v1525 = vshrl.u32 %v231, 16
      %v1527 = vrot.slane %v1525, 4
      %v1528 = vshll.u32 %v231, 16
      %v1530 = vrot.slane %v1528, 5
      %v1531 = vor.u32 %v1527, %v1530
      %v1532 = vrot.slane %v1531, 4
      %v1534 = vshll.u32 %v232, 16
      %v1536 = vrot.slane %v1534, 5
      %v1537 = vsel %vm240, %v1532, %v1536
      %v1538 = vshrl.u32 %v232, 16
      %v1540 = vrot.slane %v1538, 4
      %v1541 = vor.u32 %v1540, %v1536
      %v1542 = vrot.slane %v1541, 4
      %v1544 = vshll.u32 %v233, 16
      %v1546 = vrot.slane %v1544, 5
      %v1547 = vsel %vm240, %v1542, %v1546
      %s1548 = scalar_lea.vmem %s1, 8
      %v1549 = vld [vmem:[%s1548] sm:$0x3]
      %v1550 = vunpack.c.l.b16 %v1537
      %v1551 = vunpack.c.l.b16 %v1547
      %v1552 = vpack.c.b16 %v1551, %v1550
      %v1554 = vsel %vm675, %v1552, 0
      %v1557 = vsel %vm724, %v1549, 0
      %1559 = vmatpush.bf16.msra.mxu0 0
      %1560 = vmatpush.bf16.msra.mxu0 0
      %1561 = vmatpush.bf16.msra.mxu0 0
      %1562 = vmatpush.bf16.msra.mxu0 0
      %1563 = vmatpush.bf16.msra.mxu0 0
      %1564 = vmatpush.bf16.msra.mxu0 0
      %1565 = vmatpush.bf16.msra.mxu0 0
      %1566 = vmatpush.bf16.msra.mxu0 %v1557
      %1567 = vmatmul.bf16.gmra.mxu0 %v680
      %v1568 = vpop.f32.mrf.mxu0
      %v1569 = vadd.f32 0.0, %v1568
      %v1570 = vpop.f32.mrf.mxu0
      %v1571 = vadd.f32 0.0, %v1570
      %1572 = vmatmul.bf16.gmra.mxu0 %v683
      %v1573 = vpop.f32.mrf.mxu0
      %v1574 = vadd.f32 0.0, %v1573
      %v1575 = vpop.f32.mrf.mxu0
      %v1576 = vadd.f32 0.0, %v1575
      %1577 = vmatmul.bf16.gmra.mxu0 %v686
      %v1578 = vpop.f32.mrf.mxu0
      %v1579 = vadd.f32 0.0, %v1578
      %v1580 = vpop.f32.mrf.mxu0
      %v1581 = vadd.f32 0.0, %v1580
      %1582 = vmatmul.bf16.gmra.mxu0 %v689
      %v1583 = vpop.f32.mrf.mxu0
      %v1584 = vadd.f32 0.0, %v1583
      %v1585 = vpop.f32.mrf.mxu0
      %v1586 = vadd.f32 0.0, %v1585
      %1587 = vmatmul.bf16.gmra.mxu0 %v692
      %v1588 = vpop.f32.mrf.mxu0
      %v1589 = vadd.f32 0.0, %v1588
      %v1590 = vpop.f32.mrf.mxu0
      %v1591 = vadd.f32 0.0, %v1590
      %1592 = vmatmul.bf16.gmra.mxu0 %v695
      %v1593 = vpop.f32.mrf.mxu0
      %v1594 = vadd.f32 0.0, %v1593
      %v1595 = vpop.f32.mrf.mxu0
      %v1596 = vadd.f32 0.0, %v1595
      %1597 = vmatmul.bf16.gmra.mxu0 %v698
      %v1598 = vpop.f32.mrf.mxu0
      %v1599 = vadd.f32 0.0, %v1598
      %v1600 = vpop.f32.mrf.mxu0
      %v1601 = vadd.f32 0.0, %v1600
      %1602 = vmatmul.bf16.gmra.mxu0 %v701
      %v1603 = vpop.f32.mrf.mxu0
      %v1604 = vadd.f32 0.0, %v1603
      %v1605 = vpop.f32.mrf.mxu0
      %v1606 = vadd.f32 0.0, %v1605
      %1607 = vmatmul.bf16.gmra.mxu0 %v704
      %v1608 = vpop.f32.mrf.mxu0
      %v1609 = vadd.f32 0.0, %v1608
      %v1610 = vpop.f32.mrf.mxu0
      %v1611 = vadd.f32 0.0, %v1610
      %1612 = vmatmul.bf16.gmra.mxu0 %v707
      %v1613 = vpop.f32.mrf.mxu0
      %v1614 = vadd.f32 0.0, %v1613
      %v1615 = vpop.f32.mrf.mxu0
      %v1616 = vadd.f32 0.0, %v1615
      %1617 = vmatmul.bf16.gmra.mxu0 %v710
      %v1618 = vpop.f32.mrf.mxu0
      %v1619 = vadd.f32 0.0, %v1618
      %v1620 = vpop.f32.mrf.mxu0
      %v1621 = vadd.f32 0.0, %v1620
      %1622 = vmatmul.bf16.gmra.mxu0 %v713
      %v1623 = vpop.f32.mrf.mxu0
      %v1624 = vadd.f32 0.0, %v1623
      %v1625 = vpop.f32.mrf.mxu0
      %v1626 = vadd.f32 0.0, %v1625
      %1627 = vmatmul.bf16.gmra.mxu0 %v716
      %v1628 = vpop.f32.mrf.mxu0
      %v1629 = vadd.f32 0.0, %v1628
      %v1630 = vpop.f32.mrf.mxu0
      %v1631 = vadd.f32 0.0, %v1630
      %1632 = vmatmul.bf16.gmra.mxu0 %v719
      %v1633 = vpop.f32.mrf.mxu0
      %v1634 = vadd.f32 0.0, %v1633
      %v1635 = vpop.f32.mrf.mxu0
      %v1636 = vadd.f32 0.0, %v1635
      %1637 = vmatmul.bf16.gmra.mxu0 %v722
      %v1638 = vpop.f32.mrf.mxu0
      %v1639 = vadd.f32 0.0, %v1638
      %v1640 = vpop.f32.mrf.mxu0
      %v1641 = vadd.f32 0.0, %v1640
      %1642 = vmatmul.bf16.gmra.mxu0 %v1554
      %v1643 = vpop.f32.mrf.mxu0
      %v1644 = vadd.f32 0.0, %v1643
      %v1645 = vpop.f32.mrf.mxu0
      %v1646 = vadd.f32 0.0, %v1645
      %1647 = vdwg.mxu0
      %v1648 = vadd.f32 %v1492, %v1569
      %v1649 = vadd.f32 %v1493, %v1571
      %v1650 = vadd.f32 %v1494, %v1574
      %v1651 = vadd.f32 %v1495, %v1576
      %v1652 = vadd.f32 %v1496, %v1579
      %v1653 = vadd.f32 %v1497, %v1581
      %v1654 = vadd.f32 %v1498, %v1584
      %v1655 = vadd.f32 %v1499, %v1586
      %v1656 = vadd.f32 %v1500, %v1589
      %v1657 = vadd.f32 %v1501, %v1591
      %v1658 = vadd.f32 %v1502, %v1594
      %v1659 = vadd.f32 %v1503, %v1596
      %v1660 = vadd.f32 %v1504, %v1599
      %v1661 = vadd.f32 %v1505, %v1601
      %v1662 = vadd.f32 %v1506, %v1604
      %v1663 = vadd.f32 %v1507, %v1606
      %v1664 = vadd.f32 %v1508, %v1609
      %v1665 = vadd.f32 %v1509, %v1611
      %v1666 = vadd.f32 %v1510, %v1614
      %v1667 = vadd.f32 %v1511, %v1616
      %v1668 = vadd.f32 %v1512, %v1619
      %v1669 = vadd.f32 %v1513, %v1621
      %v1670 = vadd.f32 %v1514, %v1624
      %v1671 = vadd.f32 %v1515, %v1626
      %v1672 = vadd.f32 %v1516, %v1629
      %v1673 = vadd.f32 %v1517, %v1631
      %v1674 = vadd.f32 %v1518, %v1634
      %v1675 = vadd.f32 %v1519, %v1636
      %v1676 = vadd.f32 %v1520, %v1639
      %v1677 = vadd.f32 %v1521, %v1641
      %v1678 = vadd.f32 %v1522, %v1644
      %v1679 = vadd.f32 %v1523, %v1646
      %v1681 = vrot.slane %v231, 5
      %v1682 = vrot.slane %v1681, 4
      %v1683 = vrot.slane %v232, 5
      %v1684 = vsel %vm1055, %v1682, %v1683
      %v1685 = vrot.slane %v1683, 4
      %v1686 = vrot.slane %v233, 5
      %v1687 = vsel %vm1055, %v1685, %v1686
      %s1688 = scalar_lea.vmem %s1, 10
      %v1689 = vld [vmem:[%s1688] sm:$0x3]
      %v1690 = vunpack.c.l.b16 %v1684
      %v1691 = vunpack.c.l.b16 %v1687
      %v1692 = vpack.c.b16 %v1691, %v1690
      %v1694 = vsel %vm675, %v1692, 0
      %v1697 = vsel %vm724, %v1689, 0
      %1699 = vmatpush.bf16.msra.mxu0 0
      %1700 = vmatpush.bf16.msra.mxu0 0
      %1701 = vmatpush.bf16.msra.mxu0 0
      %1702 = vmatpush.bf16.msra.mxu0 0
      %1703 = vmatpush.bf16.msra.mxu0 0
      %1704 = vmatpush.bf16.msra.mxu0 0
      %1705 = vmatpush.bf16.msra.mxu0 0
      %1706 = vmatpush.bf16.msra.mxu0 %v1697
      %1707 = vmatmul.bf16.gmra.mxu0 %v1222
      %v1708 = vpop.f32.mrf.mxu0
      %v1709 = vadd.f32 0.0, %v1708
      %v1710 = vpop.f32.mrf.mxu0
      %v1711 = vadd.f32 0.0, %v1710
      %1712 = vmatmul.bf16.gmra.mxu0 %v1225
      %v1713 = vpop.f32.mrf.mxu0
      %v1714 = vadd.f32 0.0, %v1713
      %v1715 = vpop.f32.mrf.mxu0
      %v1716 = vadd.f32 0.0, %v1715
      %1717 = vmatmul.bf16.gmra.mxu0 %v1228
      %v1718 = vpop.f32.mrf.mxu0
      %v1719 = vadd.f32 0.0, %v1718
      %v1720 = vpop.f32.mrf.mxu0
      %v1721 = vadd.f32 0.0, %v1720
      %1722 = vmatmul.bf16.gmra.mxu0 %v1231
      %v1723 = vpop.f32.mrf.mxu0
      %v1724 = vadd.f32 0.0, %v1723
      %v1725 = vpop.f32.mrf.mxu0
      %v1726 = vadd.f32 0.0, %v1725
      %1727 = vmatmul.bf16.gmra.mxu0 %v1234
      %v1728 = vpop.f32.mrf.mxu0
      %v1729 = vadd.f32 0.0, %v1728
      %v1730 = vpop.f32.mrf.mxu0
      %v1731 = vadd.f32 0.0, %v1730
      %1732 = vmatmul.bf16.gmra.mxu0 %v1237
      %v1733 = vpop.f32.mrf.mxu0
      %v1734 = vadd.f32 0.0, %v1733
      %v1735 = vpop.f32.mrf.mxu0
      %v1736 = vadd.f32 0.0, %v1735
      %1737 = vmatmul.bf16.gmra.mxu0 %v1240
      %v1738 = vpop.f32.mrf.mxu0
      %v1739 = vadd.f32 0.0, %v1738
      %v1740 = vpop.f32.mrf.mxu0
      %v1741 = vadd.f32 0.0, %v1740
      %1742 = vmatmul.bf16.gmra.mxu0 %v1243
      %v1743 = vpop.f32.mrf.mxu0
      %v1744 = vadd.f32 0.0, %v1743
      %v1745 = vpop.f32.mrf.mxu0
      %v1746 = vadd.f32 0.0, %v1745
      %1747 = vmatmul.bf16.gmra.mxu0 %v1246
      %v1748 = vpop.f32.mrf.mxu0
      %v1749 = vadd.f32 0.0, %v1748
      %v1750 = vpop.f32.mrf.mxu0
      %v1751 = vadd.f32 0.0, %v1750
      %1752 = vmatmul.bf16.gmra.mxu0 %v1249
      %v1753 = vpop.f32.mrf.mxu0
      %v1754 = vadd.f32 0.0, %v1753
      %v1755 = vpop.f32.mrf.mxu0
      %v1756 = vadd.f32 0.0, %v1755
      %1757 = vmatmul.bf16.gmra.mxu0 %v1252
      %v1758 = vpop.f32.mrf.mxu0
      %v1759 = vadd.f32 0.0, %v1758
      %v1760 = vpop.f32.mrf.mxu0
      %v1761 = vadd.f32 0.0, %v1760
      %1762 = vmatmul.bf16.gmra.mxu0 %v1255
      %v1763 = vpop.f32.mrf.mxu0
      %v1764 = vadd.f32 0.0, %v1763
      %v1765 = vpop.f32.mrf.mxu0
      %v1766 = vadd.f32 0.0, %v1765
      %1767 = vmatmul.bf16.gmra.mxu0 %v1258
      %v1768 = vpop.f32.mrf.mxu0
      %v1769 = vadd.f32 0.0, %v1768
      %v1770 = vpop.f32.mrf.mxu0
      %v1771 = vadd.f32 0.0, %v1770
      %1772 = vmatmul.bf16.gmra.mxu0 %v1261
      %v1773 = vpop.f32.mrf.mxu0
      %v1774 = vadd.f32 0.0, %v1773
      %v1775 = vpop.f32.mrf.mxu0
      %v1776 = vadd.f32 0.0, %v1775
      %1777 = vmatmul.bf16.gmra.mxu0 %v1264
      %v1778 = vpop.f32.mrf.mxu0
      %v1779 = vadd.f32 0.0, %v1778
      %v1780 = vpop.f32.mrf.mxu0
      %v1781 = vadd.f32 0.0, %v1780
      %1782 = vmatmul.bf16.gmra.mxu0 %v1694
      %v1783 = vpop.f32.mrf.mxu0
      %v1784 = vadd.f32 0.0, %v1783
      %v1785 = vpop.f32.mrf.mxu0
      %v1786 = vadd.f32 0.0, %v1785
      %1787 = vdwg.mxu0
      %v1788 = vadd.f32 %v1648, %v1709
      %v1789 = vadd.f32 %v1649, %v1711
      %v1790 = vadd.f32 %v1650, %v1714
      %v1791 = vadd.f32 %v1651, %v1716
      %v1792 = vadd.f32 %v1652, %v1719
      %v1793 = vadd.f32 %v1653, %v1721
      %v1794 = vadd.f32 %v1654, %v1724
      %v1795 = vadd.f32 %v1655, %v1726
      %v1796 = vadd.f32 %v1656, %v1729
      %v1797 = vadd.f32 %v1657, %v1731
      %v1798 = vadd.f32 %v1658, %v1734
      %v1799 = vadd.f32 %v1659, %v1736
      %v1800 = vadd.f32 %v1660, %v1739
      %v1801 = vadd.f32 %v1661, %v1741
      %v1802 = vadd.f32 %v1662, %v1744
      %v1803 = vadd.f32 %v1663, %v1746
      %v1804 = vadd.f32 %v1664, %v1749
      %v1805 = vadd.f32 %v1665, %v1751
      %v1806 = vadd.f32 %v1666, %v1754
      %v1807 = vadd.f32 %v1667, %v1756
      %v1808 = vadd.f32 %v1668, %v1759
      %v1809 = vadd.f32 %v1669, %v1761
      %v1810 = vadd.f32 %v1670, %v1764
      %v1811 = vadd.f32 %v1671, %v1766
      %v1812 = vadd.f32 %v1672, %v1769
      %v1813 = vadd.f32 %v1673, %v1771
      %v1814 = vadd.f32 %v1674, %v1774
      %v1815 = vadd.f32 %v1675, %v1776
      %v1816 = vadd.f32 %v1676, %v1779
      %v1817 = vadd.f32 %v1677, %v1781
      %v1818 = vadd.f32 %v1678, %v1784
      %v1819 = vadd.f32 %v1679, %v1786
      %s1820 = scalar_lea.vmem %s1, 12
      %v1821 = vld [vmem:[%s1820] sm:$0x3]
      %v1824 = vunpack.c.l.b16 %v234
      %v1825 = vunpack.c.l.b16 %v235
      %v1826 = vpack.c.b16 %v1825, %v1824
      %v1828 = vsel %vm675, %v1826, 0
      %v1831 = vsel %vm724, %v1821, 0
      %1833 = vmatpush.bf16.msra.mxu0 0
      %1834 = vmatpush.bf16.msra.mxu0 0
      %1835 = vmatpush.bf16.msra.mxu0 0
      %1836 = vmatpush.bf16.msra.mxu0 0
      %1837 = vmatpush.bf16.msra.mxu0 0
      %1838 = vmatpush.bf16.msra.mxu0 0
      %1839 = vmatpush.bf16.msra.mxu0 0
      %1840 = vmatpush.bf16.msra.mxu0 %v1831
      %1841 = vmatmul.bf16.gmra.mxu0 %v904
      %v1842 = vpop.f32.mrf.mxu0
      %v1843 = vadd.f32 0.0, %v1842
      %v1844 = vpop.f32.mrf.mxu0
      %v1845 = vadd.f32 0.0, %v1844
      %1846 = vmatmul.bf16.gmra.mxu0 %v907
      %v1847 = vpop.f32.mrf.mxu0
      %v1848 = vadd.f32 0.0, %v1847
      %v1849 = vpop.f32.mrf.mxu0
      %v1850 = vadd.f32 0.0, %v1849
      %1851 = vmatmul.bf16.gmra.mxu0 %v910
      %v1852 = vpop.f32.mrf.mxu0
      %v1853 = vadd.f32 0.0, %v1852
      %v1854 = vpop.f32.mrf.mxu0
      %v1855 = vadd.f32 0.0, %v1854
      %1856 = vmatmul.bf16.gmra.mxu0 %v913
      %v1857 = vpop.f32.mrf.mxu0
      %v1858 = vadd.f32 0.0, %v1857
      %v1859 = vpop.f32.mrf.mxu0
      %v1860 = vadd.f32 0.0, %v1859
      %1861 = vmatmul.bf16.gmra.mxu0 %v916
      %v1862 = vpop.f32.mrf.mxu0
      %v1863 = vadd.f32 0.0, %v1862
      %v1864 = vpop.f32.mrf.mxu0
      %v1865 = vadd.f32 0.0, %v1864
      %1866 = vmatmul.bf16.gmra.mxu0 %v919
      %v1867 = vpop.f32.mrf.mxu0
      %v1868 = vadd.f32 0.0, %v1867
      %v1869 = vpop.f32.mrf.mxu0
      %v1870 = vadd.f32 0.0, %v1869
      %1871 = vmatmul.bf16.gmra.mxu0 %v922
      %v1872 = vpop.f32.mrf.mxu0
      %v1873 = vadd.f32 0.0, %v1872
      %v1874 = vpop.f32.mrf.mxu0
      %v1875 = vadd.f32 0.0, %v1874
      %1876 = vmatmul.bf16.gmra.mxu0 %v925
      %v1877 = vpop.f32.mrf.mxu0
      %v1878 = vadd.f32 0.0, %v1877
      %v1879 = vpop.f32.mrf.mxu0
      %v1880 = vadd.f32 0.0, %v1879
      %1881 = vmatmul.bf16.gmra.mxu0 %v928
      %v1882 = vpop.f32.mrf.mxu0
      %v1883 = vadd.f32 0.0, %v1882
      %v1884 = vpop.f32.mrf.mxu0
      %v1885 = vadd.f32 0.0, %v1884
      %1886 = vmatmul.bf16.gmra.mxu0 %v931
      %v1887 = vpop.f32.mrf.mxu0
      %v1888 = vadd.f32 0.0, %v1887
      %v1889 = vpop.f32.mrf.mxu0
      %v1890 = vadd.f32 0.0, %v1889
      %1891 = vmatmul.bf16.gmra.mxu0 %v934
      %v1892 = vpop.f32.mrf.mxu0
      %v1893 = vadd.f32 0.0, %v1892
      %v1894 = vpop.f32.mrf.mxu0
      %v1895 = vadd.f32 0.0, %v1894
      %1896 = vmatmul.bf16.gmra.mxu0 %v937
      %v1897 = vpop.f32.mrf.mxu0
      %v1898 = vadd.f32 0.0, %v1897
      %v1899 = vpop.f32.mrf.mxu0
      %v1900 = vadd.f32 0.0, %v1899
      %1901 = vmatmul.bf16.gmra.mxu0 %v940
      %v1902 = vpop.f32.mrf.mxu0
      %v1903 = vadd.f32 0.0, %v1902
      %v1904 = vpop.f32.mrf.mxu0
      %v1905 = vadd.f32 0.0, %v1904
      %1906 = vmatmul.bf16.gmra.mxu0 %v943
      %v1907 = vpop.f32.mrf.mxu0
      %v1908 = vadd.f32 0.0, %v1907
      %v1909 = vpop.f32.mrf.mxu0
      %v1910 = vadd.f32 0.0, %v1909
      %1911 = vmatmul.bf16.gmra.mxu0 %v1398
      %v1912 = vpop.f32.mrf.mxu0
      %v1913 = vadd.f32 0.0, %v1912
      %v1914 = vpop.f32.mrf.mxu0
      %v1915 = vadd.f32 0.0, %v1914
      %1916 = vmatmul.bf16.gmra.mxu0 %v1828
      %v1917 = vpop.f32.mrf.mxu0
      %v1918 = vadd.f32 0.0, %v1917
      %v1919 = vpop.f32.mrf.mxu0
      %v1920 = vadd.f32 0.0, %v1919
      %1921 = vdwg.mxu0
      %v1922 = vadd.f32 %v1788, %v1843
      %v1923 = vadd.f32 %v1789, %v1845
      %v1924 = vadd.f32 %v1790, %v1848
      %v1925 = vadd.f32 %v1791, %v1850
      %v1926 = vadd.f32 %v1792, %v1853
      %v1927 = vadd.f32 %v1793, %v1855
      %v1928 = vadd.f32 %v1794, %v1858
      %v1929 = vadd.f32 %v1795, %v1860
      %v1930 = vadd.f32 %v1796, %v1863
      %v1931 = vadd.f32 %v1797, %v1865
      %v1932 = vadd.f32 %v1798, %v1868
      %v1933 = vadd.f32 %v1799, %v1870
      %v1934 = vadd.f32 %v1800, %v1873
      %v1935 = vadd.f32 %v1801, %v1875
      %v1936 = vadd.f32 %v1802, %v1878
      %v1937 = vadd.f32 %v1803, %v1880
      %v1938 = vadd.f32 %v1804, %v1883
      %v1939 = vadd.f32 %v1805, %v1885
      %v1940 = vadd.f32 %v1806, %v1888
      %v1941 = vadd.f32 %v1807, %v1890
      %v1942 = vadd.f32 %v1808, %v1893
      %v1943 = vadd.f32 %v1809, %v1895
      %v1944 = vadd.f32 %v1810, %v1898
      %v1945 = vadd.f32 %v1811, %v1900
      %v1946 = vadd.f32 %v1812, %v1903
      %v1947 = vadd.f32 %v1813, %v1905
      %v1948 = vadd.f32 %v1814, %v1908
      %v1949 = vadd.f32 %v1815, %v1910
      %v1950 = vadd.f32 %v1816, %v1913
      %v1951 = vadd.f32 %v1817, %v1915
      %v1952 = vadd.f32 %v1818, %v1918
      %v1953 = vadd.f32 %v1819, %v1920
      %v1955 = vshrl.u32 %v234, 16
      %v1957 = vrot.slane %v1955, 4
      %v1958 = vshll.u32 %v234, 16
      %v1960 = vrot.slane %v1958, 5
      %v1961 = vor.u32 %v1957, %v1960
      %v1962 = vrot.slane %v1961, 4
      %v1964 = vshll.u32 %v235, 16
      %v1966 = vrot.slane %v1964, 5
      %v1967 = vsel %vm240, %v1962, %v1966
      %v1968 = vshrl.u32 %v235, 16
      %v1970 = vrot.slane %v1968, 4
      %v1971 = vor.u32 %v1970, %v1966
      %v1972 = vrot.slane %v1971, 4
      %v1974 = vshll.u32 %v236, 16
      %v1976 = vrot.slane %v1974, 5
      %v1977 = vsel %vm240, %v1972, %v1976
      %s1978 = scalar_lea.vmem %s1, 14
      %v1979 = vld [vmem:[%s1978] sm:$0x3]
      %v1980 = vunpack.c.l.b16 %v1967
      %v1981 = vunpack.c.l.b16 %v1977
      %v1982 = vpack.c.b16 %v1981, %v1980
      %v1984 = vsel %vm675, %v1982, 0
      %v1987 = vsel %vm724, %v1979, 0
      %1989 = vmatpush.bf16.msra.mxu0 0
      %1990 = vmatpush.bf16.msra.mxu0 0
      %1991 = vmatpush.bf16.msra.mxu0 0
      %1992 = vmatpush.bf16.msra.mxu0 0
      %1993 = vmatpush.bf16.msra.mxu0 0
      %1994 = vmatpush.bf16.msra.mxu0 0
      %1995 = vmatpush.bf16.msra.mxu0 0
      %1996 = vmatpush.bf16.msra.mxu0 %v1987
      %1997 = vmatmul.bf16.gmra.mxu0 %v683
      %v1998 = vpop.f32.mrf.mxu0
      %v1999 = vadd.f32 0.0, %v1998
      %v2000 = vpop.f32.mrf.mxu0
      %v2001 = vadd.f32 0.0, %v2000
      %2002 = vmatmul.bf16.gmra.mxu0 %v686
      %v2003 = vpop.f32.mrf.mxu0
      %v2004 = vadd.f32 0.0, %v2003
      %v2005 = vpop.f32.mrf.mxu0
      %v2006 = vadd.f32 0.0, %v2005
      %2007 = vmatmul.bf16.gmra.mxu0 %v689
      %v2008 = vpop.f32.mrf.mxu0
      %v2009 = vadd.f32 0.0, %v2008
      %v2010 = vpop.f32.mrf.mxu0
      %v2011 = vadd.f32 0.0, %v2010
      %2012 = vmatmul.bf16.gmra.mxu0 %v692
      %v2013 = vpop.f32.mrf.mxu0
      %v2014 = vadd.f32 0.0, %v2013
      %v2015 = vpop.f32.mrf.mxu0
      %v2016 = vadd.f32 0.0, %v2015
      %2017 = vmatmul.bf16.gmra.mxu0 %v695
      %v2018 = vpop.f32.mrf.mxu0
      %v2019 = vadd.f32 0.0, %v2018
      %v2020 = vpop.f32.mrf.mxu0
      %v2021 = vadd.f32 0.0, %v2020
      %2022 = vmatmul.bf16.gmra.mxu0 %v698
      %v2023 = vpop.f32.mrf.mxu0
      %v2024 = vadd.f32 0.0, %v2023
      %v2025 = vpop.f32.mrf.mxu0
      %v2026 = vadd.f32 0.0, %v2025
      %2027 = vmatmul.bf16.gmra.mxu0 %v701
      %v2028 = vpop.f32.mrf.mxu0
      %v2029 = vadd.f32 0.0, %v2028
      %v2030 = vpop.f32.mrf.mxu0
      %v2031 = vadd.f32 0.0, %v2030
      %2032 = vmatmul.bf16.gmra.mxu0 %v704
      %v2033 = vpop.f32.mrf.mxu0
      %v2034 = vadd.f32 0.0, %v2033
      %v2035 = vpop.f32.mrf.mxu0
      %v2036 = vadd.f32 0.0, %v2035
      %2037 = vmatmul.bf16.gmra.mxu0 %v707
      %v2038 = vpop.f32.mrf.mxu0
      %v2039 = vadd.f32 0.0, %v2038
      %v2040 = vpop.f32.mrf.mxu0
      %v2041 = vadd.f32 0.0, %v2040
      %2042 = vmatmul.bf16.gmra.mxu0 %v710
      %v2043 = vpop.f32.mrf.mxu0
      %v2044 = vadd.f32 0.0, %v2043
      %v2045 = vpop.f32.mrf.mxu0
      %v2046 = vadd.f32 0.0, %v2045
      %2047 = vmatmul.bf16.gmra.mxu0 %v713
      %v2048 = vpop.f32.mrf.mxu0
      %v2049 = vadd.f32 0.0, %v2048
      %v2050 = vpop.f32.mrf.mxu0
      %v2051 = vadd.f32 0.0, %v2050
      %2052 = vmatmul.bf16.gmra.mxu0 %v716
      %v2053 = vpop.f32.mrf.mxu0
      %v2054 = vadd.f32 0.0, %v2053
      %v2055 = vpop.f32.mrf.mxu0
      %v2056 = vadd.f32 0.0, %v2055
      %2057 = vmatmul.bf16.gmra.mxu0 %v719
      %v2058 = vpop.f32.mrf.mxu0
      %v2059 = vadd.f32 0.0, %v2058
      %v2060 = vpop.f32.mrf.mxu0
      %v2061 = vadd.f32 0.0, %v2060
      %2062 = vmatmul.bf16.gmra.mxu0 %v722
      %v2063 = vpop.f32.mrf.mxu0
      %v2064 = vadd.f32 0.0, %v2063
      %v2065 = vpop.f32.mrf.mxu0
      %v2066 = vadd.f32 0.0, %v2065
      %2067 = vmatmul.bf16.gmra.mxu0 %v1554
      %v2068 = vpop.f32.mrf.mxu0
      %v2069 = vadd.f32 0.0, %v2068
      %v2070 = vpop.f32.mrf.mxu0
      %v2071 = vadd.f32 0.0, %v2070
      %2072 = vmatmul.bf16.gmra.mxu0 %v1984
      %v2073 = vpop.f32.mrf.mxu0
      %v2074 = vadd.f32 0.0, %v2073
      %v2075 = vpop.f32.mrf.mxu0
      %v2076 = vadd.f32 0.0, %v2075
      %2077 = vdwg.mxu0
      %v2078 = vadd.f32 %v1922, %v1999
      %v2079 = vadd.f32 %v1923, %v2001
      %v2080 = vadd.f32 %v1924, %v2004
      %v2081 = vadd.f32 %v1925, %v2006
      %v2082 = vadd.f32 %v1926, %v2009
      %v2083 = vadd.f32 %v1927, %v2011
      %v2084 = vadd.f32 %v1928, %v2014
      %v2085 = vadd.f32 %v1929, %v2016
      %v2086 = vadd.f32 %v1930, %v2019
      %v2087 = vadd.f32 %v1931, %v2021
      %v2088 = vadd.f32 %v1932, %v2024
      %v2089 = vadd.f32 %v1933, %v2026
      %v2090 = vadd.f32 %v1934, %v2029
      %v2091 = vadd.f32 %v1935, %v2031
      %v2092 = vadd.f32 %v1936, %v2034
      %v2093 = vadd.f32 %v1937, %v2036
      %v2094 = vadd.f32 %v1938, %v2039
      %v2095 = vadd.f32 %v1939, %v2041
      %v2096 = vadd.f32 %v1940, %v2044
      %v2097 = vadd.f32 %v1941, %v2046
      %v2098 = vadd.f32 %v1942, %v2049
      %v2099 = vadd.f32 %v1943, %v2051
      %v2100 = vadd.f32 %v1944, %v2054
      %v2101 = vadd.f32 %v1945, %v2056
      %v2102 = vadd.f32 %v1946, %v2059
      %v2103 = vadd.f32 %v1947, %v2061
      %v2104 = vadd.f32 %v1948, %v2064
      %v2105 = vadd.f32 %v1949, %v2066
      %v2106 = vadd.f32 %v1950, %v2069
      %v2107 = vadd.f32 %v1951, %v2071
      %v2108 = vadd.f32 %v1952, %v2074
      %v2109 = vadd.f32 %v1953, %v2076
      %v2111 = vrot.slane %v234, 5
      %v2112 = vrot.slane %v2111, 4
      %v2113 = vrot.slane %v235, 5
      %v2114 = vsel %vm1055, %v2112, %v2113
      %v2115 = vrot.slane %v2113, 4
      %v2116 = vrot.slane %v236, 5
      %v2117 = vsel %vm1055, %v2115, %v2116
      %s2118 = scalar_lea.vmem %s1, 16
      %v2119 = vld [vmem:[%s2118] sm:$0x3]
      %v2120 = vunpack.c.l.b16 %v2114
      %v2121 = vunpack.c.l.b16 %v2117
      %v2122 = vpack.c.b16 %v2121, %v2120
      %v2124 = vsel %vm675, %v2122, 0
      %v2127 = vsel %vm724, %v2119, 0
      %2129 = vmatpush.bf16.msra.mxu0 0
      %2130 = vmatpush.bf16.msra.mxu0 0
      %2131 = vmatpush.bf16.msra.mxu0 0
      %2132 = vmatpush.bf16.msra.mxu0 0
      %2133 = vmatpush.bf16.msra.mxu0 0
      %2134 = vmatpush.bf16.msra.mxu0 0
      %2135 = vmatpush.bf16.msra.mxu0 0
      %2136 = vmatpush.bf16.msra.mxu0 %v2127
      %2137 = vmatmul.bf16.gmra.mxu0 %v1225
      %v2138 = vpop.f32.mrf.mxu0
      %v2139 = vadd.f32 0.0, %v2138
      %v2140 = vpop.f32.mrf.mxu0
      %v2141 = vadd.f32 0.0, %v2140
      %2142 = vmatmul.bf16.gmra.mxu0 %v1228
      %v2143 = vpop.f32.mrf.mxu0
      %v2144 = vadd.f32 0.0, %v2143
      %v2145 = vpop.f32.mrf.mxu0
      %v2146 = vadd.f32 0.0, %v2145
      %2147 = vmatmul.bf16.gmra.mxu0 %v1231
      %v2148 = vpop.f32.mrf.mxu0
      %v2149 = vadd.f32 0.0, %v2148
      %v2150 = vpop.f32.mrf.mxu0
      %v2151 = vadd.f32 0.0, %v2150
      %2152 = vmatmul.bf16.gmra.mxu0 %v1234
      %v2153 = vpop.f32.mrf.mxu0
      %v2154 = vadd.f32 0.0, %v2153
      %v2155 = vpop.f32.mrf.mxu0
      %v2156 = vadd.f32 0.0, %v2155
      %2157 = vmatmul.bf16.gmra.mxu0 %v1237
      %v2158 = vpop.f32.mrf.mxu0
      %v2159 = vadd.f32 0.0, %v2158
      %v2160 = vpop.f32.mrf.mxu0
      %v2161 = vadd.f32 0.0, %v2160
      %2162 = vmatmul.bf16.gmra.mxu0 %v1240
      %v2163 = vpop.f32.mrf.mxu0
      %v2164 = vadd.f32 0.0, %v2163
      %v2165 = vpop.f32.mrf.mxu0
      %v2166 = vadd.f32 0.0, %v2165
      %2167 = vmatmul.bf16.gmra.mxu0 %v1243
      %v2168 = vpop.f32.mrf.mxu0
      %v2169 = vadd.f32 0.0, %v2168
      %v2170 = vpop.f32.mrf.mxu0
      %v2171 = vadd.f32 0.0, %v2170
      %2172 = vmatmul.bf16.gmra.mxu0 %v1246
      %v2173 = vpop.f32.mrf.mxu0
      %v2174 = vadd.f32 0.0, %v2173
      %v2175 = vpop.f32.mrf.mxu0
      %v2176 = vadd.f32 0.0, %v2175
      %2177 = vmatmul.bf16.gmra.mxu0 %v1249
      %v2178 = vpop.f32.mrf.mxu0
      %v2179 = vadd.f32 0.0, %v2178
      %v2180 = vpop.f32.mrf.mxu0
      %v2181 = vadd.f32 0.0, %v2180
      %2182 = vmatmul.bf16.gmra.mxu0 %v1252
      %v2183 = vpop.f32.mrf.mxu0
      %v2184 = vadd.f32 0.0, %v2183
      %v2185 = vpop.f32.mrf.mxu0
      %v2186 = vadd.f32 0.0, %v2185
      %2187 = vmatmul.bf16.gmra.mxu0 %v1255
      %v2188 = vpop.f32.mrf.mxu0
      %v2189 = vadd.f32 0.0, %v2188
      %v2190 = vpop.f32.mrf.mxu0
      %v2191 = vadd.f32 0.0, %v2190
      %2192 = vmatmul.bf16.gmra.mxu0 %v1258
      %v2193 = vpop.f32.mrf.mxu0
      %v2194 = vadd.f32 0.0, %v2193
      %v2195 = vpop.f32.mrf.mxu0
      %v2196 = vadd.f32 0.0, %v2195
      %2197 = vmatmul.bf16.gmra.mxu0 %v1261
      %v2198 = vpop.f32.mrf.mxu0
      %v2199 = vadd.f32 0.0, %v2198
      %v2200 = vpop.f32.mrf.mxu0
      %v2201 = vadd.f32 0.0, %v2200
      %2202 = vmatmul.bf16.gmra.mxu0 %v1264
      %v2203 = vpop.f32.mrf.mxu0
      %v2204 = vadd.f32 0.0, %v2203
      %v2205 = vpop.f32.mrf.mxu0
      %v2206 = vadd.f32 0.0, %v2205
      %2207 = vmatmul.bf16.gmra.mxu0 %v1694
      %v2208 = vpop.f32.mrf.mxu0
      %v2209 = vadd.f32 0.0, %v2208
      %v2210 = vpop.f32.mrf.mxu0
      %v2211 = vadd.f32 0.0, %v2210
      %2212 = vmatmul.bf16.gmra.mxu0 %v2124
      %v2213 = vpop.f32.mrf.mxu0
      %v2214 = vadd.f32 0.0, %v2213
      %v2215 = vpop.f32.mrf.mxu0
      %v2216 = vadd.f32 0.0, %v2215
      %2217 = vdwg.mxu0
      %v2218 = vadd.f32 %v2078, %v2139
      %v2219 = vadd.f32 %v2079, %v2141
      %v2220 = vadd.f32 %v2080, %v2144
      %v2221 = vadd.f32 %v2081, %v2146
      %v2222 = vadd.f32 %v2082, %v2149
      %v2223 = vadd.f32 %v2083, %v2151
      %v2224 = vadd.f32 %v2084, %v2154
      %v2225 = vadd.f32 %v2085, %v2156
      %v2226 = vadd.f32 %v2086, %v2159
      %v2227 = vadd.f32 %v2087, %v2161
      %v2228 = vadd.f32 %v2088, %v2164
      %v2229 = vadd.f32 %v2089, %v2166
      %v2230 = vadd.f32 %v2090, %v2169
      %v2231 = vadd.f32 %v2091, %v2171
      %v2232 = vadd.f32 %v2092, %v2174
      %v2233 = vadd.f32 %v2093, %v2176
      %v2234 = vadd.f32 %v2094, %v2179
      %v2235 = vadd.f32 %v2095, %v2181
      %v2236 = vadd.f32 %v2096, %v2184
      %v2237 = vadd.f32 %v2097, %v2186
      %v2238 = vadd.f32 %v2098, %v2189
      %v2239 = vadd.f32 %v2099, %v2191
      %v2240 = vadd.f32 %v2100, %v2194
      %v2241 = vadd.f32 %v2101, %v2196
      %v2242 = vadd.f32 %v2102, %v2199
      %v2243 = vadd.f32 %v2103, %v2201
      %v2244 = vadd.f32 %v2104, %v2204
      %v2245 = vadd.f32 %v2105, %v2206
      %v2246 = vadd.f32 %v2106, %v2209
      %v2247 = vadd.f32 %v2107, %v2211
      %v2248 = vadd.f32 %v2108, %v2214
      %v2249 = vadd.f32 %v2109, %v2216
      %2250 = vst.msk [vmem:[%s177] sm:$0xff] %vm675, %v2218
      %2251 = vst.msk [vmem:[%s177 + $0x8] sm:$0xff] %vm675, %v2219
      %2252 = vst.msk [vmem:[%s177 + $0x10] sm:$0xff] %vm675, %v2220
      %2253 = vst.msk [vmem:[%s177 + $0x18] sm:$0xff] %vm675, %v2221
      %2254 = vst.msk [vmem:[%s177 + $0x20] sm:$0xff] %vm675, %v2222
      %2255 = vst.msk [vmem:[%s177 + $0x28] sm:$0xff] %vm675, %v2223
      %2256 = vst.msk [vmem:[%s177 + $0x30] sm:$0xff] %vm675, %v2224
      %2257 = vst.msk [vmem:[%s177 + $0x38] sm:$0xff] %vm675, %v2225
      %2258 = vst.msk [vmem:[%s177 + $0x40] sm:$0xff] %vm675, %v2226
      %2259 = vst.msk [vmem:[%s177 + $0x48] sm:$0xff] %vm675, %v2227
      %2260 = vst.msk [vmem:[%s177 + $0x50] sm:$0xff] %vm675, %v2228
      %2261 = vst.msk [vmem:[%s177 + $0x58] sm:$0xff] %vm675, %v2229
      %2262 = vst.msk [vmem:[%s177 + $0x60] sm:$0xff] %vm675, %v2230
      %2263 = vst.msk [vmem:[%s177 + $0x68] sm:$0xff] %vm675, %v2231
      %2264 = vst.msk [vmem:[%s177 + $0x70] sm:$0xff] %vm675, %v2232
      %2265 = vst.msk [vmem:[%s177 + $0x78] sm:$0xff] %vm675, %v2233
      %2266 = vst.msk [vmem:[%s177 + $0x80] sm:$0xff] %vm675, %v2234
      %2267 = vst.msk [vmem:[%s177 + $0x88] sm:$0xff] %vm675, %v2235
      %2268 = vst.msk [vmem:[%s177 + $0x90] sm:$0xff] %vm675, %v2236
      %2269 = vst.msk [vmem:[%s177 + $0x98] sm:$0xff] %vm675, %v2237
      %2270 = vst.msk [vmem:[%s177 + $0xa0] sm:$0xff] %vm675, %v2238
      %2271 = vst.msk [vmem:[%s177 + $0xa8] sm:$0xff] %vm675, %v2239
      %2272 = vst.msk [vmem:[%s177 + $0xb0] sm:$0xff] %vm675, %v2240
      %2273 = vst.msk [vmem:[%s177 + $0xb8] sm:$0xff] %vm675, %v2241
      %2274 = vst.msk [vmem:[%s177 + $0xc0] sm:$0xff] %vm675, %v2242
      %2275 = vst.msk [vmem:[%s177 + $0xc8] sm:$0xff] %vm675, %v2243
      %2276 = vst.msk [vmem:[%s177 + $0xd0] sm:$0xff] %vm675, %v2244
      %2277 = vst.msk [vmem:[%s177 + $0xd8] sm:$0xff] %vm675, %v2245
      %2278 = vst.msk [vmem:[%s177 + $0xe0] sm:$0xff] %vm675, %v2246
      %2279 = vst.msk [vmem:[%s177 + $0xe8] sm:$0xff] %vm675, %v2247
      %2280 = vst.msk [vmem:[%s177 + $0xf0] sm:$0xff] %vm675, %v2248
      %2281 = vst.msk [vmem:[%s177 + $0xf8] sm:$0xff] %vm675, %v2249
      %v2282 = vsel %vm675, %v2218, 0.0
      %v2283 = vsel %vm675, %v2219, 0.0
      %v2284 = vadd.f32 %v2282, %v2283
      %v2285 = vsel %vm675, %v2220, 0.0
      %v2286 = vadd.f32 %v2284, %v2285
      %v2287 = vsel %vm675, %v2221, 0.0
      %v2288 = vadd.f32 %v2286, %v2287
      %v2289 = vsel %vm675, %v2222, 0.0
      %v2290 = vadd.f32 %v2288, %v2289
      %v2291 = vsel %vm675, %v2223, 0.0
      %v2292 = vadd.f32 %v2290, %v2291
      %v2293 = vsel %vm675, %v2224, 0.0
      %v2294 = vadd.f32 %v2292, %v2293
      %v2295 = vsel %vm675, %v2225, 0.0
      %v2296 = vadd.f32 %v2294, %v2295
      %v2297 = vsel %vm675, %v2226, 0.0
      %v2298 = vadd.f32 %v2296, %v2297
      %v2299 = vsel %vm675, %v2227, 0.0
      %v2300 = vadd.f32 %v2298, %v2299
      %v2301 = vsel %vm675, %v2228, 0.0
      %v2302 = vadd.f32 %v2300, %v2301
      %v2303 = vsel %vm675, %v2229, 0.0
      %v2304 = vadd.f32 %v2302, %v2303
      %v2305 = vsel %vm675, %v2230, 0.0
      %v2306 = vadd.f32 %v2304, %v2305
      %v2307 = vsel %vm675, %v2231, 0.0
      %v2308 = vadd.f32 %v2306, %v2307
      %v2309 = vsel %vm675, %v2232, 0.0
      %v2310 = vadd.f32 %v2308, %v2309
      %v2311 = vsel %vm675, %v2233, 0.0
      %v2312 = vadd.f32 %v2310, %v2311
      %v2313 = vsel %vm675, %v2234, 0.0
      %v2314 = vadd.f32 %v2312, %v2313
      %v2315 = vsel %vm675, %v2235, 0.0
      %v2316 = vadd.f32 %v2314, %v2315
      %v2317 = vsel %vm675, %v2236, 0.0
      %v2318 = vadd.f32 %v2316, %v2317
      %v2319 = vsel %vm675, %v2237, 0.0
      %v2320 = vadd.f32 %v2318, %v2319
      %v2321 = vsel %vm675, %v2238, 0.0
      %v2322 = vadd.f32 %v2320, %v2321
      %v2323 = vsel %vm675, %v2239, 0.0
      %v2324 = vadd.f32 %v2322, %v2323
      %v2325 = vsel %vm675, %v2240, 0.0
      %v2326 = vadd.f32 %v2324, %v2325
      %v2327 = vsel %vm675, %v2241, 0.0
      %v2328 = vadd.f32 %v2326, %v2327
      %v2329 = vsel %vm675, %v2242, 0.0
      %v2330 = vadd.f32 %v2328, %v2329
      %v2331 = vsel %vm675, %v2243, 0.0
      %v2332 = vadd.f32 %v2330, %v2331
      %v2333 = vsel %vm675, %v2244, 0.0
      %v2334 = vadd.f32 %v2332, %v2333
      %v2335 = vsel %vm675, %v2245, 0.0
      %v2336 = vadd.f32 %v2334, %v2335
      %v2337 = vsel %vm675, %v2246, 0.0
      %v2338 = vadd.f32 %v2336, %v2337
      %v2339 = vsel %vm675, %v2247, 0.0
      %v2340 = vadd.f32 %v2338, %v2339
      %v2341 = vsel %vm675, %v2248, 0.0
      %v2342 = vadd.f32 %v2340, %v2341
      %v2343 = vsel %vm675, %v2249, 0.0
      %v2344 = vadd.f32 %v2342, %v2343
      %v2345 = vrot.slane %v2344, 4
      %v2346 = vadd.f32 %v2344, %v2345
      %v2347 = vrot.slane %v2346, 2
      %v2348 = vadd.f32 %v2346, %v2347
      %v2349 = vrot.slane %v2348, 1
      %v2350 = vadd.f32 %v2348, %v2349
      %vm2351 = vcmask 24576
      %2352 = vst.msk [vmem:[%s181] sm:$0x1] %vm2351, %v2350
      %v2353 = vmul.f32 %v2218, %v2218
      %v2354 = vmul.f32 %v2219, %v2219
      %v2355 = vmul.f32 %v2220, %v2220
      %v2356 = vmul.f32 %v2221, %v2221
      %v2357 = vmul.f32 %v2222, %v2222
      %v2358 = vmul.f32 %v2223, %v2223
      %v2359 = vmul.f32 %v2224, %v2224
      %v2360 = vmul.f32 %v2225, %v2225
      %v2361 = vmul.f32 %v2226, %v2226
      %v2362 = vmul.f32 %v2227, %v2227
      %v2363 = vmul.f32 %v2228, %v2228
      %v2364 = vmul.f32 %v2229, %v2229
      %v2365 = vmul.f32 %v2230, %v2230
      %v2366 = vmul.f32 %v2231, %v2231
      %v2367 = vmul.f32 %v2232, %v2232
      %v2368 = vmul.f32 %v2233, %v2233
      %v2369 = vmul.f32 %v2234, %v2234
      %v2370 = vmul.f32 %v2235, %v2235
      %v2371 = vmul.f32 %v2236, %v2236
      %v2372 = vmul.f32 %v2237, %v2237
      %v2373 = vmul.f32 %v2238, %v2238
      %v2374 = vmul.f32 %v2239, %v2239
      %v2375 = vmul.f32 %v2240, %v2240
      %v2376 = vmul.f32 %v2241, %v2241
      %v2377 = vmul.f32 %v2242, %v2242
      %v2378 = vmul.f32 %v2243, %v2243
      %v2379 = vmul.f32 %v2244, %v2244
      %v2380 = vmul.f32 %v2245, %v2245
      %v2381 = vmul.f32 %v2246, %v2246
      %v2382 = vmul.f32 %v2247, %v2247
      %v2383 = vmul.f32 %v2248, %v2248
      %v2384 = vmul.f32 %v2249, %v2249
      %v2385 = vsel %vm675, %v2353, 0.0
      %v2386 = vsel %vm675, %v2354, 0.0
      %v2387 = vadd.f32 %v2385, %v2386
      %v2388 = vsel %vm675, %v2355, 0.0
      %v2389 = vadd.f32 %v2387, %v2388
      %v2390 = vsel %vm675, %v2356, 0.0
      %v2391 = vadd.f32 %v2389, %v2390
      %v2392 = vsel %vm675, %v2357, 0.0
      %v2393 = vadd.f32 %v2391, %v2392
      %v2394 = vsel %vm675, %v2358, 0.0
      %v2395 = vadd.f32 %v2393, %v2394
      %v2396 = vsel %vm675, %v2359, 0.0
      %v2397 = vadd.f32 %v2395, %v2396
      %v2398 = vsel %vm675, %v2360, 0.0
      %v2399 = vadd.f32 %v2397, %v2398
      %v2400 = vsel %vm675, %v2361, 0.0
      %v2401 = vadd.f32 %v2399, %v2400
      %v2402 = vsel %vm675, %v2362, 0.0
      %v2403 = vadd.f32 %v2401, %v2402
      %v2404 = vsel %vm675, %v2363, 0.0
      %v2405 = vadd.f32 %v2403, %v2404
      %v2406 = vsel %vm675, %v2364, 0.0
      %v2407 = vadd.f32 %v2405, %v2406
      %v2408 = vsel %vm675, %v2365, 0.0
      %v2409 = vadd.f32 %v2407, %v2408
      %v2410 = vsel %vm675, %v2366, 0.0
      %v2411 = vadd.f32 %v2409, %v2410
      %v2412 = vsel %vm675, %v2367, 0.0
      %v2413 = vadd.f32 %v2411, %v2412
      %v2414 = vsel %vm675, %v2368, 0.0
      %v2415 = vadd.f32 %v2413, %v2414
      %v2416 = vsel %vm675, %v2369, 0.0
      %v2417 = vadd.f32 %v2415, %v2416
      %v2418 = vsel %vm675, %v2370, 0.0
      %v2419 = vadd.f32 %v2417, %v2418
      %v2420 = vsel %vm675, %v2371, 0.0
      %v2421 = vadd.f32 %v2419, %v2420
      %v2422 = vsel %vm675, %v2372, 0.0
      %v2423 = vadd.f32 %v2421, %v2422
      %v2424 = vsel %vm675, %v2373, 0.0
      %v2425 = vadd.f32 %v2423, %v2424
      %v2426 = vsel %vm675, %v2374, 0.0
      %v2427 = vadd.f32 %v2425, %v2426
      %v2428 = vsel %vm675, %v2375, 0.0
      %v2429 = vadd.f32 %v2427, %v2428
      %v2430 = vsel %vm675, %v2376, 0.0
      %v2431 = vadd.f32 %v2429, %v2430
      %v2432 = vsel %vm675, %v2377, 0.0
      %v2433 = vadd.f32 %v2431, %v2432
      %v2434 = vsel %vm675, %v2378, 0.0
      %v2435 = vadd.f32 %v2433, %v2434
      %v2436 = vsel %vm675, %v2379, 0.0
      %v2437 = vadd.f32 %v2435, %v2436
      %v2438 = vsel %vm675, %v2380, 0.0
      %v2439 = vadd.f32 %v2437, %v2438
      %v2440 = vsel %vm675, %v2381, 0.0
      %v2441 = vadd.f32 %v2439, %v2440
      %v2442 = vsel %vm675, %v2382, 0.0
      %v2443 = vadd.f32 %v2441, %v2442
      %v2444 = vsel %vm675, %v2383, 0.0
      %v2445 = vadd.f32 %v2443, %v2444
      %v2446 = vsel %vm675, %v2384, 0.0
      %v2447 = vadd.f32 %v2445, %v2446
      %v2448 = vrot.slane %v2447, 4
      %v2449 = vadd.f32 %v2447, %v2448
      %v2450 = vrot.slane %v2449, 2
      %v2451 = vadd.f32 %v2449, %v2450
      %v2452 = vrot.slane %v2451, 1
      %v2453 = vadd.f32 %v2451, %v2452
      %2454 = vst.msk [vmem:[%s181 + $0x1] sm:$0x1] %vm2351, %v2453
      %p2455 = scmp.lt.s32.totalorder %s15, 1
      %s2456 = scalar_select %p2455, %s15, 1
      %s2457 = smul.addr %s2456, 32
      %s2458 = smul.addr %s2457, 8
      %s2459 = scalar_lea.vmem %s2, %s2458
      %p2460 = scmp.lt.s32.totalorder %s15, 1
      %s2461 = scalar_select %p2460, %s15, 1
      %s2462 = smul.addr %s2461, 2
      %s2463 = scalar_lea.vmem %s3, %s2462
      // Predicated region
      $region29: #{residual_block_forward.3} parent=27 // pred_check
        %p2464 = pneg %p80
      $region30: #{residual_block_forward.3} parent=27 // pred_check_branch
        %2466 = sbr.rel (%p2464) target = $region32
      $region31: #{residual_block_forward.3} parent=27 // pred_region
        _
      $region32: #{residual_block_forward.3} parent=27 // pred_fallthru
        _
      // Predicated region
      $region33: #{residual_block_forward.3} parent=27 // pred_check
        %p2467 = pneg %p106
      $region34: #{residual_block_forward.3} parent=27 // pred_check_branch
        %2469 = sbr.rel (%p2467) target = $region36
      $region35: #{residual_block_forward.3} parent=27 // pred_region
        _
      $region36: #{residual_block_forward.3} parent=27 // pred_fallthru
        _
    $region28: #{residual_block_forward.3} parent=5 // pred_fallthru
      _
    %p2470 = scmp.le.s32.totalorder 2, %s10
    // Predicated region
    $region37: #{residual_block_forward.3} parent=5 // pred_check
      %p2471 = pneg %p2470
    $region38: #{residual_block_forward.3} parent=5 // pred_check_branch
      %2473 = sbr.rel (%p2471) target = $region40
    $region39: #{residual_block_forward.3} parent=5 // pred_region
      %s2474 = ssub.s32 %s10, 2
      // Predicated region
      $region41: #{residual_block_forward.3} parent=39 // pred_check
        %p2475 = pneg %p86
      $region42: #{residual_block_forward.3} parent=39 // pred_check_branch
        %2477 = sbr.rel (%p2475) target = $region44
      $region43: #{residual_block_forward.3} parent=39 // pred_region
        %p2478 = scmp.lt.s32.totalorder %s16, 1
        %s2479 = scalar_select %p2478, %s16, 1
        %s2480 = smul.addr %s2479, 32
        %s2481 = smul.addr %s2480, 8
        %s2482 = scalar_lea.vmem %s2, %s2481
      $region44: #{residual_block_forward.3} parent=39 // pred_fallthru
        _
      // Predicated region
      $region45: #{residual_block_forward.3} parent=39 // pred_check
        %p2483 = pneg %p112
      $region46: #{residual_block_forward.3} parent=39 // pred_check_branch
        %2485 = sbr.rel (%p2483) target = $region48
      $region47: #{residual_block_forward.3} parent=39 // pred_region
        %p2486 = scmp.lt.s32.totalorder %s16, 1
        %s2487 = scalar_select %p2486, %s16, 1
        %s2488 = smul.addr %s2487, 2
        %s2489 = scalar_lea.vmem %s3, %s2488
      $region48: #{residual_block_forward.3} parent=39 // pred_fallthru
        _
    $region40: #{residual_block_forward.3} parent=5 // pred_fallthru
      _
  $region6: #{residual_block_forward.3} parent=0 // loop_footer
    %s14 = sadd.s32 1, %s10
  $region7: #{residual_block_forward.3} parent=0 // loop_footer_branch
    %9 = sbr.rel target = $region3
  $region8: #{residual_block_forward.3} parent=0 // loop_exit
    _

// kernel: residual_block_forward.4
$region0: #{residual_block_forward.4}
  #allocation0 [shape = 'u32[]', space=smem, size = 0x4, offset = 0x4, fixed_abs, tag = 'smem constant byte address 0x4 - core index']
  #allocation1 [shape = 'u32[72,128]{1,0:T(1,128)}', space=vmem, size = 0x9000, scoped, tag = 'internal scratch']
  #allocation2 [shape = 'bf16[18,18,4]{2,1,0:T(8,128)(2,1)}', space=vmem, size = 0x1b000, scoped, tag = 'scratch operand']
  %s0 = inlined_call_operand.vmem [shape: f32[2,256,4], index: 0, kind: input, shape index: {}]
  %s1 = inlined_call_operand.vmem [shape: f32[1,4], index: 1, kind: input, shape index: {}]
  %s2 = inlined_call_operand.vmem [shape: f32[1,4], index: 2, kind: input, shape index: {}]
  %s3 = inlined_call_operand.vmem [shape: bf16[9,4,4], index: 3, kind: input, shape index: {}]
  %s4 = inlined_call_operand.vmem [shape: f32[2,256,4], index: 4, kind: output, shape index: {0}]
  %s5 = inlined_call_operand.vmem [shape: f32[2,2,4], index: 5, kind: output, shape index: {1}]
  %6 = xla_tuple %s4, %s5
  %s7 = sld [smem:[#allocation0]]
  $region57: #{residual_block_forward.4} parent=0
    _
  %s9 = ssub.s32 1, %s7
  %s10 = scalar_select 0, %s9, %s7
  loop: start=0, step=1, limit=4
  $region2: #{residual_block_forward.4} parent=0 // loop_pre_header
    _
  $region3: #{residual_block_forward.4} parent=0 // loop_header
    %s12 = sphi 0, %s16
    %p13 = scmp.ge.s32.totalorder %s12, 4
    %s22 = sphi 0, %s24
    %s25 = sphi 0, %s22
    %s26 = sphi 0, %s25
    %s42 = sphi 0, %s26
    %s46 = sphi 0, %s46
    %s48 = sphi 0, %s46
    %s49 = sphi 0, %s48
    %s63 = sphi 0, %s49
    %s67 = sphi 0, %s67
    %s69 = sphi 0, %s67
    %s70 = sphi 0, %s69
    %s84 = sphi 0, %s70
    %s88 = sphi 0, %s88
    %s90 = sphi 0, %s88
    %s91 = sphi 0, %s90
    %s105 = sphi 0, %s91
    %s111 = sphi 0, %s113
    %s114 = sphi 0, %s111
    %s115 = sphi 0, %s114
    %s131 = sphi 0, %s115
    %s137 = sphi 0, %s139
    %s140 = sphi 0, %s137
    %s141 = sphi 0, %s140
    %s157 = sphi 0, %s141
  $region4: #{residual_block_forward.4} parent=0 // loop_header_branch
    %15 = sbr.rel (%p13) target = $region8
  $region5: #{residual_block_forward.4} parent=0 // loop_body
    %s17 = ssub.s32 %s12, 1
    %s18 = ssub.s32 %s12, 2
    %s19 = sadd.s32 %s12, 1
    %s20 = ssub.s32 %s12, %s19
    %p21 = scmp.eq.s32.totalorder %s20, 0
    %s23 = sadd.s32 %s22, 1
    %s24 = scalar_select %p21, %s22, %s23
    %p27 = pneg %p21
    %p28 = scmp.eq.s32.totalorder %s12, 1
    %p29 = por %p27, %p28
    %p30 = scmp.ne.s32.totalorder %s22, %s25
    %p31 = scmp.eq.s32.totalorder %s12, 0
    %p32 = por %p30, %p31
    %p33 = scmp.ne.s32.totalorder %s22, %s25
    %p34 = scmp.eq.s32.totalorder %s17, 1
    %p35 = por %p33, %p34
    %p36 = scmp.ne.s32.totalorder %s25, %s26
    %p37 = scmp.eq.s32.totalorder %s17, 0
    %p38 = por %p36, %p37
    %p39 = scmp.ne.s32.totalorder %s25, %s26
    %p40 = scmp.eq.s32.totalorder %s18, 1
    %p41 = por %p39, %p40
    %p43 = scmp.ne.s32.totalorder %s26, %s42
    %p44 = scmp.eq.s32.totalorder %s18, 0
    %p45 = por %p43, %p44
    %s47 = sadd.s32 %s46, 1
    %p50 = scmp.eq.s32.totalorder %s12, 1
    %p51 = scmp.ne.s32.totalorder %s46, %s48
    %p52 = scmp.eq.s32.totalorder %s12, 0
    %p53 = por %p51, %p52
    %p54 = scmp.ne.s32.totalorder %s46, %s48
    %p55 = scmp.eq.s32.totalorder %s17, 1
    %p56 = por %p54, %p55
    %p57 = scmp.ne.s32.totalorder %s48, %s49
    %p58 = scmp.eq.s32.totalorder %s17, 0
    %p59 = por %p57, %p58
    %p60 = scmp.ne.s32.totalorder %s48, %s49
    %p61 = scmp.eq.s32.totalorder %s18, 1
    %p62 = por %p60, %p61
    %p64 = scmp.ne.s32.totalorder %s49, %s63
    %p65 = scmp.eq.s32.totalorder %s18, 0
    %p66 = por %p64, %p65
    %s68 = sadd.s32 %s67, 1
    %p71 = scmp.eq.s32.totalorder %s12, 1
    %p72 = scmp.ne.s32.totalorder %s67, %s69
    %p73 = scmp.eq.s32.totalorder %s12, 0
    %p74 = por %p72, %p73
    %p75 = scmp.ne.s32.totalorder %s67, %s69
    %p76 = scmp.eq.s32.totalorder %s17, 1
    %p77 = por %p75, %p76
    %p78 = scmp.ne.s32.totalorder %s69, %s70
    %p79 = scmp.eq.s32.totalorder %s17, 0
    %p80 = por %p78, %p79
    %p81 = scmp.ne.s32.totalorder %s69, %s70
    %p82 = scmp.eq.s32.totalorder %s18, 1
    %p83 = por %p81, %p82
    %p85 = scmp.ne.s32.totalorder %s70, %s84
    %p86 = scmp.eq.s32.totalorder %s18, 0
    %p87 = por %p85, %p86
    %s89 = sadd.s32 %s88, 1
    %p92 = scmp.eq.s32.totalorder %s12, 1
    %p93 = scmp.ne.s32.totalorder %s88, %s90
    %p94 = scmp.eq.s32.totalorder %s12, 0
    %p95 = por %p93, %p94
    %p96 = scmp.ne.s32.totalorder %s88, %s90
    %p97 = scmp.eq.s32.totalorder %s17, 1
    %p98 = por %p96, %p97
    %p99 = scmp.ne.s32.totalorder %s90, %s91
    %p100 = scmp.eq.s32.totalorder %s17, 0
    %p101 = por %p99, %p100
    %p102 = scmp.ne.s32.totalorder %s90, %s91
    %p103 = scmp.eq.s32.totalorder %s18, 1
    %p104 = por %p102, %p103
    %p106 = scmp.ne.s32.totalorder %s91, %s105
    %p107 = scmp.eq.s32.totalorder %s18, 0
    %p108 = por %p106, %p107
    %s109 = ssub.s32 %s12, %s19
    %p110 = scmp.eq.s32.totalorder %s109, 0
    %s112 = sadd.s32 %s111, 1
    %s113 = scalar_select %p110, %s111, %s112
    %p116 = pneg %p110
    %p117 = scmp.eq.s32.totalorder %s12, 1
    %p118 = por %p116, %p117
    %p119 = scmp.ne.s32.totalorder %s111, %s114
    %p120 = scmp.eq.s32.totalorder %s12, 0
    %p121 = por %p119, %p120
    %p122 = scmp.ne.s32.totalorder %s111, %s114
    %p123 = scmp.eq.s32.totalorder %s17, 1
    %p124 = por %p122, %p123
    %p125 = scmp.ne.s32.totalorder %s114, %s115
    %p126 = scmp.eq.s32.totalorder %s17, 0
    %p127 = por %p125, %p126
    %p128 = scmp.ne.s32.totalorder %s114, %s115
    %p129 = scmp.eq.s32.totalorder %s18, 1
    %p130 = por %p128, %p129
    %p132 = scmp.ne.s32.totalorder %s115, %s131
    %p133 = scmp.eq.s32.totalorder %s18, 0
    %p134 = por %p132, %p133
    %s135 = ssub.s32 %s12, %s19
    %p136 = scmp.eq.s32.totalorder %s135, 0
    %s138 = sadd.s32 %s137, 1
    %s139 = scalar_select %p136, %s137, %s138
    %p142 = pneg %p136
    %p143 = scmp.eq.s32.totalorder %s12, 1
    %p144 = por %p142, %p143
    %p145 = scmp.ne.s32.totalorder %s137, %s140
    %p146 = scmp.eq.s32.totalorder %s12, 0
    %p147 = por %p145, %p146
    %p148 = scmp.ne.s32.totalorder %s137, %s140
    %p149 = scmp.eq.s32.totalorder %s17, 1
    %p150 = por %p148, %p149
    %p151 = scmp.ne.s32.totalorder %s140, %s141
    %p152 = scmp.eq.s32.totalorder %s17, 0
    %p153 = por %p151, %p152
    %p154 = scmp.ne.s32.totalorder %s140, %s141
    %p155 = scmp.eq.s32.totalorder %s18, 1
    %p156 = por %p154, %p155
    %p158 = scmp.ne.s32.totalorder %s141, %s157
    %p159 = scmp.eq.s32.totalorder %s18, 0
    %p160 = por %p158, %p159
    %p161 = scmp.le.s32.totalorder 1, %s12
    %p162 = scmp.lt.s32.totalorder %s12, 3
    %p163 = pnand %p161, %p162
    %p164 = pneg %p163
    // Predicated region
    $region9: #{residual_block_forward.4} parent=5 // pred_check
      _
    $region10: #{residual_block_forward.4} parent=5 // pred_check_branch
      %166 = sbr.rel (%p163) target = $region12
    $region11: #{residual_block_forward.4} parent=5 // pred_region
      %s167 = ssub.s32 %s12, 1
      // Predicated region
      $region13: #{residual_block_forward.4} parent=11 // pred_check
        %p168 = pneg %p59
      $region14: #{residual_block_forward.4} parent=11 // pred_check_branch
        %170 = sbr.rel (%p168) target = $region16
      $region15: #{residual_block_forward.4} parent=11 // pred_region
        _
      $region16: #{residual_block_forward.4} parent=11 // pred_fallthru
        _
      // Predicated region
      $region17: #{residual_block_forward.4} parent=11 // pred_check
        %p171 = pneg %p80
      $region18: #{residual_block_forward.4} parent=11 // pred_check_branch
        %173 = sbr.rel (%p171) target = $region20
      $region19: #{residual_block_forward.4} parent=11 // pred_region
        _
      $region20: #{residual_block_forward.4} parent=11 // pred_fallthru
        _
      // Predicated region
      $region21: #{residual_block_forward.4} parent=11 // pred_check
        %p174 = pneg %p101
      $region22: #{residual_block_forward.4} parent=11 // pred_check_branch
        %176 = sbr.rel (%p174) target = $region24
      $region23: #{residual_block_forward.4} parent=11 // pred_region
        _
      $region24: #{residual_block_forward.4} parent=11 // pred_fallthru
        _
    $region12: #{residual_block_forward.4} parent=5 // pred_fallthru
      _
    %p177 = scmp.lt.s32.totalorder %s12, 2
    // Predicated region
    $region25: #{residual_block_forward.4} parent=5 // pred_check
      %p178 = pneg %p177
    $region26: #{residual_block_forward.4} parent=5 // pred_check_branch
      %180 = sbr.rel (%p178) target = $region28
    $region27: #{residual_block_forward.4} parent=5 // pred_region
      // Predicated region
      $region29: #{residual_block_forward.4} parent=27 // pred_check
        %p181 = pneg %p32
      $region30: #{residual_block_forward.4} parent=27 // pred_check_branch
        %183 = sbr.rel (%p181) target = $region32
      $region31: #{residual_block_forward.4} parent=27 // pred_region
        %p184 = scmp.lt.s32.totalorder %s12, 1
        %s185 = scalar_select %p184, %s12, 1
        %s186 = smul.addr %s185, 32
        %s187 = smul.addr %s186, 8
        %s188 = scalar_lea.vmem %s0, %s187
      $region32: #{residual_block_forward.4} parent=27 // pred_fallthru
        _
    $region28: #{residual_block_forward.4} parent=5 // pred_fallthru
      _
    %p189 = scmp.le.s32.totalorder 1, %s12
    %p190 = scmp.lt.s32.totalorder %s12, 3
    %p191 = pnand %p189, %p190
    %p192 = pneg %p191
    // Predicated region
    $region33: #{residual_block_forward.4} parent=5 // pred_check
      _
    $region34: #{residual_block_forward.4} parent=5 // pred_check_branch
      %194 = sbr.rel (%p191) target = $region36
    $region35: #{residual_block_forward.4} parent=5 // pred_region
      %s195 = ssub.s32 %s12, 1
      %p196 = scmp.lt.s32.totalorder %s17, 1
      %s197 = scalar_select %p196, %s17, 1
      %s198 = smul.addr %s197, 32
      %s199 = smul.addr %s198, 8
      %s200 = scalar_lea.vmem %s0, %s199
      %p201 = pneg %p38
      %p202 = pneg %p35
      %p203 = pneg %p59
      %p204 = pneg %p56
      %p205 = pneg %p80
      %p206 = pneg %p77
      %p207 = pneg %p101
      %p208 = pneg %p98
      %p209 = pneg %p127
      %p210 = pneg %p124
      %p211 = scmp.lt.s32.totalorder %s17, 1
      %s212 = scalar_select %p211, %s17, 1
      %s213 = smul.addr %s212, 32
      %s214 = smul.addr %s213, 8
      %s215 = scalar_lea.vmem %s4, %s214
      %p216 = pneg %p153
      %p217 = pneg %p150
      %p218 = scmp.lt.s32.totalorder %s17, 1
      %s219 = scalar_select %p218, %s17, 1
      %s220 = smul.addr %s219, 2
      %s221 = scalar_lea.vmem %s5, %s220
      %p222 = scmp.lt.s32.totalorder %s17, 1
      %s223 = scalar_select %p222, %s17, 1
      %s224 = smul.addr %s223, 32
      %s225 = smul.addr %s224, 8
      %s226 = scalar_lea.vmem %s0, %s225
      %p227 = scmp.lt.s32.totalorder %s17, 1
      %s228 = scalar_select %p227, %s17, 1
      %s229 = smul.addr %s228, 32
      %s230 = smul.addr %s229, 8
      %s231 = scalar_lea.vmem %s4, %s230
      %p232 = scmp.lt.s32.totalorder %s17, 1
      %s233 = scalar_select %p232, %s17, 1
      %s234 = smul.addr %s233, 2
      %s235 = scalar_lea.vmem %s5, %s234
      %v237 = vld [vmem:[%s226] sm:$0xff]
      %v238 = vld [vmem:[%s226 + $0x8] sm:$0xff]
      %v239 = vld [vmem:[%s226 + $0x10] sm:$0xff]
      %v240 = vld [vmem:[%s226 + $0x18] sm:$0xff]
      %v241 = vld [vmem:[%s226 + $0x20] sm:$0xff]
      %v242 = vld [vmem:[%s226 + $0x28] sm:$0xff]
      %v243 = vld [vmem:[%s226 + $0x30] sm:$0xff]
      %v244 = vld [vmem:[%s226 + $0x38] sm:$0xff]
      %v245 = vld [vmem:[%s226 + $0x40] sm:$0xff]
      %v246 = vld [vmem:[%s226 + $0x48] sm:$0xff]
      %v247 = vld [vmem:[%s226 + $0x50] sm:$0xff]
      %v248 = vld [vmem:[%s226 + $0x58] sm:$0xff]
      %v249 = vld [vmem:[%s226 + $0x60] sm:$0xff]
      %v250 = vld [vmem:[%s226 + $0x68] sm:$0xff]
      %v251 = vld [vmem:[%s226 + $0x70] sm:$0xff]
      %v252 = vld [vmem:[%s226 + $0x78] sm:$0xff]
      %v253 = vld [vmem:[%s226 + $0x80] sm:$0xff]
      %v254 = vld [vmem:[%s226 + $0x88] sm:$0xff]
      %v255 = vld [vmem:[%s226 + $0x90] sm:$0xff]
      %v256 = vld [vmem:[%s226 + $0x98] sm:$0xff]
      %v257 = vld [vmem:[%s226 + $0xa0] sm:$0xff]
      %v258 = vld [vmem:[%s226 + $0xa8] sm:$0xff]
      %v259 = vld [vmem:[%s226 + $0xb0] sm:$0xff]
      %v260 = vld [vmem:[%s226 + $0xb8] sm:$0xff]
      %v261 = vld [vmem:[%s226 + $0xc0] sm:$0xff]
      %v262 = vld [vmem:[%s226 + $0xc8] sm:$0xff]
      %v263 = vld [vmem:[%s226 + $0xd0] sm:$0xff]
      %v264 = vld [vmem:[%s226 + $0xd8] sm:$0xff]
      %v265 = vld [vmem:[%s226 + $0xe0] sm:$0xff]
      %v266 = vld [vmem:[%s226 + $0xe8] sm:$0xff]
      %v267 = vld [vmem:[%s226 + $0xf0] sm:$0xff]
      %v268 = vld [vmem:[%s226 + $0xf8] sm:$0xff]
      %v269 = vld [vmem:[%s1] sm:$0x1]
      %v271 = vperm.slane %v269, 0
      %v273 = vmul.f32 %v237, %v271
      %v274 = vmul.f32 %v238, %v271
      %v275 = vmul.f32 %v239, %v271
      %v276 = vmul.f32 %v240, %v271
      %v277 = vmul.f32 %v241, %v271
      %v278 = vmul.f32 %v242, %v271
      %v279 = vmul.f32 %v243, %v271
      %v280 = vmul.f32 %v244, %v271
      %v281 = vmul.f32 %v245, %v271
      %v282 = vmul.f32 %v246, %v271
      %v283 = vmul.f32 %v247, %v271
      %v284 = vmul.f32 %v248, %v271
      %v285 = vmul.f32 %v249, %v271
      %v286 = vmul.f32 %v250, %v271
      %v287 = vmul.f32 %v251, %v271
      %v288 = vmul.f32 %v252, %v271
      %v289 = vmul.f32 %v253, %v271
      %v290 = vmul.f32 %v254, %v271
      %v291 = vmul.f32 %v255, %v271
      %v292 = vmul.f32 %v256, %v271
      %v293 = vmul.f32 %v257, %v271
      %v294 = vmul.f32 %v258, %v271
      %v295 = vmul.f32 %v259, %v271
      %v296 = vmul.f32 %v260, %v271
      %v297 = vmul.f32 %v261, %v271
      %v298 = vmul.f32 %v262, %v271
      %v299 = vmul.f32 %v263, %v271
      %v300 = vmul.f32 %v264, %v271
      %v301 = vmul.f32 %v265, %v271
      %v302 = vmul.f32 %v266, %v271
      %v303 = vmul.f32 %v267, %v271
      %v304 = vmul.f32 %v268, %v271
      %v305 = vld [vmem:[%s2] sm:$0x1]
      %v307 = vperm.slane %v305, 0
      %v309 = vadd.f32 %v273, %v307
      %v310 = vadd.f32 %v274, %v307
      %v311 = vadd.f32 %v275, %v307
      %v312 = vadd.f32 %v276, %v307
      %v313 = vadd.f32 %v277, %v307
      %v314 = vadd.f32 %v278, %v307
      %v315 = vadd.f32 %v279, %v307
      %v316 = vadd.f32 %v280, %v307
      %v317 = vadd.f32 %v281, %v307
      %v318 = vadd.f32 %v282, %v307
      %v319 = vadd.f32 %v283, %v307
      %v320 = vadd.f32 %v284, %v307
      %v321 = vadd.f32 %v285, %v307
      %v322 = vadd.f32 %v286, %v307
      %v323 = vadd.f32 %v287, %v307
      %v324 = vadd.f32 %v288, %v307
      %v325 = vadd.f32 %v289, %v307
      %v326 = vadd.f32 %v290, %v307
      %v327 = vadd.f32 %v291, %v307
      %v328 = vadd.f32 %v292, %v307
      %v329 = vadd.f32 %v293, %v307
      %v330 = vadd.f32 %v294, %v307
      %v331 = vadd.f32 %v295, %v307
      %v332 = vadd.f32 %v296, %v307
      %v333 = vadd.f32 %v297, %v307
      %v334 = vadd.f32 %v298, %v307
      %v335 = vadd.f32 %v299, %v307
      %v336 = vadd.f32 %v300, %v307
      %v337 = vadd.f32 %v301, %v307
      %v338 = vadd.f32 %v302, %v307
      %v339 = vadd.f32 %v303, %v307
      %v340 = vadd.f32 %v304, %v307
      %v341 = vmax.f32 %v309, 0.0
      %v342 = vmax.f32 %v310, 0.0
      %v343 = vmax.f32 %v311, 0.0
      %v344 = vmax.f32 %v312, 0.0
      %v345 = vmax.f32 %v313, 0.0
      %v346 = vmax.f32 %v314, 0.0
      %v347 = vmax.f32 %v315, 0.0
      %v348 = vmax.f32 %v316, 0.0
      %v349 = vmax.f32 %v317, 0.0
      %v350 = vmax.f32 %v318, 0.0
      %v351 = vmax.f32 %v319, 0.0
      %v352 = vmax.f32 %v320, 0.0
      %v353 = vmax.f32 %v321, 0.0
      %v354 = vmax.f32 %v322, 0.0
      %v355 = vmax.f32 %v323, 0.0
      %v356 = vmax.f32 %v324, 0.0
      %v357 = vmax.f32 %v325, 0.0
      %v358 = vmax.f32 %v326, 0.0
      %v359 = vmax.f32 %v327, 0.0
      %v360 = vmax.f32 %v328, 0.0
      %v361 = vmax.f32 %v329, 0.0
      %v362 = vmax.f32 %v330, 0.0
      %v363 = vmax.f32 %v331, 0.0
      %v364 = vmax.f32 %v332, 0.0
      %v365 = vmax.f32 %v333, 0.0
      %v366 = vmax.f32 %v334, 0.0
      %v367 = vmax.f32 %v335, 0.0
      %v368 = vmax.f32 %v336, 0.0
      %v369 = vmax.f32 %v337, 0.0
      %v370 = vmax.f32 %v338, 0.0
      %v371 = vmax.f32 %v339, 0.0
      %v372 = vmax.f32 %v340, 0.0
      %vm373 = vcmask 27648
      %374 = vst.msk [vmem:[#allocation2] sm:$0xf] %vm373, 0
      %375 = vst.msk [vmem:[#allocation2 + $0x4] sm:$0xf] %vm373, 0
      %vm376 = vcmask 24576
      %377 = vst.msk [vmem:[#allocation2 + $0x8] sm:$0x1] %vm376, 0
      %378 = vst.msk [vmem:[#allocation2 + $0xc] sm:$0xf] %vm373, 0
      %379 = vst.msk [vmem:[#allocation2 + $0x10] sm:$0xf] %vm373, 0
      %380 = vst.msk [vmem:[#allocation2 + $0x14] sm:$0x1] %vm376, 0
      %381 = vst.msk [vmem:[#allocation2 + $0x18] sm:$0xf] %vm373, 0
      %382 = vst.msk [vmem:[#allocation2 + $0x1c] sm:$0xf] %vm373, 0
      %383 = vst.msk [vmem:[#allocation2 + $0x20] sm:$0x1] %vm376, 0
      %384 = vst.msk [vmem:[#allocation2 + $0x24] sm:$0xf] %vm373, 0
      %385 = vst.msk [vmem:[#allocation2 + $0x28] sm:$0xf] %vm373, 0
      %386 = vst.msk [vmem:[#allocation2 + $0x2c] sm:$0x1] %vm376, 0
      %387 = vst.msk [vmem:[#allocation2 + $0x30] sm:$0xf] %vm373, 0
      %388 = vst.msk [vmem:[#allocation2 + $0x34] sm:$0xf] %vm373, 0
      %389 = vst.msk [vmem:[#allocation2 + $0x38] sm:$0x1] %vm376, 0
      %390 = vst.msk [vmem:[#allocation2 + $0x3c] sm:$0xf] %vm373, 0
      %391 = vst.msk [vmem:[#allocation2 + $0x40] sm:$0xf] %vm373, 0
      %392 = vst.msk [vmem:[#allocation2 + $0x44] sm:$0x1] %vm376, 0
      %393 = vst.msk [vmem:[#allocation2 + $0x48] sm:$0xf] %vm373, 0
      %394 = vst.msk [vmem:[#allocation2 + $0x4c] sm:$0xf] %vm373, 0
      %395 = vst.msk [vmem:[#allocation2 + $0x50] sm:$0x1] %vm376, 0
      %396 = vst.msk [vmem:[#allocation2 + $0x54] sm:$0xf] %vm373, 0
      %397 = vst.msk [vmem:[#allocation2 + $0x58] sm:$0xf] %vm373, 0
      %398 = vst.msk [vmem:[#allocation2 + $0x5c] sm:$0x1] %vm376, 0
      %399 = vst.msk [vmem:[#allocation2 + $0x60] sm:$0xf] %vm373, 0
      %400 = vst.msk [vmem:[#allocation2 + $0x64] sm:$0xf] %vm373, 0
      %401 = vst.msk [vmem:[#allocation2 + $0x68] sm:$0x1] %vm376, 0
      %402 = vst.msk [vmem:[#allocation2 + $0x6c] sm:$0xf] %vm373, 0
      %403 = vst.msk [vmem:[#allocation2 + $0x70] sm:$0xf] %vm373, 0
      %404 = vst.msk [vmem:[#allocation2 + $0x74] sm:$0x1] %vm376, 0
      %405 = vst.msk [vmem:[#allocation2 + $0x78] sm:$0xf] %vm373, 0
      %406 = vst.msk [vmem:[#allocation2 + $0x7c] sm:$0xf] %vm373, 0
      %407 = vst.msk [vmem:[#allocation2 + $0x80] sm:$0x1] %vm376, 0
      %408 = vst.msk [vmem:[#allocation2 + $0x84] sm:$0xf] %vm373, 0
      %409 = vst.msk [vmem:[#allocation2 + $0x88] sm:$0xf] %vm373, 0
      %410 = vst.msk [vmem:[#allocation2 + $0x8c] sm:$0x1] %vm376, 0
      %411 = vst.msk [vmem:[#allocation2 + $0x90] sm:$0xf] %vm373, 0
      %412 = vst.msk [vmem:[#allocation2 + $0x94] sm:$0xf] %vm373, 0
      %413 = vst.msk [vmem:[#allocation2 + $0x98] sm:$0x1] %vm376, 0
      %414 = vst.msk [vmem:[#allocation2 + $0x9c] sm:$0xf] %vm373, 0
      %415 = vst.msk [vmem:[#allocation2 + $0xa0] sm:$0xf] %vm373, 0
      %416 = vst.msk [vmem:[#allocation2 + $0xa4] sm:$0x1] %vm376, 0
      %417 = vst.msk [vmem:[#allocation2 + $0xa8] sm:$0xf] %vm373, 0
      %418 = vst.msk [vmem:[#allocation2 + $0xac] sm:$0xf] %vm373, 0
      %419 = vst.msk [vmem:[#allocation2 + $0xb0] sm:$0x1] %vm376, 0
      %420 = vst.msk [vmem:[#allocation2 + $0xb4] sm:$0xf] %vm373, 0
      %421 = vst.msk [vmem:[#allocation2 + $0xb8] sm:$0xf] %vm373, 0
      %422 = vst.msk [vmem:[#allocation2 + $0xbc] sm:$0x1] %vm376, 0
      %423 = vst.msk [vmem:[#allocation2 + $0xc0] sm:$0xf] %vm373, 0
      %424 = vst.msk [vmem:[#allocation2 + $0xc4] sm:$0xf] %vm373, 0
      %425 = vst.msk [vmem:[#allocation2 + $0xc8] sm:$0x1] %vm376, 0
      %426 = vst.msk [vmem:[#allocation2 + $0xcc] sm:$0xf] %vm373, 0
      %427 = vst.msk [vmem:[#allocation2 + $0xd0] sm:$0xf] %vm373, 0
      %428 = vst.msk [vmem:[#allocation2 + $0xd4] sm:$0x1] %vm376, 0
      %v429 = vpack.c.bf16 %v341, %v341
      %v430 = vpack.c.bf16 %v342, %v342
      %v431 = vpack.c.bf16 %v343, %v343
      %v432 = vpack.c.bf16 %v344, %v344
      %v433 = vpack.c.bf16 %v345, %v345
      %v434 = vpack.c.bf16 %v346, %v346
      %v435 = vpack.c.bf16 %v347, %v347
      %v436 = vpack.c.bf16 %v348, %v348
      %v437 = vpack.c.bf16 %v349, %v349
      %v438 = vpack.c.bf16 %v350, %v350
      %v439 = vpack.c.bf16 %v351, %v351
      %v440 = vpack.c.bf16 %v352, %v352
      %v441 = vpack.c.bf16 %v353, %v353
      %v442 = vpack.c.bf16 %v354, %v354
      %v443 = vpack.c.bf16 %v355, %v355
      %v444 = vpack.c.bf16 %v356, %v356
      %v445 = vpack.c.bf16 %v357, %v357
      %v446 = vpack.c.bf16 %v358, %v358
      %v447 = vpack.c.bf16 %v359, %v359
      %v448 = vpack.c.bf16 %v360, %v360
      %v449 = vpack.c.bf16 %v361, %v361
      %v450 = vpack.c.bf16 %v362, %v362
      %v451 = vpack.c.bf16 %v363, %v363
      %v452 = vpack.c.bf16 %v364, %v364
      %v453 = vpack.c.bf16 %v365, %v365
      %v454 = vpack.c.bf16 %v366, %v366
      %v455 = vpack.c.bf16 %v367, %v367
      %v456 = vpack.c.bf16 %v368, %v368
      %v457 = vpack.c.bf16 %v369, %v369
      %v458 = vpack.c.bf16 %v370, %v370
      %v459 = vpack.c.bf16 %v371, %v371
      %v460 = vpack.c.bf16 %v372, %v372
      %vm461 = vsmask.f32 256
      %vm462 = vsmask.f32 4368
      %vm463 = vmor %vm461, %vm462
      %v465 = vshrl.u32 %v429, 16
      %v467 = vrot.slane %v465, 7
      %v468 = vshll.u32 %v429, 16
      %v470 = vor.u32 %v467, %v468
      %v471 = vrot.slane %v467, 4
      %v473 = vshrl.u32 %v430, 16
      %v475 = vrot.slane %v473, 7
      %v476 = vshll.u32 %v430, 16
      %v478 = vor.u32 %v475, %v476
      %v479 = vsel %vm463, %v471, %v478
      %v480 = vrot.slane %v475, 4
      %v482 = vshrl.u32 %v431, 16
      %v484 = vrot.slane %v482, 7
      %v485 = vshll.u32 %v431, 16
      %v487 = vor.u32 %v484, %v485
      %v488 = vrot.slane %v484, 4
      %v490 = vshrl.u32 %v432, 16
      %v492 = vrot.slane %v490, 7
      %v493 = vshll.u32 %v432, 16
      %v495 = vor.u32 %v492, %v493
      %v496 = vsel %vm463, %v488, %v495
      %v497 = vrot.slane %v492, 4
      %v499 = vshrl.u32 %v433, 16
      %v501 = vrot.slane %v499, 7
      %v502 = vshll.u32 %v433, 16
      %v504 = vor.u32 %v501, %v502
      %v505 = vrot.slane %v501, 4
      %v507 = vshrl.u32 %v434, 16
      %v509 = vrot.slane %v507, 7
      %v510 = vshll.u32 %v434, 16
      %v512 = vor.u32 %v509, %v510
      %v513 = vsel %vm463, %v505, %v512
      %v514 = vrot.slane %v509, 4
      %v516 = vshrl.u32 %v435, 16
      %v518 = vrot.slane %v516, 7
      %v519 = vshll.u32 %v435, 16
      %v521 = vor.u32 %v518, %v519
      %v522 = vrot.slane %v518, 4
      %v524 = vshrl.u32 %v436, 16
      %v526 = vrot.slane %v524, 7
      %v527 = vshll.u32 %v436, 16
      %v529 = vor.u32 %v526, %v527
      %v530 = vsel %vm463, %v522, %v529
      %v531 = vrot.slane %v526, 4
      %v533 = vshrl.u32 %v437, 16
      %v535 = vrot.slane %v533, 7
      %v536 = vshll.u32 %v437, 16
      %v538 = vor.u32 %v535, %v536
      %v539 = vrot.slane %v535, 4
      %v541 = vshrl.u32 %v438, 16
      %v543 = vrot.slane %v541, 7
      %v544 = vshll.u32 %v438, 16
      %v546 = vor.u32 %v543, %v544
      %v547 = vsel %vm463, %v539, %v546
      %v548 = vrot.slane %v543, 4
      %v550 = vshrl.u32 %v439, 16
      %v552 = vrot.slane %v550, 7
      %v553 = vshll.u32 %v439, 16
      %v555 = vor.u32 %v552, %v553
      %v556 = vrot.slane %v552, 4
      %v558 = vshrl.u32 %v440, 16
      %v560 = vrot.slane %v558, 7
      %v561 = vshll.u32 %v440, 16
      %v563 = vor.u32 %v560, %v561
      %v564 = vsel %vm463, %v556, %v563
      %v565 = vrot.slane %v560, 4
      %v567 = vshrl.u32 %v441, 16
      %v569 = vrot.slane %v567, 7
      %v570 = vshll.u32 %v441, 16
      %v572 = vor.u32 %v569, %v570
      %v573 = vrot.slane %v569, 4
      %v575 = vshrl.u32 %v442, 16
      %v577 = vrot.slane %v575, 7
      %v578 = vshll.u32 %v442, 16
      %v580 = vor.u32 %v577, %v578
      %v581 = vsel %vm463, %v573, %v580
      %v582 = vrot.slane %v577, 4
      %v584 = vshrl.u32 %v443, 16
      %v586 = vrot.slane %v584, 7
      %v587 = vshll.u32 %v443, 16
      %v589 = vor.u32 %v586, %v587
      %v590 = vrot.slane %v586, 4
      %v592 = vshrl.u32 %v444, 16
      %v594 = vrot.slane %v592, 7
      %v595 = vshll.u32 %v444, 16
      %v597 = vor.u32 %v594, %v595
      %v598 = vsel %vm463, %v590, %v597
      %v599 = vrot.slane %v594, 4
      %v601 = vshrl.u32 %v445, 16
      %v603 = vrot.slane %v601, 7
      %v604 = vshll.u32 %v445, 16
      %v606 = vor.u32 %v603, %v604
      %v607 = vrot.slane %v603, 4
      %v609 = vshrl.u32 %v446, 16
      %v611 = vrot.slane %v609, 7
      %v612 = vshll.u32 %v446, 16
      %v614 = vor.u32 %v611, %v612
      %v615 = vsel %vm463, %v607, %v614
      %v616 = vrot.slane %v611, 4
      %v618 = vshrl.u32 %v447, 16
      %v620 = vrot.slane %v618, 7
      %v621 = vshll.u32 %v447, 16
      %v623 = vor.u32 %v620, %v621
      %v624 = vrot.slane %v620, 4
      %v626 = vshrl.u32 %v448, 16
      %v628 = vrot.slane %v626, 7
      %v629 = vshll.u32 %v448, 16
      %v631 = vor.u32 %v628, %v629
      %v632 = vsel %vm463, %v624, %v631
      %v633 = vrot.slane %v628, 4
      %v635 = vshrl.u32 %v449, 16
      %v637 = vrot.slane %v635, 7
      %v638 = vshll.u32 %v449, 16
      %v640 = vor.u32 %v637, %v638
      %v641 = vrot.slane %v637, 4
      %v643 = vshrl.u32 %v450, 16
      %v645 = vrot.slane %v643, 7
      %v646 = vshll.u32 %v450, 16
      %v648 = vor.u32 %v645, %v646
      %v649 = vsel %vm463, %v641, %v648
      %v650 = vrot.slane %v645, 4
      %v652 = vshrl.u32 %v451, 16
      %v654 = vrot.slane %v652, 7
      %v655 = vshll.u32 %v451, 16
      %v657 = vor.u32 %v654, %v655
      %v658 = vrot.slane %v654, 4
      %v660 = vshrl.u32 %v452, 16
      %v662 = vrot.slane %v660, 7
      %v663 = vshll.u32 %v452, 16
      %v665 = vor.u32 %v662, %v663
      %v666 = vsel %vm463, %v658, %v665
      %v667 = vrot.slane %v662, 4
      %v669 = vshrl.u32 %v453, 16
      %v671 = vrot.slane %v669, 7
      %v672 = vshll.u32 %v453, 16
      %v674 = vor.u32 %v671, %v672
      %v675 = vrot.slane %v671, 4
      %v677 = vshrl.u32 %v454, 16
      %v679 = vrot.slane %v677, 7
      %v680 = vshll.u32 %v454, 16
      %v682 = vor.u32 %v679, %v680
      %v683 = vsel %vm463, %v675, %v682
      %v684 = vrot.slane %v679, 4
      %v686 = vshrl.u32 %v455, 16
      %v688 = vrot.slane %v686, 7
      %v689 = vshll.u32 %v455, 16
      %v691 = vor.u32 %v688, %v689
      %v692 = vrot.slane %v688, 4
      %v694 = vshrl.u32 %v456, 16
      %v696 = vrot.slane %v694, 7
      %v697 = vshll.u32 %v456, 16
      %v699 = vor.u32 %v696, %v697
      %v700 = vsel %vm463, %v692, %v699
      %v701 = vrot.slane %v696, 4
      %v703 = vshrl.u32 %v457, 16
      %v705 = vrot.slane %v703, 7
      %v706 = vshll.u32 %v457, 16
      %v708 = vor.u32 %v705, %v706
      %v709 = vrot.slane %v705, 4
      %v711 = vshrl.u32 %v458, 16
      %v713 = vrot.slane %v711, 7
      %v714 = vshll.u32 %v458, 16
      %v716 = vor.u32 %v713, %v714
      %v717 = vsel %vm463, %v709, %v716
      %v718 = vrot.slane %v713, 4
      %v720 = vshrl.u32 %v459, 16
      %v722 = vrot.slane %v720, 7
      %v723 = vshll.u32 %v459, 16
      %v725 = vor.u32 %v722, %v723
      %v726 = vrot.slane %v722, 4
      %v728 = vshrl.u32 %v460, 16
      %v730 = vrot.slane %v728, 7
      %v731 = vshll.u32 %v460, 16
      %v733 = vor.u32 %v730, %v731
      %v734 = vsel %vm463, %v726, %v733
      %v735 = vrot.slane %v730, 4
      %s784 = scalar_lea.vmem [#allocation2], 12
      %vm785 = vcmask 27648
      %vm786 = vsmask.f32 7938
      %vm787 = vmand %vm785, %vm786
      %v788 = vld [vmem:[%s784] sm:$0xf]
      %v789 = vsel %vm787, %v470, %v788
      %790 = vst [vmem:[%s784] sm:$0xf] %v789
      %791 = vst.msk [vmem:[%s784 + $0x4] sm:$0xf] %vm373, %v479
      %vm792 = vcmask 24576
      %vm793 = vmand %vm792, %vm461
      %v794 = vld [vmem:[%s784 + $0x8] sm:$0x1]
      %v795 = vsel %vm793, %v480, %v794
      %796 = vst [vmem:[%s784 + $0x8] sm:$0x1] %v795
      %v797 = vld [vmem:[%s784 + $0xc] sm:$0xf]
      %v798 = vsel %vm787, %v487, %v797
      %799 = vst [vmem:[%s784 + $0xc] sm:$0xf] %v798
      %800 = vst.msk [vmem:[%s784 + $0x10] sm:$0xf] %vm373, %v496
      %v801 = vld [vmem:[%s784 + $0x14] sm:$0x1]
      %v802 = vsel %vm793, %v497, %v801
      %803 = vst [vmem:[%s784 + $0x14] sm:$0x1] %v802
      %v804 = vld [vmem:[%s784 + $0x18] sm:$0xf]
      %v805 = vsel %vm787, %v504, %v804
      %806 = vst [vmem:[%s784 + $0x18] sm:$0xf] %v805
      %807 = vst.msk [vmem:[%s784 + $0x1c] sm:$0xf] %vm373, %v513
      %v808 = vld [vmem:[%s784 + $0x20] sm:$0x1]
      %v809 = vsel %vm793, %v514, %v808
      %810 = vst [vmem:[%s784 + $0x20] sm:$0x1] %v809
      %v811 = vld [vmem:[%s784 + $0x24] sm:$0xf]
      %v812 = vsel %vm787, %v521, %v811
      %813 = vst [vmem:[%s784 + $0x24] sm:$0xf] %v812
      %814 = vst.msk [vmem:[%s784 + $0x28] sm:$0xf] %vm373, %v530
      %v815 = vld [vmem:[%s784 + $0x2c] sm:$0x1]
      %v816 = vsel %vm793, %v531, %v815
      %817 = vst [vmem:[%s784 + $0x2c] sm:$0x1] %v816
      %v818 = vld [vmem:[%s784 + $0x30] sm:$0xf]
      %v819 = vsel %vm787, %v538, %v818
      %820 = vst [vmem:[%s784 + $0x30] sm:$0xf] %v819
      %821 = vst.msk [vmem:[%s784 + $0x34] sm:$0xf] %vm373, %v547
      %v822 = vld [vmem:[%s784 + $0x38] sm:$0x1]
      %v823 = vsel %vm793, %v548, %v822
      %824 = vst [vmem:[%s784 + $0x38] sm:$0x1] %v823
      %v825 = vld [vmem:[%s784 + $0x3c] sm:$0xf]
      %v826 = vsel %vm787, %v555, %v825
      %827 = vst [vmem:[%s784 + $0x3c] sm:$0xf] %v826
      %828 = vst.msk [vmem:[%s784 + $0x40] sm:$0xf] %vm373, %v564
      %v829 = vld [vmem:[%s784 + $0x44] sm:$0x1]
      %v830 = vsel %vm793, %v565, %v829
      %831 = vst [vmem:[%s784 + $0x44] sm:$0x1] %v830
      %v832 = vld [vmem:[%s784 + $0x48] sm:$0xf]
      %v833 = vsel %vm787, %v572, %v832
      %834 = vst [vmem:[%s784 + $0x48] sm:$0xf] %v833
      %835 = vst.msk [vmem:[%s784 + $0x4c] sm:$0xf] %vm373, %v581
      %v836 = vld [vmem:[%s784 + $0x50] sm:$0x1]
      %v837 = vsel %vm793, %v582, %v836
      %838 = vst [vmem:[%s784 + $0x50] sm:$0x1] %v837
      %v839 = vld [vmem:[%s784 + $0x54] sm:$0xf]
      %v840 = vsel %vm787, %v589, %v839
      %841 = vst [vmem:[%s784 + $0x54] sm:$0xf] %v840
      %842 = vst.msk [vmem:[%s784 + $0x58] sm:$0xf] %vm373, %v598
      %v843 = vld [vmem:[%s784 + $0x5c] sm:$0x1]
      %v844 = vsel %vm793, %v599, %v843
      %845 = vst [vmem:[%s784 + $0x5c] sm:$0x1] %v844
      %v846 = vld [vmem:[%s784 + $0x60] sm:$0xf]
      %v847 = vsel %vm787, %v606, %v846
      %848 = vst [vmem:[%s784 + $0x60] sm:$0xf] %v847
      %849 = vst.msk [vmem:[%s784 + $0x64] sm:$0xf] %vm373, %v615
      %v850 = vld [vmem:[%s784 + $0x68] sm:$0x1]
      %v851 = vsel %vm793, %v616, %v850
      %852 = vst [vmem:[%s784 + $0x68] sm:$0x1] %v851
      %v853 = vld [vmem:[%s784 + $0x6c] sm:$0xf]
      %v854 = vsel %vm787, %v623, %v853
      %855 = vst [vmem:[%s784 + $0x6c] sm:$0xf] %v854
      %856 = vst.msk [vmem:[%s784 + $0x70] sm:$0xf] %vm373, %v632
      %v857 = vld [vmem:[%s784 + $0x74] sm:$0x1]
      %v858 = vsel %vm793, %v633, %v857
      %859 = vst [vmem:[%s784 + $0x74] sm:$0x1] %v858
      %v860 = vld [vmem:[%s784 + $0x78] sm:$0xf]
      %v861 = vsel %vm787, %v640, %v860
      %862 = vst [vmem:[%s784 + $0x78] sm:$0xf] %v861
      %863 = vst.msk [vmem:[%s784 + $0x7c] sm:$0xf] %vm373, %v649
      %v864 = vld [vmem:[%s784 + $0x80] sm:$0x1]
      %v865 = vsel %vm793, %v650, %v864
      %866 = vst [vmem:[%s784 + $0x80] sm:$0x1] %v865
      %v867 = vld [vmem:[%s784 + $0x84] sm:$0xf]
      %v868 = vsel %vm787, %v657, %v867
      %869 = vst [vmem:[%s784 + $0x84] sm:$0xf] %v868
      %870 = vst.msk [vmem:[%s784 + $0x88] sm:$0xf] %vm373, %v666
      %v871 = vld [vmem:[%s784 + $0x8c] sm:$0x1]
      %v872 = vsel %vm793, %v667, %v871
      %873 = vst [vmem:[%s784 + $0x8c] sm:$0x1] %v872
      %v874 = vld [vmem:[%s784 + $0x90] sm:$0xf]
      %v875 = vsel %vm787, %v674, %v874
      %876 = vst [vmem:[%s784 + $0x90] sm:$0xf] %v875
      %877 = vst.msk [vmem:[%s784 + $0x94] sm:$0xf] %vm373, %v683
      %v878 = vld [vmem:[%s784 + $0x98] sm:$0x1]
      %v879 = vsel %vm793, %v684, %v878
      %880 = vst [vmem:[%s784 + $0x98] sm:$0x1] %v879
      %v881 = vld [vmem:[%s784 + $0x9c] sm:$0xf]
      %v882 = vsel %vm787, %v691, %v881
      %883 = vst [vmem:[%s784 + $0x9c] sm:$0xf] %v882
      %884 = vst.msk [vmem:[%s784 + $0xa0] sm:$0xf] %vm373, %v700
      %v885 = vld [vmem:[%s784 + $0xa4] sm:$0x1]
      %v886 = vsel %vm793, %v701, %v885
      %887 = vst [vmem:[%s784 + $0xa4] sm:$0x1] %v886
      %v888 = vld [vmem:[%s784 + $0xa8] sm:$0xf]
      %v889 = vsel %vm787, %v708, %v888
      %890 = vst [vmem:[%s784 + $0xa8] sm:$0xf] %v889
      %891 = vst.msk [vmem:[%s784 + $0xac] sm:$0xf] %vm373, %v717
      %v892 = vld [vmem:[%s784 + $0xb0] sm:$0x1]
      %v893 = vsel %vm793, %v718, %v892
      %894 = vst [vmem:[%s784 + $0xb0] sm:$0x1] %v893
      %v895 = vld [vmem:[%s784 + $0xb4] sm:$0xf]
      %v896 = vsel %vm787, %v725, %v895
      %897 = vst [vmem:[%s784 + $0xb4] sm:$0xf] %v896
      %898 = vst.msk [vmem:[%s784 + $0xb8] sm:$0xf] %vm373, %v734
      %v899 = vld [vmem:[%s784 + $0xbc] sm:$0x1]
      %v900 = vsel %vm793, %v735, %v899
      %901 = vst [vmem:[%s784 + $0xbc] sm:$0x1] %v900
      %v902 = vld [vmem:[#allocation2] sm:$0xf]
      %v903 = vld [vmem:[#allocation2 + $0x4] sm:$0xf]
      %v904 = vld [vmem:[#allocation2 + $0x8] sm:$0x1]
      %v905 = vld [vmem:[#allocation2 + $0xc] sm:$0xf]
      %v906 = vld [vmem:[#allocation2 + $0x10] sm:$0xf]
      %v907 = vld [vmem:[#allocation2 + $0x14] sm:$0x1]
      %v908 = vld [vmem:[#allocation2 + $0x18] sm:$0xf]
      %v909 = vld [vmem:[#allocation2 + $0x1c] sm:$0xf]
      %v910 = vld [vmem:[#allocation2 + $0x20] sm:$0x1]
      %v911 = vld [vmem:[#allocation2 + $0x24] sm:$0xf]
      %v912 = vld [vmem:[#allocation2 + $0x28] sm:$0xf]
      %v913 = vld [vmem:[#allocation2 + $0x2c] sm:$0x1]
      %v914 = vld [vmem:[#allocation2 + $0x30] sm:$0xf]
      %v915 = vld [vmem:[#allocation2 + $0x34] sm:$0xf]
      %v916 = vld [vmem:[#allocation2 + $0x38] sm:$0x1]
      %v917 = vld [vmem:[#allocation2 + $0x3c] sm:$0xf]
      %v918 = vld [vmem:[#allocation2 + $0x40] sm:$0xf]
      %v919 = vld [vmem:[#allocation2 + $0x44] sm:$0x1]
      %v920 = vld [vmem:[#allocation2 + $0x48] sm:$0xf]
      %v921 = vld [vmem:[#allocation2 + $0x4c] sm:$0xf]
      %v922 = vld [vmem:[#allocation2 + $0x50] sm:$0x1]
      %v923 = vld [vmem:[#allocation2 + $0x54] sm:$0xf]
      %v924 = vld [vmem:[#allocation2 + $0x58] sm:$0xf]
      %v925 = vld [vmem:[#allocation2 + $0x5c] sm:$0x1]
      %v926 = vld [vmem:[#allocation2 + $0x60] sm:$0xf]
      %v927 = vld [vmem:[#allocation2 + $0x64] sm:$0xf]
      %v928 = vld [vmem:[#allocation2 + $0x68] sm:$0x1]
      %v929 = vld [vmem:[#allocation2 + $0x6c] sm:$0xf]
      %v930 = vld [vmem:[#allocation2 + $0x70] sm:$0xf]
      %v931 = vld [vmem:[#allocation2 + $0x74] sm:$0x1]
      %v932 = vld [vmem:[#allocation2 + $0x78] sm:$0xf]
      %v933 = vld [vmem:[#allocation2 + $0x7c] sm:$0xf]
      %v934 = vld [vmem:[#allocation2 + $0x80] sm:$0x1]
      %v935 = vld [vmem:[#allocation2 + $0x84] sm:$0xf]
      %v936 = vld [vmem:[#allocation2 + $0x88] sm:$0xf]
      %v937 = vld [vmem:[#allocation2 + $0x8c] sm:$0x1]
      %v938 = vld [vmem:[#allocation2 + $0x90] sm:$0xf]
      %v939 = vld [vmem:[#allocation2 + $0x94] sm:$0xf]
      %v940 = vld [vmem:[#allocation2 + $0x98] sm:$0x1]
      %v941 = vld [vmem:[#allocation2 + $0x9c] sm:$0xf]
      %v942 = vld [vmem:[#allocation2 + $0xa0] sm:$0xf]
      %v943 = vld [vmem:[#allocation2 + $0xa4] sm:$0x1]
      %v944 = vld [vmem:[#allocation2 + $0xa8] sm:$0xf]
      %v945 = vld [vmem:[#allocation2 + $0xac] sm:$0xf]
      %v946 = vld [vmem:[#allocation2 + $0xb0] sm:$0x1]
      %v947 = vld [vmem:[#allocation2 + $0xb4] sm:$0xf]
      %v948 = vld [vmem:[#allocation2 + $0xb8] sm:$0xf]
      %v949 = vld [vmem:[#allocation2 + $0xbc] sm:$0x1]
      %v950 = vld [vmem:[#allocation2 + $0xc0] sm:$0xf]
      %v951 = vld [vmem:[#allocation2 + $0xc4] sm:$0xf]
      %v952 = vld [vmem:[#allocation2 + $0xc8] sm:$0x1]
      %v953 = vld [vmem:[#allocation2 + $0xcc] sm:$0xf]
      %v954 = vld [vmem:[#allocation2 + $0xd0] sm:$0xf]
      %v955 = vld [vmem:[#allocation2 + $0xd4] sm:$0x1]
      %v956 = vld [vmem:[%s3] sm:$0x3]
      %vm957 = vsmask.f32 3328
      %vm958 = vsmask.f32 7440
      %vm959 = vmor %vm957, %vm958
      %v961 = vshrl.u32 %v902, 16
      %v963 = vrot.slane %v961, 4
      %v964 = vshll.u32 %v902, 16
      %v966 = vrot.slane %v964, 5
      %v967 = vor.u32 %v963, %v966
      %v968 = vrot.slane %v967, 4
      %v970 = vshll.u32 %v903, 16
      %v972 = vrot.slane %v970, 5
      %v973 = vsel %vm959, %v968, %v972
      %v974 = vshrl.u32 %v903, 16
      %v976 = vrot.slane %v974, 4
      %v977 = vor.u32 %v976, %v972
      %v978 = vrot.slane %v977, 4
      %v980 = vshll.u32 %v904, 16
      %v982 = vrot.slane %v980, 5
      %v983 = vsel %vm959, %v978, %v982
      %v985 = vshrl.u32 %v905, 16
      %v987 = vrot.slane %v985, 4
      %v988 = vshll.u32 %v905, 16
      %v990 = vrot.slane %v988, 5
      %v991 = vor.u32 %v987, %v990
      %v992 = vrot.slane %v991, 4
      %v994 = vshll.u32 %v906, 16
      %v996 = vrot.slane %v994, 5
      %v997 = vsel %vm959, %v992, %v996
      %v998 = vshrl.u32 %v906, 16
      %v1000 = vrot.slane %v998, 4
      %v1001 = vor.u32 %v1000, %v996
      %v1002 = vrot.slane %v1001, 4
      %v1004 = vshll.u32 %v907, 16
      %v1006 = vrot.slane %v1004, 5
      %v1007 = vsel %vm959, %v1002, %v1006
      %v1009 = vshrl.u32 %v908, 16
      %v1011 = vrot.slane %v1009, 4
      %v1012 = vshll.u32 %v908, 16
      %v1014 = vrot.slane %v1012, 5
      %v1015 = vor.u32 %v1011, %v1014
      %v1016 = vrot.slane %v1015, 4
      %v1018 = vshll.u32 %v909, 16
      %v1020 = vrot.slane %v1018, 5
      %v1021 = vsel %vm959, %v1016, %v1020
      %v1022 = vshrl.u32 %v909, 16
      %v1024 = vrot.slane %v1022, 4
      %v1025 = vor.u32 %v1024, %v1020
      %v1026 = vrot.slane %v1025, 4
      %v1028 = vshll.u32 %v910, 16
      %v1030 = vrot.slane %v1028, 5
      %v1031 = vsel %vm959, %v1026, %v1030
      %v1033 = vshrl.u32 %v911, 16
      %v1035 = vrot.slane %v1033, 4
      %v1036 = vshll.u32 %v911, 16
      %v1038 = vrot.slane %v1036, 5
      %v1039 = vor.u32 %v1035, %v1038
      %v1040 = vrot.slane %v1039, 4
      %v1042 = vshll.u32 %v912, 16
      %v1044 = vrot.slane %v1042, 5
      %v1045 = vsel %vm959, %v1040, %v1044
      %v1046 = vshrl.u32 %v912, 16
      %v1048 = vrot.slane %v1046, 4
      %v1049 = vor.u32 %v1048, %v1044
      %v1050 = vrot.slane %v1049, 4
      %v1052 = vshll.u32 %v913, 16
      %v1054 = vrot.slane %v1052, 5
      %v1055 = vsel %vm959, %v1050, %v1054
      %v1057 = vshrl.u32 %v914, 16
      %v1059 = vrot.slane %v1057, 4
      %v1060 = vshll.u32 %v914, 16
      %v1062 = vrot.slane %v1060, 5
      %v1063 = vor.u32 %v1059, %v1062
      %v1064 = vrot.slane %v1063, 4
      %v1066 = vshll.u32 %v915, 16
      %v1068 = vrot.slane %v1066, 5
      %v1069 = vsel %vm959, %v1064, %v1068
      %v1070 = vshrl.u32 %v915, 16
      %v1072 = vrot.slane %v1070, 4
      %v1073 = vor.u32 %v1072, %v1068
      %v1074 = vrot.slane %v1073, 4
      %v1076 = vshll.u32 %v916, 16
      %v1078 = vrot.slane %v1076, 5
      %v1079 = vsel %vm959, %v1074, %v1078
      %v1081 = vshrl.u32 %v917, 16
      %v1083 = vrot.slane %v1081, 4
      %v1084 = vshll.u32 %v917, 16
      %v1086 = vrot.slane %v1084, 5
      %v1087 = vor.u32 %v1083, %v1086
      %v1088 = vrot.slane %v1087, 4
      %v1090 = vshll.u32 %v918, 16
      %v1092 = vrot.slane %v1090, 5
      %v1093 = vsel %vm959, %v1088, %v1092
      %v1094 = vshrl.u32 %v918, 16
      %v1096 = vrot.slane %v1094, 4
      %v1097 = vor.u32 %v1096, %v1092
      %v1098 = vrot.slane %v1097, 4
      %v1100 = vshll.u32 %v919, 16
      %v1102 = vrot.slane %v1100, 5
      %v1103 = vsel %vm959, %v1098, %v1102
      %v1105 = vshrl.u32 %v920, 16
      %v1107 = vrot.slane %v1105, 4
      %v1108 = vshll.u32 %v920, 16
      %v1110 = vrot.slane %v1108, 5
      %v1111 = vor.u32 %v1107, %v1110
      %v1112 = vrot.slane %v1111, 4
      %v1114 = vshll.u32 %v921, 16
      %v1116 = vrot.slane %v1114, 5
      %v1117 = vsel %vm959, %v1112, %v1116
      %v1118 = vshrl.u32 %v921, 16
      %v1120 = vrot.slane %v1118, 4
      %v1121 = vor.u32 %v1120, %v1116
      %v1122 = vrot.slane %v1121, 4
      %v1124 = vshll.u32 %v922, 16
      %v1126 = vrot.slane %v1124, 5
      %v1127 = vsel %vm959, %v1122, %v1126
      %v1129 = vshrl.u32 %v923, 16
      %v1131 = vrot.slane %v1129, 4
      %v1132 = vshll.u32 %v923, 16
      %v1134 = vrot.slane %v1132, 5
      %v1135 = vor.u32 %v1131, %v1134
      %v1136 = vrot.slane %v1135, 4
      %v1138 = vshll.u32 %v924, 16
      %v1140 = vrot.slane %v1138, 5
      %v1141 = vsel %vm959, %v1136, %v1140
      %v1142 = vshrl.u32 %v924, 16
      %v1144 = vrot.slane %v1142, 4
      %v1145 = vor.u32 %v1144, %v1140
      %v1146 = vrot.slane %v1145, 4
      %v1148 = vshll.u32 %v925, 16
      %v1150 = vrot.slane %v1148, 5
      %v1151 = vsel %vm959, %v1146, %v1150
      %v1153 = vshrl.u32 %v926, 16
      %v1155 = vrot.slane %v1153, 4
      %v1156 = vshll.u32 %v926, 16
      %v1158 = vrot.slane %v1156, 5
      %v1159 = vor.u32 %v1155, %v1158
      %v1160 = vrot.slane %v1159, 4
      %v1162 = vshll.u32 %v927, 16
      %v1164 = vrot.slane %v1162, 5
      %v1165 = vsel %vm959, %v1160, %v1164
      %v1166 = vshrl.u32 %v927, 16
      %v1168 = vrot.slane %v1166, 4
      %v1169 = vor.u32 %v1168, %v1164
      %v1170 = vrot.slane %v1169, 4
      %v1172 = vshll.u32 %v928, 16
      %v1174 = vrot.slane %v1172, 5
      %v1175 = vsel %vm959, %v1170, %v1174
      %v1177 = vshrl.u32 %v929, 16
      %v1179 = vrot.slane %v1177, 4
      %v1180 = vshll.u32 %v929, 16
      %v1182 = vrot.slane %v1180, 5
      %v1183 = vor.u32 %v1179, %v1182
      %v1184 = vrot.slane %v1183, 4
      %v1186 = vshll.u32 %v930, 16
      %v1188 = vrot.slane %v1186, 5
      %v1189 = vsel %vm959, %v1184, %v1188
      %v1190 = vshrl.u32 %v930, 16
      %v1192 = vrot.slane %v1190, 4
      %v1193 = vor.u32 %v1192, %v1188
      %v1194 = vrot.slane %v1193, 4
      %v1196 = vshll.u32 %v931, 16
      %v1198 = vrot.slane %v1196, 5
      %v1199 = vsel %vm959, %v1194, %v1198
      %v1201 = vshrl.u32 %v932, 16
      %v1203 = vrot.slane %v1201, 4
      %v1204 = vshll.u32 %v932, 16
      %v1206 = vrot.slane %v1204, 5
      %v1207 = vor.u32 %v1203, %v1206
      %v1208 = vrot.slane %v1207, 4
      %v1210 = vshll.u32 %v933, 16
      %v1212 = vrot.slane %v1210, 5
      %v1213 = vsel %vm959, %v1208, %v1212
      %v1214 = vshrl.u32 %v933, 16
      %v1216 = vrot.slane %v1214, 4
      %v1217 = vor.u32 %v1216, %v1212
      %v1218 = vrot.slane %v1217, 4
      %v1220 = vshll.u32 %v934, 16
      %v1222 = vrot.slane %v1220, 5
      %v1223 = vsel %vm959, %v1218, %v1222
      %v1225 = vshrl.u32 %v935, 16
      %v1227 = vrot.slane %v1225, 4
      %v1228 = vshll.u32 %v935, 16
      %v1230 = vrot.slane %v1228, 5
      %v1231 = vor.u32 %v1227, %v1230
      %v1232 = vrot.slane %v1231, 4
      %v1234 = vshll.u32 %v936, 16
      %v1236 = vrot.slane %v1234, 5
      %v1237 = vsel %vm959, %v1232, %v1236
      %v1238 = vshrl.u32 %v936, 16
      %v1240 = vrot.slane %v1238, 4
      %v1241 = vor.u32 %v1240, %v1236
      %v1242 = vrot.slane %v1241, 4
      %v1244 = vshll.u32 %v937, 16
      %v1246 = vrot.slane %v1244, 5
      %v1247 = vsel %vm959, %v1242, %v1246
      %v1249 = vshrl.u32 %v938, 16
      %v1251 = vrot.slane %v1249, 4
      %v1252 = vshll.u32 %v938, 16
      %v1254 = vrot.slane %v1252, 5
      %v1255 = vor.u32 %v1251, %v1254
      %v1256 = vrot.slane %v1255, 4
      %v1258 = vshll.u32 %v939, 16
      %v1260 = vrot.slane %v1258, 5
      %v1261 = vsel %vm959, %v1256, %v1260
      %v1262 = vshrl.u32 %v939, 16
      %v1264 = vrot.slane %v1262, 4
      %v1265 = vor.u32 %v1264, %v1260
      %v1266 = vrot.slane %v1265, 4
      %v1268 = vshll.u32 %v940, 16
      %v1270 = vrot.slane %v1268, 5
      %v1271 = vsel %vm959, %v1266, %v1270
      %v1273 = vshrl.u32 %v941, 16
      %v1275 = vrot.slane %v1273, 4
      %v1276 = vshll.u32 %v941, 16
      %v1278 = vrot.slane %v1276, 5
      %v1279 = vor.u32 %v1275, %v1278
      %v1280 = vrot.slane %v1279, 4
      %v1282 = vshll.u32 %v942, 16
      %v1284 = vrot.slane %v1282, 5
      %v1285 = vsel %vm959, %v1280, %v1284
      %v1286 = vshrl.u32 %v942, 16
      %v1288 = vrot.slane %v1286, 4
      %v1289 = vor.u32 %v1288, %v1284
      %v1290 = vrot.slane %v1289, 4
      %v1292 = vshll.u32 %v943, 16
      %v1294 = vrot.slane %v1292, 5
      %v1295 = vsel %vm959, %v1290, %v1294
      %v1297 = vshrl.u32 %v944, 16
      %v1299 = vrot.slane %v1297, 4
      %v1300 = vshll.u32 %v944, 16
      %v1302 = vrot.slane %v1300, 5
      %v1303 = vor.u32 %v1299, %v1302
      %v1304 = vrot.slane %v1303, 4
      %v1306 = vshll.u32 %v945, 16
      %v1308 = vrot.slane %v1306, 5
      %v1309 = vsel %vm959, %v1304, %v1308
      %v1310 = vshrl.u32 %v945, 16
      %v1312 = vrot.slane %v1310, 4
      %v1313 = vor.u32 %v1312, %v1308
      %v1314 = vrot.slane %v1313, 4
      %v1316 = vshll.u32 %v946, 16
      %v1318 = vrot.slane %v1316, 5
      %v1319 = vsel %vm959, %v1314, %v1318
      %v1321 = vshrl.u32 %v947, 16
      %v1323 = vrot.slane %v1321, 4
      %v1324 = vshll.u32 %v947, 16
      %v1326 = vrot.slane %v1324, 5
      %v1327 = vor.u32 %v1323, %v1326
      %v1328 = vrot.slane %v1327, 4
      %v1330 = vshll.u32 %v948, 16
      %v1332 = vrot.slane %v1330, 5
      %v1333 = vsel %vm959, %v1328, %v1332
      %v1334 = vshrl.u32 %v948, 16
      %v1336 = vrot.slane %v1334, 4
      %v1337 = vor.u32 %v1336, %v1332
      %v1338 = vrot.slane %v1337, 4
      %v1340 = vshll.u32 %v949, 16
      %v1342 = vrot.slane %v1340, 5
      %v1343 = vsel %vm959, %v1338, %v1342
      %s1344 = scalar_lea.vmem %s3, 2
      %v1345 = vld [vmem:[%s1344] sm:$0x3]
      %v1346 = vunpack.c.l.b16 %v973
      %v1347 = vunpack.c.l.b16 %v983
      %v1348 = vunpack.c.l.b16 %v997
      %v1349 = vunpack.c.l.b16 %v1007
      %v1350 = vunpack.c.l.b16 %v1021
      %v1351 = vunpack.c.l.b16 %v1031
      %v1352 = vunpack.c.l.b16 %v1045
      %v1353 = vunpack.c.l.b16 %v1055
      %v1354 = vunpack.c.l.b16 %v1069
      %v1355 = vunpack.c.l.b16 %v1079
      %v1356 = vunpack.c.l.b16 %v1093
      %v1357 = vunpack.c.l.b16 %v1103
      %v1358 = vunpack.c.l.b16 %v1117
      %v1359 = vunpack.c.l.b16 %v1127
      %v1360 = vunpack.c.l.b16 %v1141
      %v1361 = vunpack.c.l.b16 %v1151
      %v1362 = vunpack.c.l.b16 %v1165
      %v1363 = vunpack.c.l.b16 %v1175
      %v1364 = vunpack.c.l.b16 %v1189
      %v1365 = vunpack.c.l.b16 %v1199
      %v1366 = vunpack.c.l.b16 %v1213
      %v1367 = vunpack.c.l.b16 %v1223
      %v1368 = vunpack.c.l.b16 %v1237
      %v1369 = vunpack.c.l.b16 %v1247
      %v1370 = vunpack.c.l.b16 %v1261
      %v1371 = vunpack.c.l.b16 %v1271
      %v1372 = vunpack.c.l.b16 %v1285
      %v1373 = vunpack.c.l.b16 %v1295
      %v1374 = vunpack.c.l.b16 %v1309
      %v1375 = vunpack.c.l.b16 %v1319
      %v1376 = vunpack.c.l.b16 %v1333
      %v1377 = vunpack.c.l.b16 %v1343
      %v1378 = vpack.c.b16 %v1347, %v1346
      %v1379 = vpack.c.b16 %v1349, %v1348
      %v1380 = vpack.c.b16 %v1351, %v1350
      %v1381 = vpack.c.b16 %v1353, %v1352
      %v1382 = vpack.c.b16 %v1355, %v1354
      %v1383 = vpack.c.b16 %v1357, %v1356
      %v1384 = vpack.c.b16 %v1359, %v1358
      %v1385 = vpack.c.b16 %v1361, %v1360
      %v1386 = vpack.c.b16 %v1363, %v1362
      %v1387 = vpack.c.b16 %v1365, %v1364
      %v1388 = vpack.c.b16 %v1367, %v1366
      %v1389 = vpack.c.b16 %v1369, %v1368
      %v1390 = vpack.c.b16 %v1371, %v1370
      %v1391 = vpack.c.b16 %v1373, %v1372
      %v1392 = vpack.c.b16 %v1375, %v1374
      %v1393 = vpack.c.b16 %v1377, %v1376
      %vm1394 = vcmask 31744
      %v1396 = vsel %vm1394, %v1378, 0
      %v1399 = vsel %vm1394, %v1379, 0
      %v1402 = vsel %vm1394, %v1380, 0
      %v1405 = vsel %vm1394, %v1381, 0
      %v1408 = vsel %vm1394, %v1382, 0
      %v1411 = vsel %vm1394, %v1383, 0
      %v1414 = vsel %vm1394, %v1384, 0
      %v1417 = vsel %vm1394, %v1385, 0
      %v1420 = vsel %vm1394, %v1386, 0
      %v1423 = vsel %vm1394, %v1387, 0
      %v1426 = vsel %vm1394, %v1388, 0
      %v1429 = vsel %vm1394, %v1389, 0
      %v1432 = vsel %vm1394, %v1390, 0
      %v1435 = vsel %vm1394, %v1391, 0
      %v1438 = vsel %vm1394, %v1392, 0
      %v1441 = vsel %vm1394, %v1393, 0
      %vm1443 = vcmask 1041408
      %v1445 = vsel %vm1443, %v1345, 0
      %1447 = vmatpush.bf16.msra.mxu0 0
      %1448 = vmatpush.bf16.msra.mxu0 0
      %1449 = vmatpush.bf16.msra.mxu0 0
      %1450 = vmatpush.bf16.msra.mxu0 0
      %1451 = vmatpush.bf16.msra.mxu0 0
      %1452 = vmatpush.bf16.msra.mxu0 0
      %1453 = vmatpush.bf16.msra.mxu0 0
      %1454 = vmatpush.bf16.msra.mxu0 %v1445
      %1455 = vmatmul.bf16.gmra.mxu0 %v1396
      %v1456 = vpop.f32.mrf.mxu0
      %v1457 = vadd.f32 0.0, %v1456
      %v1458 = vpop.f32.mrf.mxu0
      %v1459 = vadd.f32 0.0, %v1458
      %1460 = vmatmul.bf16.gmra.mxu0 %v1399
      %v1461 = vpop.f32.mrf.mxu0
      %v1462 = vadd.f32 0.0, %v1461
      %v1463 = vpop.f32.mrf.mxu0
      %v1464 = vadd.f32 0.0, %v1463
      %1465 = vmatmul.bf16.gmra.mxu0 %v1402
      %v1466 = vpop.f32.mrf.mxu0
      %v1467 = vadd.f32 0.0, %v1466
      %v1468 = vpop.f32.mrf.mxu0
      %v1469 = vadd.f32 0.0, %v1468
      %1470 = vmatmul.bf16.gmra.mxu0 %v1405
      %v1471 = vpop.f32.mrf.mxu0
      %v1472 = vadd.f32 0.0, %v1471
      %v1473 = vpop.f32.mrf.mxu0
      %v1474 = vadd.f32 0.0, %v1473
      %1475 = vmatmul.bf16.gmra.mxu0 %v1408
      %v1476 = vpop.f32.mrf.mxu0
      %v1477 = vadd.f32 0.0, %v1476
      %v1478 = vpop.f32.mrf.mxu0
      %v1479 = vadd.f32 0.0, %v1478
      %1480 = vmatmul.bf16.gmra.mxu0 %v1411
      %v1481 = vpop.f32.mrf.mxu0
      %v1482 = vadd.f32 0.0, %v1481
      %v1483 = vpop.f32.mrf.mxu0
      %v1484 = vadd.f32 0.0, %v1483
      %1485 = vmatmul.bf16.gmra.mxu0 %v1414
      %v1486 = vpop.f32.mrf.mxu0
      %v1487 = vadd.f32 0.0, %v1486
      %v1488 = vpop.f32.mrf.mxu0
      %v1489 = vadd.f32 0.0, %v1488
      %1490 = vmatmul.bf16.gmra.mxu0 %v1417
      %v1491 = vpop.f32.mrf.mxu0
      %v1492 = vadd.f32 0.0, %v1491
      %v1493 = vpop.f32.mrf.mxu0
      %v1494 = vadd.f32 0.0, %v1493
      %1495 = vmatmul.bf16.gmra.mxu0 %v1420
      %v1496 = vpop.f32.mrf.mxu0
      %v1497 = vadd.f32 0.0, %v1496
      %v1498 = vpop.f32.mrf.mxu0
      %v1499 = vadd.f32 0.0, %v1498
      %1500 = vmatmul.bf16.gmra.mxu0 %v1423
      %v1501 = vpop.f32.mrf.mxu0
      %v1502 = vadd.f32 0.0, %v1501
      %v1503 = vpop.f32.mrf.mxu0
      %v1504 = vadd.f32 0.0, %v1503
      %1505 = vmatmul.bf16.gmra.mxu0 %v1426
      %v1506 = vpop.f32.mrf.mxu0
      %v1507 = vadd.f32 0.0, %v1506
      %v1508 = vpop.f32.mrf.mxu0
      %v1509 = vadd.f32 0.0, %v1508
      %1510 = vmatmul.bf16.gmra.mxu0 %v1429
      %v1511 = vpop.f32.mrf.mxu0
      %v1512 = vadd.f32 0.0, %v1511
      %v1513 = vpop.f32.mrf.mxu0
      %v1514 = vadd.f32 0.0, %v1513
      %1515 = vmatmul.bf16.gmra.mxu0 %v1432
      %v1516 = vpop.f32.mrf.mxu0
      %v1517 = vadd.f32 0.0, %v1516
      %v1518 = vpop.f32.mrf.mxu0
      %v1519 = vadd.f32 0.0, %v1518
      %1520 = vmatmul.bf16.gmra.mxu0 %v1435
      %v1521 = vpop.f32.mrf.mxu0
      %v1522 = vadd.f32 0.0, %v1521
      %v1523 = vpop.f32.mrf.mxu0
      %v1524 = vadd.f32 0.0, %v1523
      %1525 = vmatmul.bf16.gmra.mxu0 %v1438
      %v1526 = vpop.f32.mrf.mxu0
      %v1527 = vadd.f32 0.0, %v1526
      %v1528 = vpop.f32.mrf.mxu0
      %v1529 = vadd.f32 0.0, %v1528
      %1530 = vmatmul.bf16.gmra.mxu0 %v1441
      %v1531 = vpop.f32.mrf.mxu0
      %v1532 = vadd.f32 0.0, %v1531
      %v1533 = vpop.f32.mrf.mxu0
      %v1534 = vadd.f32 0.0, %v1533
      %1535 = vdwg.mxu0
      %v1568 = vunpack.c.l.b16 %v902
      %v1569 = vunpack.c.l.b16 %v903
      %v1570 = vunpack.c.l.b16 %v905
      %v1571 = vunpack.c.l.b16 %v906
      %v1572 = vunpack.c.l.b16 %v908
      %v1573 = vunpack.c.l.b16 %v909
      %v1574 = vunpack.c.l.b16 %v911
      %v1575 = vunpack.c.l.b16 %v912
      %v1576 = vunpack.c.l.b16 %v914
      %v1577 = vunpack.c.l.b16 %v915
      %v1578 = vunpack.c.l.b16 %v917
      %v1579 = vunpack.c.l.b16 %v918
      %v1580 = vunpack.c.l.b16 %v920
      %v1581 = vunpack.c.l.b16 %v921
      %v1582 = vunpack.c.l.b16 %v923
      %v1583 = vunpack.c.l.b16 %v924
      %v1584 = vunpack.c.l.b16 %v926
      %v1585 = vunpack.c.l.b16 %v927
      %v1586 = vunpack.c.l.b16 %v929
      %v1587 = vunpack.c.l.b16 %v930
      %v1588 = vunpack.c.l.b16 %v932
      %v1589 = vunpack.c.l.b16 %v933
      %v1590 = vunpack.c.l.b16 %v935
      %v1591 = vunpack.c.l.b16 %v936
      %v1592 = vunpack.c.l.b16 %v938
      %v1593 = vunpack.c.l.b16 %v939
      %v1594 = vunpack.c.l.b16 %v941
      %v1595 = vunpack.c.l.b16 %v942
      %v1596 = vunpack.c.l.b16 %v944
      %v1597 = vunpack.c.l.b16 %v945
      %v1598 = vunpack.c.l.b16 %v947
      %v1599 = vunpack.c.l.b16 %v948
      %v1600 = vpack.c.b16 %v1569, %v1568
      %v1601 = vpack.c.b16 %v1571, %v1570
      %v1602 = vpack.c.b16 %v1573, %v1572
      %v1603 = vpack.c.b16 %v1575, %v1574
      %v1604 = vpack.c.b16 %v1577, %v1576
      %v1605 = vpack.c.b16 %v1579, %v1578
      %v1606 = vpack.c.b16 %v1581, %v1580
      %v1607 = vpack.c.b16 %v1583, %v1582
      %v1608 = vpack.c.b16 %v1585, %v1584
      %v1609 = vpack.c.b16 %v1587, %v1586
      %v1610 = vpack.c.b16 %v1589, %v1588
      %v1611 = vpack.c.b16 %v1591, %v1590
      %v1612 = vpack.c.b16 %v1593, %v1592
      %v1613 = vpack.c.b16 %v1595, %v1594
      %v1614 = vpack.c.b16 %v1597, %v1596
      %v1615 = vpack.c.b16 %v1599, %v1598
      %v1617 = vsel %vm1394, %v1600, 0
      %v1620 = vsel %vm1394, %v1601, 0
      %v1623 = vsel %vm1394, %v1602, 0
      %v1626 = vsel %vm1394, %v1603, 0
      %v1629 = vsel %vm1394, %v1604, 0
      %v1632 = vsel %vm1394, %v1605, 0
      %v1635 = vsel %vm1394, %v1606, 0
      %v1638 = vsel %vm1394, %v1607, 0
      %v1641 = vsel %vm1394, %v1608, 0
      %v1644 = vsel %vm1394, %v1609, 0
      %v1647 = vsel %vm1394, %v1610, 0
      %v1650 = vsel %vm1394, %v1611, 0
      %v1653 = vsel %vm1394, %v1612, 0
      %v1656 = vsel %vm1394, %v1613, 0
      %v1659 = vsel %vm1394, %v1614, 0
      %v1662 = vsel %vm1394, %v1615, 0
      %v1665 = vsel %vm1443, %v956, 0
      %1667 = vmatpush.bf16.msra.mxu0 0
      %1668 = vmatpush.bf16.msra.mxu0 0
      %1669 = vmatpush.bf16.msra.mxu0 0
      %1670 = vmatpush.bf16.msra.mxu0 0
      %1671 = vmatpush.bf16.msra.mxu0 0
      %1672 = vmatpush.bf16.msra.mxu0 0
      %1673 = vmatpush.bf16.msra.mxu0 0
      %1674 = vmatpush.bf16.msra.mxu0 %v1665
      %1675 = vmatmul.bf16.gmra.mxu0 %v1617
      %v1676 = vpop.f32.mrf.mxu0
      %v1677 = vadd.f32 %v1457, %v1676
      %v1678 = vpop.f32.mrf.mxu0
      %v1679 = vadd.f32 %v1459, %v1678
      %1680 = vmatmul.bf16.gmra.mxu0 %v1620
      %v1681 = vpop.f32.mrf.mxu0
      %v1682 = vadd.f32 %v1462, %v1681
      %v1683 = vpop.f32.mrf.mxu0
      %v1684 = vadd.f32 %v1464, %v1683
      %1685 = vmatmul.bf16.gmra.mxu0 %v1623
      %v1686 = vpop.f32.mrf.mxu0
      %v1687 = vadd.f32 %v1467, %v1686
      %v1688 = vpop.f32.mrf.mxu0
      %v1689 = vadd.f32 %v1469, %v1688
      %1690 = vmatmul.bf16.gmra.mxu0 %v1626
      %v1691 = vpop.f32.mrf.mxu0
      %v1692 = vadd.f32 %v1472, %v1691
      %v1693 = vpop.f32.mrf.mxu0
      %v1694 = vadd.f32 %v1474, %v1693
      %1695 = vmatmul.bf16.gmra.mxu0 %v1629
      %v1696 = vpop.f32.mrf.mxu0
      %v1697 = vadd.f32 %v1477, %v1696
      %v1698 = vpop.f32.mrf.mxu0
      %v1699 = vadd.f32 %v1479, %v1698
      %1700 = vmatmul.bf16.gmra.mxu0 %v1632
      %v1701 = vpop.f32.mrf.mxu0
      %v1702 = vadd.f32 %v1482, %v1701
      %v1703 = vpop.f32.mrf.mxu0
      %v1704 = vadd.f32 %v1484, %v1703
      %1705 = vmatmul.bf16.gmra.mxu0 %v1635
      %v1706 = vpop.f32.mrf.mxu0
      %v1707 = vadd.f32 %v1487, %v1706
      %v1708 = vpop.f32.mrf.mxu0
      %v1709 = vadd.f32 %v1489, %v1708
      %1710 = vmatmul.bf16.gmra.mxu0 %v1638
      %v1711 = vpop.f32.mrf.mxu0
      %v1712 = vadd.f32 %v1492, %v1711
      %v1713 = vpop.f32.mrf.mxu0
      %v1714 = vadd.f32 %v1494, %v1713
      %1715 = vmatmul.bf16.gmra.mxu0 %v1641
      %v1716 = vpop.f32.mrf.mxu0
      %v1717 = vadd.f32 %v1497, %v1716
      %v1718 = vpop.f32.mrf.mxu0
      %v1719 = vadd.f32 %v1499, %v1718
      %1720 = vmatmul.bf16.gmra.mxu0 %v1644
      %v1721 = vpop.f32.mrf.mxu0
      %v1722 = vadd.f32 %v1502, %v1721
      %v1723 = vpop.f32.mrf.mxu0
      %v1724 = vadd.f32 %v1504, %v1723
      %1725 = vmatmul.bf16.gmra.mxu0 %v1647
      %v1726 = vpop.f32.mrf.mxu0
      %v1727 = vadd.f32 %v1507, %v1726
      %v1728 = vpop.f32.mrf.mxu0
      %v1729 = vadd.f32 %v1509, %v1728
      %1730 = vmatmul.bf16.gmra.mxu0 %v1650
      %v1731 = vpop.f32.mrf.mxu0
      %v1732 = vadd.f32 %v1512, %v1731
      %v1733 = vpop.f32.mrf.mxu0
      %v1734 = vadd.f32 %v1514, %v1733
      %1735 = vmatmul.bf16.gmra.mxu0 %v1653
      %v1736 = vpop.f32.mrf.mxu0
      %v1737 = vadd.f32 %v1517, %v1736
      %v1738 = vpop.f32.mrf.mxu0
      %v1739 = vadd.f32 %v1519, %v1738
      %1740 = vmatmul.bf16.gmra.mxu0 %v1656
      %v1741 = vpop.f32.mrf.mxu0
      %v1742 = vadd.f32 %v1522, %v1741
      %v1743 = vpop.f32.mrf.mxu0
      %v1744 = vadd.f32 %v1524, %v1743
      %1745 = vmatmul.bf16.gmra.mxu0 %v1659
      %v1746 = vpop.f32.mrf.mxu0
      %v1747 = vadd.f32 %v1527, %v1746
      %v1748 = vpop.f32.mrf.mxu0
      %v1749 = vadd.f32 %v1529, %v1748
      %1750 = vmatmul.bf16.gmra.mxu0 %v1662
      %v1751 = vpop.f32.mrf.mxu0
      %v1752 = vadd.f32 %v1532, %v1751
      %v1753 = vpop.f32.mrf.mxu0
      %v1754 = vadd.f32 %v1534, %v1753
      %1755 = vdwg.mxu0
      %vm1772 = vcmask 1042432
      %vm1773 = vcmask 1046532
      %vm1774 = vmor %vm1772, %vm1773
      %v1775 = vrot.slane %v902, 5
      %v1776 = vrot.slane %v1775, 4
      %v1777 = vrot.slane %v903, 5
      %v1778 = vsel %vm1774, %v1776, %v1777
      %v1779 = vrot.slane %v1777, 4
      %v1780 = vrot.slane %v904, 5
      %v1781 = vsel %vm1774, %v1779, %v1780
      %v1782 = vrot.slane %v905, 5
      %v1783 = vrot.slane %v1782, 4
      %v1784 = vrot.slane %v906, 5
      %v1785 = vsel %vm1774, %v1783, %v1784
      %v1786 = vrot.slane %v1784, 4
      %v1787 = vrot.slane %v907, 5
      %v1788 = vsel %vm1774, %v1786, %v1787
      %v1789 = vrot.slane %v908, 5
      %v1790 = vrot.slane %v1789, 4
      %v1791 = vrot.slane %v909, 5
      %v1792 = vsel %vm1774, %v1790, %v1791
      %v1793 = vrot.slane %v1791, 4
      %v1794 = vrot.slane %v910, 5
      %v1795 = vsel %vm1774, %v1793, %v1794
      %v1796 = vrot.slane %v911, 5
      %v1797 = vrot.slane %v1796, 4
      %v1798 = vrot.slane %v912, 5
      %v1799 = vsel %vm1774, %v1797, %v1798
      %v1800 = vrot.slane %v1798, 4
      %v1801 = vrot.slane %v913, 5
      %v1802 = vsel %vm1774, %v1800, %v1801
      %v1803 = vrot.slane %v914, 5
      %v1804 = vrot.slane %v1803, 4
      %v1805 = vrot.slane %v915, 5
      %v1806 = vsel %vm1774, %v1804, %v1805
      %v1807 = vrot.slane %v1805, 4
      %v1808 = vrot.slane %v916, 5
      %v1809 = vsel %vm1774, %v1807, %v1808
      %v1810 = vrot.slane %v917, 5
      %v1811 = vrot.slane %v1810, 4
      %v1812 = vrot.slane %v918, 5
      %v1813 = vsel %vm1774, %v1811, %v1812
      %v1814 = vrot.slane %v1812, 4
      %v1815 = vrot.slane %v919, 5
      %v1816 = vsel %vm1774, %v1814, %v1815
      %v1817 = vrot.slane %v920, 5
      %v1818 = vrot.slane %v1817, 4
      %v1819 = vrot.slane %v921, 5
      %v1820 = vsel %vm1774, %v1818, %v1819
      %v1821 = vrot.slane %v1819, 4
      %v1822 = vrot.slane %v922, 5
      %v1823 = vsel %vm1774, %v1821, %v1822
      %v1824 = vrot.slane %v923, 5
      %v1825 = vrot.slane %v1824, 4
      %v1826 = vrot.slane %v924, 5
      %v1827 = vsel %vm1774, %v1825, %v1826
      %v1828 = vrot.slane %v1826, 4
      %v1829 = vrot.slane %v925, 5
      %v1830 = vsel %vm1774, %v1828, %v1829
      %v1831 = vrot.slane %v926, 5
      %v1832 = vrot.slane %v1831, 4
      %v1833 = vrot.slane %v927, 5
      %v1834 = vsel %vm1774, %v1832, %v1833
      %v1835 = vrot.slane %v1833, 4
      %v1836 = vrot.slane %v928, 5
      %v1837 = vsel %vm1774, %v1835, %v1836
      %v1838 = vrot.slane %v929, 5
      %v1839 = vrot.slane %v1838, 4
      %v1840 = vrot.slane %v930, 5
      %v1841 = vsel %vm1774, %v1839, %v1840
      %v1842 = vrot.slane %v1840, 4
      %v1843 = vrot.slane %v931, 5
      %v1844 = vsel %vm1774, %v1842, %v1843
      %v1845 = vrot.slane %v932, 5
      %v1846 = vrot.slane %v1845, 4
      %v1847 = vrot.slane %v933, 5
      %v1848 = vsel %vm1774, %v1846, %v1847
      %v1849 = vrot.slane %v1847, 4
      %v1850 = vrot.slane %v934, 5
      %v1851 = vsel %vm1774, %v1849, %v1850
      %v1852 = vrot.slane %v935, 5
      %v1853 = vrot.slane %v1852, 4
      %v1854 = vrot.slane %v936, 5
      %v1855 = vsel %vm1774, %v1853, %v1854
      %v1856 = vrot.slane %v1854, 4
      %v1857 = vrot.slane %v937, 5
      %v1858 = vsel %vm1774, %v1856, %v1857
      %v1859 = vrot.slane %v938, 5
      %v1860 = vrot.slane %v1859, 4
      %v1861 = vrot.slane %v939, 5
      %v1862 = vsel %vm1774, %v1860, %v1861
      %v1863 = vrot.slane %v1861, 4
      %v1864 = vrot.slane %v940, 5
      %v1865 = vsel %vm1774, %v1863, %v1864
      %v1866 = vrot.slane %v941, 5
      %v1867 = vrot.slane %v1866, 4
      %v1868 = vrot.slane %v942, 5
      %v1869 = vsel %vm1774, %v1867, %v1868
      %v1870 = vrot.slane %v1868, 4
      %v1871 = vrot.slane %v943, 5
      %v1872 = vsel %vm1774, %v1870, %v1871
      %v1873 = vrot.slane %v944, 5
      %v1874 = vrot.slane %v1873, 4
      %v1875 = vrot.slane %v945, 5
      %v1876 = vsel %vm1774, %v1874, %v1875
      %v1877 = vrot.slane %v1875, 4
      %v1878 = vrot.slane %v946, 5
      %v1879 = vsel %vm1774, %v1877, %v1878
      %v1880 = vrot.slane %v947, 5
      %v1881 = vrot.slane %v1880, 4
      %v1882 = vrot.slane %v948, 5
      %v1883 = vsel %vm1774, %v1881, %v1882
      %v1884 = vrot.slane %v1882, 4
      %v1885 = vrot.slane %v949, 5
      %v1886 = vsel %vm1774, %v1884, %v1885
      %s1887 = scalar_lea.vmem %s3, 4
      %v1888 = vld [vmem:[%s1887] sm:$0x3]
      %v1889 = vunpack.c.l.b16 %v1778
      %v1890 = vunpack.c.l.b16 %v1781
      %v1891 = vunpack.c.l.b16 %v1785
      %v1892 = vunpack.c.l.b16 %v1788
      %v1893 = vunpack.c.l.b16 %v1792
      %v1894 = vunpack.c.l.b16 %v1795
      %v1895 = vunpack.c.l.b16 %v1799
      %v1896 = vunpack.c.l.b16 %v1802
      %v1897 = vunpack.c.l.b16 %v1806
      %v1898 = vunpack.c.l.b16 %v1809
      %v1899 = vunpack.c.l.b16 %v1813
      %v1900 = vunpack.c.l.b16 %v1816
      %v1901 = vunpack.c.l.b16 %v1820
      %v1902 = vunpack.c.l.b16 %v1823
      %v1903 = vunpack.c.l.b16 %v1827
      %v1904 = vunpack.c.l.b16 %v1830
      %v1905 = vunpack.c.l.b16 %v1834
      %v1906 = vunpack.c.l.b16 %v1837
      %v1907 = vunpack.c.l.b16 %v1841
      %v1908 = vunpack.c.l.b16 %v1844
      %v1909 = vunpack.c.l.b16 %v1848
      %v1910 = vunpack.c.l.b16 %v1851
      %v1911 = vunpack.c.l.b16 %v1855
      %v1912 = vunpack.c.l.b16 %v1858
      %v1913 = vunpack.c.l.b16 %v1862
      %v1914 = vunpack.c.l.b16 %v1865
      %v1915 = vunpack.c.l.b16 %v1869
      %v1916 = vunpack.c.l.b16 %v1872
      %v1917 = vunpack.c.l.b16 %v1876
      %v1918 = vunpack.c.l.b16 %v1879
      %v1919 = vunpack.c.l.b16 %v1883
      %v1920 = vunpack.c.l.b16 %v1886
      %v1921 = vpack.c.b16 %v1890, %v1889
      %v1922 = vpack.c.b16 %v1892, %v1891
      %v1923 = vpack.c.b16 %v1894, %v1893
      %v1924 = vpack.c.b16 %v1896, %v1895
      %v1925 = vpack.c.b16 %v1898, %v1897
      %v1926 = vpack.c.b16 %v1900, %v1899
      %v1927 = vpack.c.b16 %v1902, %v1901
      %v1928 = vpack.c.b16 %v1904, %v1903
      %v1929 = vpack.c.b16 %v1906, %v1905
      %v1930 = vpack.c.b16 %v1908, %v1907
      %v1931 = vpack.c.b16 %v1910, %v1909
      %v1932 = vpack.c.b16 %v1912, %v1911
      %v1933 = vpack.c.b16 %v1914, %v1913
      %v1934 = vpack.c.b16 %v1916, %v1915
      %v1935 = vpack.c.b16 %v1918, %v1917
      %v1936 = vpack.c.b16 %v1920, %v1919
      %v1938 = vsel %vm1394, %v1921, 0
      %v1941 = vsel %vm1394, %v1922, 0
      %v1944 = vsel %vm1394, %v1923, 0
      %v1947 = vsel %vm1394, %v1924, 0
      %v1950 = vsel %vm1394, %v1925, 0
      %v1953 = vsel %vm1394, %v1926, 0
      %v1956 = vsel %vm1394, %v1927, 0
      %v1959 = vsel %vm1394, %v1928, 0
      %v1962 = vsel %vm1394, %v1929, 0
      %v1965 = vsel %vm1394, %v1930, 0
      %v1968 = vsel %vm1394, %v1931, 0
      %v1971 = vsel %vm1394, %v1932, 0
      %v1974 = vsel %vm1394, %v1933, 0
      %v1977 = vsel %vm1394, %v1934, 0
      %v1980 = vsel %vm1394, %v1935, 0
      %v1983 = vsel %vm1394, %v1936, 0
      %v1986 = vsel %vm1443, %v1888, 0
      %1988 = vmatpush.bf16.msra.mxu0 0
      %1989 = vmatpush.bf16.msra.mxu0 0
      %1990 = vmatpush.bf16.msra.mxu0 0
      %1991 = vmatpush.bf16.msra.mxu0 0
      %1992 = vmatpush.bf16.msra.mxu0 0
      %1993 = vmatpush.bf16.msra.mxu0 0
      %1994 = vmatpush.bf16.msra.mxu0 0
      %1995 = vmatpush.bf16.msra.mxu0 %v1986
      %1996 = vmatmul.bf16.gmra.mxu0 %v1938
      %v1997 = vpop.f32.mrf.mxu0
      %v1998 = vadd.f32 0.0, %v1997
      %v1999 = vpop.f32.mrf.mxu0
      %v2000 = vadd.f32 0.0, %v1999
      %2001 = vmatmul.bf16.gmra.mxu0 %v1941
      %v2002 = vpop.f32.mrf.mxu0
      %v2003 = vadd.f32 0.0, %v2002
      %v2004 = vpop.f32.mrf.mxu0
      %v2005 = vadd.f32 0.0, %v2004
      %2006 = vmatmul.bf16.gmra.mxu0 %v1944
      %v2007 = vpop.f32.mrf.mxu0
      %v2008 = vadd.f32 0.0, %v2007
      %v2009 = vpop.f32.mrf.mxu0
      %v2010 = vadd.f32 0.0, %v2009
      %2011 = vmatmul.bf16.gmra.mxu0 %v1947
      %v2012 = vpop.f32.mrf.mxu0
      %v2013 = vadd.f32 0.0, %v2012
      %v2014 = vpop.f32.mrf.mxu0
      %v2015 = vadd.f32 0.0, %v2014
      %2016 = vmatmul.bf16.gmra.mxu0 %v1950
      %v2017 = vpop.f32.mrf.mxu0
      %v2018 = vadd.f32 0.0, %v2017
      %v2019 = vpop.f32.mrf.mxu0
      %v2020 = vadd.f32 0.0, %v2019
      %2021 = vmatmul.bf16.gmra.mxu0 %v1953
      %v2022 = vpop.f32.mrf.mxu0
      %v2023 = vadd.f32 0.0, %v2022
      %v2024 = vpop.f32.mrf.mxu0
      %v2025 = vadd.f32 0.0, %v2024
      %2026 = vmatmul.bf16.gmra.mxu0 %v1956
      %v2027 = vpop.f32.mrf.mxu0
      %v2028 = vadd.f32 0.0, %v2027
      %v2029 = vpop.f32.mrf.mxu0
      %v2030 = vadd.f32 0.0, %v2029
      %2031 = vmatmul.bf16.gmra.mxu0 %v1959
      %v2032 = vpop.f32.mrf.mxu0
      %v2033 = vadd.f32 0.0, %v2032
      %v2034 = vpop.f32.mrf.mxu0
      %v2035 = vadd.f32 0.0, %v2034
      %2036 = vmatmul.bf16.gmra.mxu0 %v1962
      %v2037 = vpop.f32.mrf.mxu0
      %v2038 = vadd.f32 0.0, %v2037
      %v2039 = vpop.f32.mrf.mxu0
      %v2040 = vadd.f32 0.0, %v2039
      %2041 = vmatmul.bf16.gmra.mxu0 %v1965
      %v2042 = vpop.f32.mrf.mxu0
      %v2043 = vadd.f32 0.0, %v2042
      %v2044 = vpop.f32.mrf.mxu0
      %v2045 = vadd.f32 0.0, %v2044
      %2046 = vmatmul.bf16.gmra.mxu0 %v1968
      %v2047 = vpop.f32.mrf.mxu0
      %v2048 = vadd.f32 0.0, %v2047
      %v2049 = vpop.f32.mrf.mxu0
      %v2050 = vadd.f32 0.0, %v2049
      %2051 = vmatmul.bf16.gmra.mxu0 %v1971
      %v2052 = vpop.f32.mrf.mxu0
      %v2053 = vadd.f32 0.0, %v2052
      %v2054 = vpop.f32.mrf.mxu0
      %v2055 = vadd.f32 0.0, %v2054
      %2056 = vmatmul.bf16.gmra.mxu0 %v1974
      %v2057 = vpop.f32.mrf.mxu0
      %v2058 = vadd.f32 0.0, %v2057
      %v2059 = vpop.f32.mrf.mxu0
      %v2060 = vadd.f32 0.0, %v2059
      %2061 = vmatmul.bf16.gmra.mxu0 %v1977
      %v2062 = vpop.f32.mrf.mxu0
      %v2063 = vadd.f32 0.0, %v2062
      %v2064 = vpop.f32.mrf.mxu0
      %v2065 = vadd.f32 0.0, %v2064
      %2066 = vmatmul.bf16.gmra.mxu0 %v1980
      %v2067 = vpop.f32.mrf.mxu0
      %v2068 = vadd.f32 0.0, %v2067
      %v2069 = vpop.f32.mrf.mxu0
      %v2070 = vadd.f32 0.0, %v2069
      %2071 = vmatmul.bf16.gmra.mxu0 %v1983
      %v2072 = vpop.f32.mrf.mxu0
      %v2073 = vadd.f32 0.0, %v2072
      %v2074 = vpop.f32.mrf.mxu0
      %v2075 = vadd.f32 0.0, %v2074
      %2076 = vdwg.mxu0
      %v2077 = vadd.f32 %v1677, %v1998
      %v2078 = vadd.f32 %v1679, %v2000
      %v2079 = vadd.f32 %v1682, %v2003
      %v2080 = vadd.f32 %v1684, %v2005
      %v2081 = vadd.f32 %v1687, %v2008
      %v2082 = vadd.f32 %v1689, %v2010
      %v2083 = vadd.f32 %v1692, %v2013
      %v2084 = vadd.f32 %v1694, %v2015
      %v2085 = vadd.f32 %v1697, %v2018
      %v2086 = vadd.f32 %v1699, %v2020
      %v2087 = vadd.f32 %v1702, %v2023
      %v2088 = vadd.f32 %v1704, %v2025
      %v2089 = vadd.f32 %v1707, %v2028
      %v2090 = vadd.f32 %v1709, %v2030
      %v2091 = vadd.f32 %v1712, %v2033
      %v2092 = vadd.f32 %v1714, %v2035
      %v2093 = vadd.f32 %v1717, %v2038
      %v2094 = vadd.f32 %v1719, %v2040
      %v2095 = vadd.f32 %v1722, %v2043
      %v2096 = vadd.f32 %v1724, %v2045
      %v2097 = vadd.f32 %v1727, %v2048
      %v2098 = vadd.f32 %v1729, %v2050
      %v2099 = vadd.f32 %v1732, %v2053
      %v2100 = vadd.f32 %v1734, %v2055
      %v2101 = vadd.f32 %v1737, %v2058
      %v2102 = vadd.f32 %v1739, %v2060
      %v2103 = vadd.f32 %v1742, %v2063
      %v2104 = vadd.f32 %v1744, %v2065
      %v2105 = vadd.f32 %v1747, %v2068
      %v2106 = vadd.f32 %v1749, %v2070
      %v2107 = vadd.f32 %v1752, %v2073
      %v2108 = vadd.f32 %v1754, %v2075
      %s2109 = scalar_lea.vmem %s3, 6
      %v2110 = vld [vmem:[%s2109] sm:$0x3]
      %v2113 = vunpack.c.l.b16 %v950
      %v2114 = vunpack.c.l.b16 %v951
      %v2115 = vpack.c.b16 %v2114, %v2113
      %v2117 = vsel %vm1394, %v2115, 0
      %v2120 = vsel %vm1443, %v2110, 0
      %2122 = vmatpush.bf16.msra.mxu0 0
      %2123 = vmatpush.bf16.msra.mxu0 0
      %2124 = vmatpush.bf16.msra.mxu0 0
      %2125 = vmatpush.bf16.msra.mxu0 0
      %2126 = vmatpush.bf16.msra.mxu0 0
      %2127 = vmatpush.bf16.msra.mxu0 0
      %2128 = vmatpush.bf16.msra.mxu0 0
      %2129 = vmatpush.bf16.msra.mxu0 %v2120
      %2130 = vmatmul.bf16.gmra.mxu0 %v1620
      %v2131 = vpop.f32.mrf.mxu0
      %v2132 = vadd.f32 0.0, %v2131
      %v2133 = vpop.f32.mrf.mxu0
      %v2134 = vadd.f32 0.0, %v2133
      %2135 = vmatmul.bf16.gmra.mxu0 %v1623
      %v2136 = vpop.f32.mrf.mxu0
      %v2137 = vadd.f32 0.0, %v2136
      %v2138 = vpop.f32.mrf.mxu0
      %v2139 = vadd.f32 0.0, %v2138
      %2140 = vmatmul.bf16.gmra.mxu0 %v1626
      %v2141 = vpop.f32.mrf.mxu0
      %v2142 = vadd.f32 0.0, %v2141
      %v2143 = vpop.f32.mrf.mxu0
      %v2144 = vadd.f32 0.0, %v2143
      %2145 = vmatmul.bf16.gmra.mxu0 %v1629
      %v2146 = vpop.f32.mrf.mxu0
      %v2147 = vadd.f32 0.0, %v2146
      %v2148 = vpop.f32.mrf.mxu0
      %v2149 = vadd.f32 0.0, %v2148
      %2150 = vmatmul.bf16.gmra.mxu0 %v1632
      %v2151 = vpop.f32.mrf.mxu0
      %v2152 = vadd.f32 0.0, %v2151
      %v2153 = vpop.f32.mrf.mxu0
      %v2154 = vadd.f32 0.0, %v2153
      %2155 = vmatmul.bf16.gmra.mxu0 %v1635
      %v2156 = vpop.f32.mrf.mxu0
      %v2157 = vadd.f32 0.0, %v2156
      %v2158 = vpop.f32.mrf.mxu0
      %v2159 = vadd.f32 0.0, %v2158
      %2160 = vmatmul.bf16.gmra.mxu0 %v1638
      %v2161 = vpop.f32.mrf.mxu0
      %v2162 = vadd.f32 0.0, %v2161
      %v2163 = vpop.f32.mrf.mxu0
      %v2164 = vadd.f32 0.0, %v2163
      %2165 = vmatmul.bf16.gmra.mxu0 %v1641
      %v2166 = vpop.f32.mrf.mxu0
      %v2167 = vadd.f32 0.0, %v2166
      %v2168 = vpop.f32.mrf.mxu0
      %v2169 = vadd.f32 0.0, %v2168
      %2170 = vmatmul.bf16.gmra.mxu0 %v1644
      %v2171 = vpop.f32.mrf.mxu0
      %v2172 = vadd.f32 0.0, %v2171
      %v2173 = vpop.f32.mrf.mxu0
      %v2174 = vadd.f32 0.0, %v2173
      %2175 = vmatmul.bf16.gmra.mxu0 %v1647
      %v2176 = vpop.f32.mrf.mxu0
      %v2177 = vadd.f32 0.0, %v2176
      %v2178 = vpop.f32.mrf.mxu0
      %v2179 = vadd.f32 0.0, %v2178
      %2180 = vmatmul.bf16.gmra.mxu0 %v1650
      %v2181 = vpop.f32.mrf.mxu0
      %v2182 = vadd.f32 0.0, %v2181
      %v2183 = vpop.f32.mrf.mxu0
      %v2184 = vadd.f32 0.0, %v2183
      %2185 = vmatmul.bf16.gmra.mxu0 %v1653
      %v2186 = vpop.f32.mrf.mxu0
      %v2187 = vadd.f32 0.0, %v2186
      %v2188 = vpop.f32.mrf.mxu0
      %v2189 = vadd.f32 0.0, %v2188
      %2190 = vmatmul.bf16.gmra.mxu0 %v1656
      %v2191 = vpop.f32.mrf.mxu0
      %v2192 = vadd.f32 0.0, %v2191
      %v2193 = vpop.f32.mrf.mxu0
      %v2194 = vadd.f32 0.0, %v2193
      %2195 = vmatmul.bf16.gmra.mxu0 %v1659
      %v2196 = vpop.f32.mrf.mxu0
      %v2197 = vadd.f32 0.0, %v2196
      %v2198 = vpop.f32.mrf.mxu0
      %v2199 = vadd.f32 0.0, %v2198
      %2200 = vmatmul.bf16.gmra.mxu0 %v1662
      %v2201 = vpop.f32.mrf.mxu0
      %v2202 = vadd.f32 0.0, %v2201
      %v2203 = vpop.f32.mrf.mxu0
      %v2204 = vadd.f32 0.0, %v2203
      %2205 = vmatmul.bf16.gmra.mxu0 %v2117
      %v2206 = vpop.f32.mrf.mxu0
      %v2207 = vadd.f32 0.0, %v2206
      %v2208 = vpop.f32.mrf.mxu0
      %v2209 = vadd.f32 0.0, %v2208
      %2210 = vdwg.mxu0
      %v2211 = vadd.f32 %v2077, %v2132
      %v2212 = vadd.f32 %v2078, %v2134
      %v2213 = vadd.f32 %v2079, %v2137
      %v2214 = vadd.f32 %v2080, %v2139
      %v2215 = vadd.f32 %v2081, %v2142
      %v2216 = vadd.f32 %v2082, %v2144
      %v2217 = vadd.f32 %v2083, %v2147
      %v2218 = vadd.f32 %v2084, %v2149
      %v2219 = vadd.f32 %v2085, %v2152
      %v2220 = vadd.f32 %v2086, %v2154
      %v2221 = vadd.f32 %v2087, %v2157
      %v2222 = vadd.f32 %v2088, %v2159
      %v2223 = vadd.f32 %v2089, %v2162
      %v2224 = vadd.f32 %v2090, %v2164
      %v2225 = vadd.f32 %v2091, %v2167
      %v2226 = vadd.f32 %v2092, %v2169
      %v2227 = vadd.f32 %v2093, %v2172
      %v2228 = vadd.f32 %v2094, %v2174
      %v2229 = vadd.f32 %v2095, %v2177
      %v2230 = vadd.f32 %v2096, %v2179
      %v2231 = vadd.f32 %v2097, %v2182
      %v2232 = vadd.f32 %v2098, %v2184
      %v2233 = vadd.f32 %v2099, %v2187
      %v2234 = vadd.f32 %v2100, %v2189
      %v2235 = vadd.f32 %v2101, %v2192
      %v2236 = vadd.f32 %v2102, %v2194
      %v2237 = vadd.f32 %v2103, %v2197
      %v2238 = vadd.f32 %v2104, %v2199
      %v2239 = vadd.f32 %v2105, %v2202
      %v2240 = vadd.f32 %v2106, %v2204
      %v2241 = vadd.f32 %v2107, %v2207
      %v2242 = vadd.f32 %v2108, %v2209
      %v2244 = vshrl.u32 %v950, 16
      %v2246 = vrot.slane %v2244, 4
      %v2247 = vshll.u32 %v950, 16
      %v2249 = vrot.slane %v2247, 5
      %v2250 = vor.u32 %v2246, %v2249
      %v2251 = vrot.slane %v2250, 4
      %v2253 = vshll.u32 %v951, 16
      %v2255 = vrot.slane %v2253, 5
      %v2256 = vsel %vm959, %v2251, %v2255
      %v2257 = vshrl.u32 %v951, 16
      %v2259 = vrot.slane %v2257, 4
      %v2260 = vor.u32 %v2259, %v2255
      %v2261 = vrot.slane %v2260, 4
      %v2263 = vshll.u32 %v952, 16
      %v2265 = vrot.slane %v2263, 5
      %v2266 = vsel %vm959, %v2261, %v2265
      %s2267 = scalar_lea.vmem %s3, 8
      %v2268 = vld [vmem:[%s2267] sm:$0x3]
      %v2269 = vunpack.c.l.b16 %v2256
      %v2270 = vunpack.c.l.b16 %v2266
      %v2271 = vpack.c.b16 %v2270, %v2269
      %v2273 = vsel %vm1394, %v2271, 0
      %v2276 = vsel %vm1443, %v2268, 0
      %2278 = vmatpush.bf16.msra.mxu0 0
      %2279 = vmatpush.bf16.msra.mxu0 0
      %2280 = vmatpush.bf16.msra.mxu0 0
      %2281 = vmatpush.bf16.msra.mxu0 0
      %2282 = vmatpush.bf16.msra.mxu0 0
      %2283 = vmatpush.bf16.msra.mxu0 0
      %2284 = vmatpush.bf16.msra.mxu0 0
      %2285 = vmatpush.bf16.msra.mxu0 %v2276
      %2286 = vmatmul.bf16.gmra.mxu0 %v1399
      %v2287 = vpop.f32.mrf.mxu0
      %v2288 = vadd.f32 0.0, %v2287
      %v2289 = vpop.f32.mrf.mxu0
      %v2290 = vadd.f32 0.0, %v2289
      %2291 = vmatmul.bf16.gmra.mxu0 %v1402
      %v2292 = vpop.f32.mrf.mxu0
      %v2293 = vadd.f32 0.0, %v2292
      %v2294 = vpop.f32.mrf.mxu0
      %v2295 = vadd.f32 0.0, %v2294
      %2296 = vmatmul.bf16.gmra.mxu0 %v1405
      %v2297 = vpop.f32.mrf.mxu0
      %v2298 = vadd.f32 0.0, %v2297
      %v2299 = vpop.f32.mrf.mxu0
      %v2300 = vadd.f32 0.0, %v2299
      %2301 = vmatmul.bf16.gmra.mxu0 %v1408
      %v2302 = vpop.f32.mrf.mxu0
      %v2303 = vadd.f32 0.0, %v2302
      %v2304 = vpop.f32.mrf.mxu0
      %v2305 = vadd.f32 0.0, %v2304
      %2306 = vmatmul.bf16.gmra.mxu0 %v1411
      %v2307 = vpop.f32.mrf.mxu0
      %v2308 = vadd.f32 0.0, %v2307
      %v2309 = vpop.f32.mrf.mxu0
      %v2310 = vadd.f32 0.0, %v2309
      %2311 = vmatmul.bf16.gmra.mxu0 %v1414
      %v2312 = vpop.f32.mrf.mxu0
      %v2313 = vadd.f32 0.0, %v2312
      %v2314 = vpop.f32.mrf.mxu0
      %v2315 = vadd.f32 0.0, %v2314
      %2316 = vmatmul.bf16.gmra.mxu0 %v1417
      %v2317 = vpop.f32.mrf.mxu0
      %v2318 = vadd.f32 0.0, %v2317
      %v2319 = vpop.f32.mrf.mxu0
      %v2320 = vadd.f32 0.0, %v2319
      %2321 = vmatmul.bf16.gmra.mxu0 %v1420
      %v2322 = vpop.f32.mrf.mxu0
      %v2323 = vadd.f32 0.0, %v2322
      %v2324 = vpop.f32.mrf.mxu0
      %v2325 = vadd.f32 0.0, %v2324
      %2326 = vmatmul.bf16.gmra.mxu0 %v1423
      %v2327 = vpop.f32.mrf.mxu0
      %v2328 = vadd.f32 0.0, %v2327
      %v2329 = vpop.f32.mrf.mxu0
      %v2330 = vadd.f32 0.0, %v2329
      %2331 = vmatmul.bf16.gmra.mxu0 %v1426
      %v2332 = vpop.f32.mrf.mxu0
      %v2333 = vadd.f32 0.0, %v2332
      %v2334 = vpop.f32.mrf.mxu0
      %v2335 = vadd.f32 0.0, %v2334
      %2336 = vmatmul.bf16.gmra.mxu0 %v1429
      %v2337 = vpop.f32.mrf.mxu0
      %v2338 = vadd.f32 0.0, %v2337
      %v2339 = vpop.f32.mrf.mxu0
      %v2340 = vadd.f32 0.0, %v2339
      %2341 = vmatmul.bf16.gmra.mxu0 %v1432
      %v2342 = vpop.f32.mrf.mxu0
      %v2343 = vadd.f32 0.0, %v2342
      %v2344 = vpop.f32.mrf.mxu0
      %v2345 = vadd.f32 0.0, %v2344
      %2346 = vmatmul.bf16.gmra.mxu0 %v1435
      %v2347 = vpop.f32.mrf.mxu0
      %v2348 = vadd.f32 0.0, %v2347
      %v2349 = vpop.f32.mrf.mxu0
      %v2350 = vadd.f32 0.0, %v2349
      %2351 = vmatmul.bf16.gmra.mxu0 %v1438
      %v2352 = vpop.f32.mrf.mxu0
      %v2353 = vadd.f32 0.0, %v2352
      %v2354 = vpop.f32.mrf.mxu0
      %v2355 = vadd.f32 0.0, %v2354
      %2356 = vmatmul.bf16.gmra.mxu0 %v1441
      %v2357 = vpop.f32.mrf.mxu0
      %v2358 = vadd.f32 0.0, %v2357
      %v2359 = vpop.f32.mrf.mxu0
      %v2360 = vadd.f32 0.0, %v2359
      %2361 = vmatmul.bf16.gmra.mxu0 %v2273
      %v2362 = vpop.f32.mrf.mxu0
      %v2363 = vadd.f32 0.0, %v2362
      %v2364 = vpop.f32.mrf.mxu0
      %v2365 = vadd.f32 0.0, %v2364
      %2366 = vdwg.mxu0
      %v2367 = vadd.f32 %v2211, %v2288
      %v2368 = vadd.f32 %v2212, %v2290
      %v2369 = vadd.f32 %v2213, %v2293
      %v2370 = vadd.f32 %v2214, %v2295
      %v2371 = vadd.f32 %v2215, %v2298
      %v2372 = vadd.f32 %v2216, %v2300
      %v2373 = vadd.f32 %v2217, %v2303
      %v2374 = vadd.f32 %v2218, %v2305
      %v2375 = vadd.f32 %v2219, %v2308
      %v2376 = vadd.f32 %v2220, %v2310
      %v2377 = vadd.f32 %v2221, %v2313
      %v2378 = vadd.f32 %v2222, %v2315
      %v2379 = vadd.f32 %v2223, %v2318
      %v2380 = vadd.f32 %v2224, %v2320
      %v2381 = vadd.f32 %v2225, %v2323
      %v2382 = vadd.f32 %v2226, %v2325
      %v2383 = vadd.f32 %v2227, %v2328
      %v2384 = vadd.f32 %v2228, %v2330
      %v2385 = vadd.f32 %v2229, %v2333
      %v2386 = vadd.f32 %v2230, %v2335
      %v2387 = vadd.f32 %v2231, %v2338
      %v2388 = vadd.f32 %v2232, %v2340
      %v2389 = vadd.f32 %v2233, %v2343
      %v2390 = vadd.f32 %v2234, %v2345
      %v2391 = vadd.f32 %v2235, %v2348
      %v2392 = vadd.f32 %v2236, %v2350
      %v2393 = vadd.f32 %v2237, %v2353
      %v2394 = vadd.f32 %v2238, %v2355
      %v2395 = vadd.f32 %v2239, %v2358
      %v2396 = vadd.f32 %v2240, %v2360
      %v2397 = vadd.f32 %v2241, %v2363
      %v2398 = vadd.f32 %v2242, %v2365
      %v2400 = vrot.slane %v950, 5
      %v2401 = vrot.slane %v2400, 4
      %v2402 = vrot.slane %v951, 5
      %v2403 = vsel %vm1774, %v2401, %v2402
      %v2404 = vrot.slane %v2402, 4
      %v2405 = vrot.slane %v952, 5
      %v2406 = vsel %vm1774, %v2404, %v2405
      %s2407 = scalar_lea.vmem %s3, 10
      %v2408 = vld [vmem:[%s2407] sm:$0x3]
      %v2409 = vunpack.c.l.b16 %v2403
      %v2410 = vunpack.c.l.b16 %v2406
      %v2411 = vpack.c.b16 %v2410, %v2409
      %v2413 = vsel %vm1394, %v2411, 0
      %v2416 = vsel %vm1443, %v2408, 0
      %2418 = vmatpush.bf16.msra.mxu0 0
      %2419 = vmatpush.bf16.msra.mxu0 0
      %2420 = vmatpush.bf16.msra.mxu0 0
      %2421 = vmatpush.bf16.msra.mxu0 0
      %2422 = vmatpush.bf16.msra.mxu0 0
      %2423 = vmatpush.bf16.msra.mxu0 0
      %2424 = vmatpush.bf16.msra.mxu0 0
      %2425 = vmatpush.bf16.msra.mxu0 %v2416
      %2426 = vmatmul.bf16.gmra.mxu0 %v1941
      %v2427 = vpop.f32.mrf.mxu0
      %v2428 = vadd.f32 0.0, %v2427
      %v2429 = vpop.f32.mrf.mxu0
      %v2430 = vadd.f32 0.0, %v2429
      %2431 = vmatmul.bf16.gmra.mxu0 %v1944
      %v2432 = vpop.f32.mrf.mxu0
      %v2433 = vadd.f32 0.0, %v2432
      %v2434 = vpop.f32.mrf.mxu0
      %v2435 = vadd.f32 0.0, %v2434
      %2436 = vmatmul.bf16.gmra.mxu0 %v1947
      %v2437 = vpop.f32.mrf.mxu0
      %v2438 = vadd.f32 0.0, %v2437
      %v2439 = vpop.f32.mrf.mxu0
      %v2440 = vadd.f32 0.0, %v2439
      %2441 = vmatmul.bf16.gmra.mxu0 %v1950
      %v2442 = vpop.f32.mrf.mxu0
      %v2443 = vadd.f32 0.0, %v2442
      %v2444 = vpop.f32.mrf.mxu0
      %v2445 = vadd.f32 0.0, %v2444
      %2446 = vmatmul.bf16.gmra.mxu0 %v1953
      %v2447 = vpop.f32.mrf.mxu0
      %v2448 = vadd.f32 0.0, %v2447
      %v2449 = vpop.f32.mrf.mxu0
      %v2450 = vadd.f32 0.0, %v2449
      %2451 = vmatmul.bf16.gmra.mxu0 %v1956
      %v2452 = vpop.f32.mrf.mxu0
      %v2453 = vadd.f32 0.0, %v2452
      %v2454 = vpop.f32.mrf.mxu0
      %v2455 = vadd.f32 0.0, %v2454
      %2456 = vmatmul.bf16.gmra.mxu0 %v1959
      %v2457 = vpop.f32.mrf.mxu0
      %v2458 = vadd.f32 0.0, %v2457
      %v2459 = vpop.f32.mrf.mxu0
      %v2460 = vadd.f32 0.0, %v2459
      %2461 = vmatmul.bf16.gmra.mxu0 %v1962
      %v2462 = vpop.f32.mrf.mxu0
      %v2463 = vadd.f32 0.0, %v2462
      %v2464 = vpop.f32.mrf.mxu0
      %v2465 = vadd.f32 0.0, %v2464
      %2466 = vmatmul.bf16.gmra.mxu0 %v1965
      %v2467 = vpop.f32.mrf.mxu0
      %v2468 = vadd.f32 0.0, %v2467
      %v2469 = vpop.f32.mrf.mxu0
      %v2470 = vadd.f32 0.0, %v2469
      %2471 = vmatmul.bf16.gmra.mxu0 %v1968
      %v2472 = vpop.f32.mrf.mxu0
      %v2473 = vadd.f32 0.0, %v2472
      %v2474 = vpop.f32.mrf.mxu0
      %v2475 = vadd.f32 0.0, %v2474
      %2476 = vmatmul.bf16.gmra.mxu0 %v1971
      %v2477 = vpop.f32.mrf.mxu0
      %v2478 = vadd.f32 0.0, %v2477
      %v2479 = vpop.f32.mrf.mxu0
      %v2480 = vadd.f32 0.0, %v2479
      %2481 = vmatmul.bf16.gmra.mxu0 %v1974
      %v2482 = vpop.f32.mrf.mxu0
      %v2483 = vadd.f32 0.0, %v2482
      %v2484 = vpop.f32.mrf.mxu0
      %v2485 = vadd.f32 0.0, %v2484
      %2486 = vmatmul.bf16.gmra.mxu0 %v1977
      %v2487 = vpop.f32.mrf.mxu0
      %v2488 = vadd.f32 0.0, %v2487
      %v2489 = vpop.f32.mrf.mxu0
      %v2490 = vadd.f32 0.0, %v2489
      %2491 = vmatmul.bf16.gmra.mxu0 %v1980
      %v2492 = vpop.f32.mrf.mxu0
      %v2493 = vadd.f32 0.0, %v2492
      %v2494 = vpop.f32.mrf.mxu0
      %v2495 = vadd.f32 0.0, %v2494
      %2496 = vmatmul.bf16.gmra.mxu0 %v1983
      %v2497 = vpop.f32.mrf.mxu0
      %v2498 = vadd.f32 0.0, %v2497
      %v2499 = vpop.f32.mrf.mxu0
      %v2500 = vadd.f32 0.0, %v2499
      %2501 = vmatmul.bf16.gmra.mxu0 %v2413
      %v2502 = vpop.f32.mrf.mxu0
      %v2503 = vadd.f32 0.0, %v2502
      %v2504 = vpop.f32.mrf.mxu0
      %v2505 = vadd.f32 0.0, %v2504
      %2506 = vdwg.mxu0
      %v2507 = vadd.f32 %v2367, %v2428
      %v2508 = vadd.f32 %v2368, %v2430
      %v2509 = vadd.f32 %v2369, %v2433
      %v2510 = vadd.f32 %v2370, %v2435
      %v2511 = vadd.f32 %v2371, %v2438
      %v2512 = vadd.f32 %v2372, %v2440
      %v2513 = vadd.f32 %v2373, %v2443
      %v2514 = vadd.f32 %v2374, %v2445
      %v2515 = vadd.f32 %v2375, %v2448
      %v2516 = vadd.f32 %v2376, %v2450
      %v2517 = vadd.f32 %v2377, %v2453
      %v2518 = vadd.f32 %v2378, %v2455
      %v2519 = vadd.f32 %v2379, %v2458
      %v2520 = vadd.f32 %v2380, %v2460
      %v2521 = vadd.f32 %v2381, %v2463
      %v2522 = vadd.f32 %v2382, %v2465
      %v2523 = vadd.f32 %v2383, %v2468
      %v2524 = vadd.f32 %v2384, %v2470
      %v2525 = vadd.f32 %v2385, %v2473
      %v2526 = vadd.f32 %v2386, %v2475
      %v2527 = vadd.f32 %v2387, %v2478
      %v2528 = vadd.f32 %v2388, %v2480
      %v2529 = vadd.f32 %v2389, %v2483
      %v2530 = vadd.f32 %v2390, %v2485
      %v2531 = vadd.f32 %v2391, %v2488
      %v2532 = vadd.f32 %v2392, %v2490
      %v2533 = vadd.f32 %v2393, %v2493
      %v2534 = vadd.f32 %v2394, %v2495
      %v2535 = vadd.f32 %v2395, %v2498
      %v2536 = vadd.f32 %v2396, %v2500
      %v2537 = vadd.f32 %v2397, %v2503
      %v2538 = vadd.f32 %v2398, %v2505
      %s2539 = scalar_lea.vmem %s3, 12
      %v2540 = vld [vmem:[%s2539] sm:$0x3]
      %v2543 = vunpack.c.l.b16 %v953
      %v2544 = vunpack.c.l.b16 %v954
      %v2545 = vpack.c.b16 %v2544, %v2543
      %v2547 = vsel %vm1394, %v2545, 0
      %v2550 = vsel %vm1443, %v2540, 0
      %2552 = vmatpush.bf16.msra.mxu0 0
      %2553 = vmatpush.bf16.msra.mxu0 0
      %2554 = vmatpush.bf16.msra.mxu0 0
      %2555 = vmatpush.bf16.msra.mxu0 0
      %2556 = vmatpush.bf16.msra.mxu0 0
      %2557 = vmatpush.bf16.msra.mxu0 0
      %2558 = vmatpush.bf16.msra.mxu0 0
      %2559 = vmatpush.bf16.msra.mxu0 %v2550
      %2560 = vmatmul.bf16.gmra.mxu0 %v1623
      %v2561 = vpop.f32.mrf.mxu0
      %v2562 = vadd.f32 0.0, %v2561
      %v2563 = vpop.f32.mrf.mxu0
      %v2564 = vadd.f32 0.0, %v2563
      %2565 = vmatmul.bf16.gmra.mxu0 %v1626
      %v2566 = vpop.f32.mrf.mxu0
      %v2567 = vadd.f32 0.0, %v2566
      %v2568 = vpop.f32.mrf.mxu0
      %v2569 = vadd.f32 0.0, %v2568
      %2570 = vmatmul.bf16.gmra.mxu0 %v1629
      %v2571 = vpop.f32.mrf.mxu0
      %v2572 = vadd.f32 0.0, %v2571
      %v2573 = vpop.f32.mrf.mxu0
      %v2574 = vadd.f32 0.0, %v2573
      %2575 = vmatmul.bf16.gmra.mxu0 %v1632
      %v2576 = vpop.f32.mrf.mxu0
      %v2577 = vadd.f32 0.0, %v2576
      %v2578 = vpop.f32.mrf.mxu0
      %v2579 = vadd.f32 0.0, %v2578
      %2580 = vmatmul.bf16.gmra.mxu0 %v1635
      %v2581 = vpop.f32.mrf.mxu0
      %v2582 = vadd.f32 0.0, %v2581
      %v2583 = vpop.f32.mrf.mxu0
      %v2584 = vadd.f32 0.0, %v2583
      %2585 = vmatmul.bf16.gmra.mxu0 %v1638
      %v2586 = vpop.f32.mrf.mxu0
      %v2587 = vadd.f32 0.0, %v2586
      %v2588 = vpop.f32.mrf.mxu0
      %v2589 = vadd.f32 0.0, %v2588
      %2590 = vmatmul.bf16.gmra.mxu0 %v1641
      %v2591 = vpop.f32.mrf.mxu0
      %v2592 = vadd.f32 0.0, %v2591
      %v2593 = vpop.f32.mrf.mxu0
      %v2594 = vadd.f32 0.0, %v2593
      %2595 = vmatmul.bf16.gmra.mxu0 %v1644
      %v2596 = vpop.f32.mrf.mxu0
      %v2597 = vadd.f32 0.0, %v2596
      %v2598 = vpop.f32.mrf.mxu0
      %v2599 = vadd.f32 0.0, %v2598
      %2600 = vmatmul.bf16.gmra.mxu0 %v1647
      %v2601 = vpop.f32.mrf.mxu0
      %v2602 = vadd.f32 0.0, %v2601
      %v2603 = vpop.f32.mrf.mxu0
      %v2604 = vadd.f32 0.0, %v2603
      %2605 = vmatmul.bf16.gmra.mxu0 %v1650
      %v2606 = vpop.f32.mrf.mxu0
      %v2607 = vadd.f32 0.0, %v2606
      %v2608 = vpop.f32.mrf.mxu0
      %v2609 = vadd.f32 0.0, %v2608
      %2610 = vmatmul.bf16.gmra.mxu0 %v1653
      %v2611 = vpop.f32.mrf.mxu0
      %v2612 = vadd.f32 0.0, %v2611
      %v2613 = vpop.f32.mrf.mxu0
      %v2614 = vadd.f32 0.0, %v2613
      %2615 = vmatmul.bf16.gmra.mxu0 %v1656
      %v2616 = vpop.f32.mrf.mxu0
      %v2617 = vadd.f32 0.0, %v2616
      %v2618 = vpop.f32.mrf.mxu0
      %v2619 = vadd.f32 0.0, %v2618
      %2620 = vmatmul.bf16.gmra.mxu0 %v1659
      %v2621 = vpop.f32.mrf.mxu0
      %v2622 = vadd.f32 0.0, %v2621
      %v2623 = vpop.f32.mrf.mxu0
      %v2624 = vadd.f32 0.0, %v2623
      %2625 = vmatmul.bf16.gmra.mxu0 %v1662
      %v2626 = vpop.f32.mrf.mxu0
      %v2627 = vadd.f32 0.0, %v2626
      %v2628 = vpop.f32.mrf.mxu0
      %v2629 = vadd.f32 0.0, %v2628
      %2630 = vmatmul.bf16.gmra.mxu0 %v2117
      %v2631 = vpop.f32.mrf.mxu0
      %v2632 = vadd.f32 0.0, %v2631
      %v2633 = vpop.f32.mrf.mxu0
      %v2634 = vadd.f32 0.0, %v2633
      %2635 = vmatmul.bf16.gmra.mxu0 %v2547
      %v2636 = vpop.f32.mrf.mxu0
      %v2637 = vadd.f32 0.0, %v2636
      %v2638 = vpop.f32.mrf.mxu0
      %v2639 = vadd.f32 0.0, %v2638
      %2640 = vdwg.mxu0
      %v2641 = vadd.f32 %v2507, %v2562
      %v2642 = vadd.f32 %v2508, %v2564
      %v2643 = vadd.f32 %v2509, %v2567
      %v2644 = vadd.f32 %v2510, %v2569
      %v2645 = vadd.f32 %v2511, %v2572
      %v2646 = vadd.f32 %v2512, %v2574
      %v2647 = vadd.f32 %v2513, %v2577
      %v2648 = vadd.f32 %v2514, %v2579
      %v2649 = vadd.f32 %v2515, %v2582
      %v2650 = vadd.f32 %v2516, %v2584
      %v2651 = vadd.f32 %v2517, %v2587
      %v2652 = vadd.f32 %v2518, %v2589
      %v2653 = vadd.f32 %v2519, %v2592
      %v2654 = vadd.f32 %v2520, %v2594
      %v2655 = vadd.f32 %v2521, %v2597
      %v2656 = vadd.f32 %v2522, %v2599
      %v2657 = vadd.f32 %v2523, %v2602
      %v2658 = vadd.f32 %v2524, %v2604
      %v2659 = vadd.f32 %v2525, %v2607
      %v2660 = vadd.f32 %v2526, %v2609
      %v2661 = vadd.f32 %v2527, %v2612
      %v2662 = vadd.f32 %v2528, %v2614
      %v2663 = vadd.f32 %v2529, %v2617
      %v2664 = vadd.f32 %v2530, %v2619
      %v2665 = vadd.f32 %v2531, %v2622
      %v2666 = vadd.f32 %v2532, %v2624
      %v2667 = vadd.f32 %v2533, %v2627
      %v2668 = vadd.f32 %v2534, %v2629
      %v2669 = vadd.f32 %v2535, %v2632
      %v2670 = vadd.f32 %v2536, %v2634
      %v2671 = vadd.f32 %v2537, %v2637
      %v2672 = vadd.f32 %v2538, %v2639
      %v2674 = vshrl.u32 %v953, 16
      %v2676 = vrot.slane %v2674, 4
      %v2677 = vshll.u32 %v953, 16
      %v2679 = vrot.slane %v2677, 5
      %v2680 = vor.u32 %v2676, %v2679
      %v2681 = vrot.slane %v2680, 4
      %v2683 = vshll.u32 %v954, 16
      %v2685 = vrot.slane %v2683, 5
      %v2686 = vsel %vm959, %v2681, %v2685
      %v2687 = vshrl.u32 %v954, 16
      %v2689 = vrot.slane %v2687, 4
      %v2690 = vor.u32 %v2689, %v2685
      %v2691 = vrot.slane %v2690, 4
      %v2693 = vshll.u32 %v955, 16
      %v2695 = vrot.slane %v2693, 5
      %v2696 = vsel %vm959, %v2691, %v2695
      %s2697 = scalar_lea.vmem %s3, 14
      %v2698 = vld [vmem:[%s2697] sm:$0x3]
      %v2699 = vunpack.c.l.b16 %v2686
      %v2700 = vunpack.c.l.b16 %v2696
      %v2701 = vpack.c.b16 %v2700, %v2699
      %v2703 = vsel %vm1394, %v2701, 0
      %v2706 = vsel %vm1443, %v2698, 0
      %2708 = vmatpush.bf16.msra.mxu0 0
      %2709 = vmatpush.bf16.msra.mxu0 0
      %2710 = vmatpush.bf16.msra.mxu0 0
      %2711 = vmatpush.bf16.msra.mxu0 0
      %2712 = vmatpush.bf16.msra.mxu0 0
      %2713 = vmatpush.bf16.msra.mxu0 0
      %2714 = vmatpush.bf16.msra.mxu0 0
      %2715 = vmatpush.bf16.msra.mxu0 %v2706
      %2716 = vmatmul.bf16.gmra.mxu0 %v1402
      %v2717 = vpop.f32.mrf.mxu0
      %v2718 = vadd.f32 0.0, %v2717
      %v2719 = vpop.f32.mrf.mxu0
      %v2720 = vadd.f32 0.0, %v2719
      %2721 = vmatmul.bf16.gmra.mxu0 %v1405
      %v2722 = vpop.f32.mrf.mxu0
      %v2723 = vadd.f32 0.0, %v2722
      %v2724 = vpop.f32.mrf.mxu0
      %v2725 = vadd.f32 0.0, %v2724
      %2726 = vmatmul.bf16.gmra.mxu0 %v1408
      %v2727 = vpop.f32.mrf.mxu0
      %v2728 = vadd.f32 0.0, %v2727
      %v2729 = vpop.f32.mrf.mxu0
      %v2730 = vadd.f32 0.0, %v2729
      %2731 = vmatmul.bf16.gmra.mxu0 %v1411
      %v2732 = vpop.f32.mrf.mxu0
      %v2733 = vadd.f32 0.0, %v2732
      %v2734 = vpop.f32.mrf.mxu0
      %v2735 = vadd.f32 0.0, %v2734
      %2736 = vmatmul.bf16.gmra.mxu0 %v1414
      %v2737 = vpop.f32.mrf.mxu0
      %v2738 = vadd.f32 0.0, %v2737
      %v2739 = vpop.f32.mrf.mxu0
      %v2740 = vadd.f32 0.0, %v2739
      %2741 = vmatmul.bf16.gmra.mxu0 %v1417
      %v2742 = vpop.f32.mrf.mxu0
      %v2743 = vadd.f32 0.0, %v2742
      %v2744 = vpop.f32.mrf.mxu0
      %v2745 = vadd.f32 0.0, %v2744
      %2746 = vmatmul.bf16.gmra.mxu0 %v1420
      %v2747 = vpop.f32.mrf.mxu0
      %v2748 = vadd.f32 0.0, %v2747
      %v2749 = vpop.f32.mrf.mxu0
      %v2750 = vadd.f32 0.0, %v2749
      %2751 = vmatmul.bf16.gmra.mxu0 %v1423
      %v2752 = vpop.f32.mrf.mxu0
      %v2753 = vadd.f32 0.0, %v2752
      %v2754 = vpop.f32.mrf.mxu0
      %v2755 = vadd.f32 0.0, %v2754
      %2756 = vmatmul.bf16.gmra.mxu0 %v1426
      %v2757 = vpop.f32.mrf.mxu0
      %v2758 = vadd.f32 0.0, %v2757
      %v2759 = vpop.f32.mrf.mxu0
      %v2760 = vadd.f32 0.0, %v2759
      %2761 = vmatmul.bf16.gmra.mxu0 %v1429
      %v2762 = vpop.f32.mrf.mxu0
      %v2763 = vadd.f32 0.0, %v2762
      %v2764 = vpop.f32.mrf.mxu0
      %v2765 = vadd.f32 0.0, %v2764
      %2766 = vmatmul.bf16.gmra.mxu0 %v1432
      %v2767 = vpop.f32.mrf.mxu0
      %v2768 = vadd.f32 0.0, %v2767
      %v2769 = vpop.f32.mrf.mxu0
      %v2770 = vadd.f32 0.0, %v2769
      %2771 = vmatmul.bf16.gmra.mxu0 %v1435
      %v2772 = vpop.f32.mrf.mxu0
      %v2773 = vadd.f32 0.0, %v2772
      %v2774 = vpop.f32.mrf.mxu0
      %v2775 = vadd.f32 0.0, %v2774
      %2776 = vmatmul.bf16.gmra.mxu0 %v1438
      %v2777 = vpop.f32.mrf.mxu0
      %v2778 = vadd.f32 0.0, %v2777
      %v2779 = vpop.f32.mrf.mxu0
      %v2780 = vadd.f32 0.0, %v2779
      %2781 = vmatmul.bf16.gmra.mxu0 %v1441
      %v2782 = vpop.f32.mrf.mxu0
      %v2783 = vadd.f32 0.0, %v2782
      %v2784 = vpop.f32.mrf.mxu0
      %v2785 = vadd.f32 0.0, %v2784
      %2786 = vmatmul.bf16.gmra.mxu0 %v2273
      %v2787 = vpop.f32.mrf.mxu0
      %v2788 = vadd.f32 0.0, %v2787
      %v2789 = vpop.f32.mrf.mxu0
      %v2790 = vadd.f32 0.0, %v2789
      %2791 = vmatmul.bf16.gmra.mxu0 %v2703
      %v2792 = vpop.f32.mrf.mxu0
      %v2793 = vadd.f32 0.0, %v2792
      %v2794 = vpop.f32.mrf.mxu0
      %v2795 = vadd.f32 0.0, %v2794
      %2796 = vdwg.mxu0
      %v2797 = vadd.f32 %v2641, %v2718
      %v2798 = vadd.f32 %v2642, %v2720
      %v2799 = vadd.f32 %v2643, %v2723
      %v2800 = vadd.f32 %v2644, %v2725
      %v2801 = vadd.f32 %v2645, %v2728
      %v2802 = vadd.f32 %v2646, %v2730
      %v2803 = vadd.f32 %v2647, %v2733
      %v2804 = vadd.f32 %v2648, %v2735
      %v2805 = vadd.f32 %v2649, %v2738
      %v2806 = vadd.f32 %v2650, %v2740
      %v2807 = vadd.f32 %v2651, %v2743
      %v2808 = vadd.f32 %v2652, %v2745
      %v2809 = vadd.f32 %v2653, %v2748
      %v2810 = vadd.f32 %v2654, %v2750
      %v2811 = vadd.f32 %v2655, %v2753
      %v2812 = vadd.f32 %v2656, %v2755
      %v2813 = vadd.f32 %v2657, %v2758
      %v2814 = vadd.f32 %v2658, %v2760
      %v2815 = vadd.f32 %v2659, %v2763
      %v2816 = vadd.f32 %v2660, %v2765
      %v2817 = vadd.f32 %v2661, %v2768
      %v2818 = vadd.f32 %v2662, %v2770
      %v2819 = vadd.f32 %v2663, %v2773
      %v2820 = vadd.f32 %v2664, %v2775
      %v2821 = vadd.f32 %v2665, %v2778
      %v2822 = vadd.f32 %v2666, %v2780
      %v2823 = vadd.f32 %v2667, %v2783
      %v2824 = vadd.f32 %v2668, %v2785
      %v2825 = vadd.f32 %v2669, %v2788
      %v2826 = vadd.f32 %v2670, %v2790
      %v2827 = vadd.f32 %v2671, %v2793
      %v2828 = vadd.f32 %v2672, %v2795
      %v2830 = vrot.slane %v953, 5
      %v2831 = vrot.slane %v2830, 4
      %v2832 = vrot.slane %v954, 5
      %v2833 = vsel %vm1774, %v2831, %v2832
      %v2834 = vrot.slane %v2832, 4
      %v2835 = vrot.slane %v955, 5
      %v2836 = vsel %vm1774, %v2834, %v2835
      %s2837 = scalar_lea.vmem %s3, 16
      %v2838 = vld [vmem:[%s2837] sm:$0x3]
      %v2839 = vunpack.c.l.b16 %v2833
      %v2840 = vunpack.c.l.b16 %v2836
      %v2841 = vpack.c.b16 %v2840, %v2839
      %v2843 = vsel %vm1394, %v2841, 0
      %v2846 = vsel %vm1443, %v2838, 0
      %2848 = vmatpush.bf16.msra.mxu0 0
      %2849 = vmatpush.bf16.msra.mxu0 0
      %2850 = vmatpush.bf16.msra.mxu0 0
      %2851 = vmatpush.bf16.msra.mxu0 0
      %2852 = vmatpush.bf16.msra.mxu0 0
      %2853 = vmatpush.bf16.msra.mxu0 0
      %2854 = vmatpush.bf16.msra.mxu0 0
      %2855 = vmatpush.bf16.msra.mxu0 %v2846
      %2856 = vmatmul.bf16.gmra.mxu0 %v1944
      %v2857 = vpop.f32.mrf.mxu0
      %v2858 = vadd.f32 0.0, %v2857
      %v2859 = vpop.f32.mrf.mxu0
      %v2860 = vadd.f32 0.0, %v2859
      %2861 = vmatmul.bf16.gmra.mxu0 %v1947
      %v2862 = vpop.f32.mrf.mxu0
      %v2863 = vadd.f32 0.0, %v2862
      %v2864 = vpop.f32.mrf.mxu0
      %v2865 = vadd.f32 0.0, %v2864
      %2866 = vmatmul.bf16.gmra.mxu0 %v1950
      %v2867 = vpop.f32.mrf.mxu0
      %v2868 = vadd.f32 0.0, %v2867
      %v2869 = vpop.f32.mrf.mxu0
      %v2870 = vadd.f32 0.0, %v2869
      %2871 = vmatmul.bf16.gmra.mxu0 %v1953
      %v2872 = vpop.f32.mrf.mxu0
      %v2873 = vadd.f32 0.0, %v2872
      %v2874 = vpop.f32.mrf.mxu0
      %v2875 = vadd.f32 0.0, %v2874
      %2876 = vmatmul.bf16.gmra.mxu0 %v1956
      %v2877 = vpop.f32.mrf.mxu0
      %v2878 = vadd.f32 0.0, %v2877
      %v2879 = vpop.f32.mrf.mxu0
      %v2880 = vadd.f32 0.0, %v2879
      %2881 = vmatmul.bf16.gmra.mxu0 %v1959
      %v2882 = vpop.f32.mrf.mxu0
      %v2883 = vadd.f32 0.0, %v2882
      %v2884 = vpop.f32.mrf.mxu0
      %v2885 = vadd.f32 0.0, %v2884
      %2886 = vmatmul.bf16.gmra.mxu0 %v1962
      %v2887 = vpop.f32.mrf.mxu0
      %v2888 = vadd.f32 0.0, %v2887
      %v2889 = vpop.f32.mrf.mxu0
      %v2890 = vadd.f32 0.0, %v2889
      %2891 = vmatmul.bf16.gmra.mxu0 %v1965
      %v2892 = vpop.f32.mrf.mxu0
      %v2893 = vadd.f32 0.0, %v2892
      %v2894 = vpop.f32.mrf.mxu0
      %v2895 = vadd.f32 0.0, %v2894
      %2896 = vmatmul.bf16.gmra.mxu0 %v1968
      %v2897 = vpop.f32.mrf.mxu0
      %v2898 = vadd.f32 0.0, %v2897
      %v2899 = vpop.f32.mrf.mxu0
      %v2900 = vadd.f32 0.0, %v2899
      %2901 = vmatmul.bf16.gmra.mxu0 %v1971
      %v2902 = vpop.f32.mrf.mxu0
      %v2903 = vadd.f32 0.0, %v2902
      %v2904 = vpop.f32.mrf.mxu0
      %v2905 = vadd.f32 0.0, %v2904
      %2906 = vmatmul.bf16.gmra.mxu0 %v1974
      %v2907 = vpop.f32.mrf.mxu0
      %v2908 = vadd.f32 0.0, %v2907
      %v2909 = vpop.f32.mrf.mxu0
      %v2910 = vadd.f32 0.0, %v2909
      %2911 = vmatmul.bf16.gmra.mxu0 %v1977
      %v2912 = vpop.f32.mrf.mxu0
      %v2913 = vadd.f32 0.0, %v2912
      %v2914 = vpop.f32.mrf.mxu0
      %v2915 = vadd.f32 0.0, %v2914
      %2916 = vmatmul.bf16.gmra.mxu0 %v1980
      %v2917 = vpop.f32.mrf.mxu0
      %v2918 = vadd.f32 0.0, %v2917
      %v2919 = vpop.f32.mrf.mxu0
      %v2920 = vadd.f32 0.0, %v2919
      %2921 = vmatmul.bf16.gmra.mxu0 %v1983
      %v2922 = vpop.f32.mrf.mxu0
      %v2923 = vadd.f32 0.0, %v2922
      %v2924 = vpop.f32.mrf.mxu0
      %v2925 = vadd.f32 0.0, %v2924
      %2926 = vmatmul.bf16.gmra.mxu0 %v2413
      %v2927 = vpop.f32.mrf.mxu0
      %v2928 = vadd.f32 0.0, %v2927
      %v2929 = vpop.f32.mrf.mxu0
      %v2930 = vadd.f32 0.0, %v2929
      %2931 = vmatmul.bf16.gmra.mxu0 %v2843
      %v2932 = vpop.f32.mrf.mxu0
      %v2933 = vadd.f32 0.0, %v2932
      %v2934 = vpop.f32.mrf.mxu0
      %v2935 = vadd.f32 0.0, %v2934
      %2936 = vdwg.mxu0
      %v2937 = vadd.f32 %v2797, %v2858
      %v2938 = vadd.f32 %v2798, %v2860
      %v2939 = vadd.f32 %v2799, %v2863
      %v2940 = vadd.f32 %v2800, %v2865
      %v2941 = vadd.f32 %v2801, %v2868
      %v2942 = vadd.f32 %v2802, %v2870
      %v2943 = vadd.f32 %v2803, %v2873
      %v2944 = vadd.f32 %v2804, %v2875
      %v2945 = vadd.f32 %v2805, %v2878
      %v2946 = vadd.f32 %v2806, %v2880
      %v2947 = vadd.f32 %v2807, %v2883
      %v2948 = vadd.f32 %v2808, %v2885
      %v2949 = vadd.f32 %v2809, %v2888
      %v2950 = vadd.f32 %v2810, %v2890
      %v2951 = vadd.f32 %v2811, %v2893
      %v2952 = vadd.f32 %v2812, %v2895
      %v2953 = vadd.f32 %v2813, %v2898
      %v2954 = vadd.f32 %v2814, %v2900
      %v2955 = vadd.f32 %v2815, %v2903
      %v2956 = vadd.f32 %v2816, %v2905
      %v2957 = vadd.f32 %v2817, %v2908
      %v2958 = vadd.f32 %v2818, %v2910
      %v2959 = vadd.f32 %v2819, %v2913
      %v2960 = vadd.f32 %v2820, %v2915
      %v2961 = vadd.f32 %v2821, %v2918
      %v2962 = vadd.f32 %v2822, %v2920
      %v2963 = vadd.f32 %v2823, %v2923
      %v2964 = vadd.f32 %v2824, %v2925
      %v2965 = vadd.f32 %v2825, %v2928
      %v2966 = vadd.f32 %v2826, %v2930
      %v2967 = vadd.f32 %v2827, %v2933
      %v2968 = vadd.f32 %v2828, %v2935
      %2969 = vst.msk [vmem:[%s231] sm:$0xff] %vm1394, %v2937
      %2970 = vst.msk [vmem:[%s231 + $0x8] sm:$0xff] %vm1394, %v2938
      %2971 = vst.msk [vmem:[%s231 + $0x10] sm:$0xff] %vm1394, %v2939
      %2972 = vst.msk [vmem:[%s231 + $0x18] sm:$0xff] %vm1394, %v2940
      %2973 = vst.msk [vmem:[%s231 + $0x20] sm:$0xff] %vm1394, %v2941
      %2974 = vst.msk [vmem:[%s231 + $0x28] sm:$0xff] %vm1394, %v2942
      %2975 = vst.msk [vmem:[%s231 + $0x30] sm:$0xff] %vm1394, %v2943
      %2976 = vst.msk [vmem:[%s231 + $0x38] sm:$0xff] %vm1394, %v2944
      %2977 = vst.msk [vmem:[%s231 + $0x40] sm:$0xff] %vm1394, %v2945
      %2978 = vst.msk [vmem:[%s231 + $0x48] sm:$0xff] %vm1394, %v2946
      %2979 = vst.msk [vmem:[%s231 + $0x50] sm:$0xff] %vm1394, %v2947
      %2980 = vst.msk [vmem:[%s231 + $0x58] sm:$0xff] %vm1394, %v2948
      %2981 = vst.msk [vmem:[%s231 + $0x60] sm:$0xff] %vm1394, %v2949
      %2982 = vst.msk [vmem:[%s231 + $0x68] sm:$0xff] %vm1394, %v2950
      %2983 = vst.msk [vmem:[%s231 + $0x70] sm:$0xff] %vm1394, %v2951
      %2984 = vst.msk [vmem:[%s231 + $0x78] sm:$0xff] %vm1394, %v2952
      %2985 = vst.msk [vmem:[%s231 + $0x80] sm:$0xff] %vm1394, %v2953
      %2986 = vst.msk [vmem:[%s231 + $0x88] sm:$0xff] %vm1394, %v2954
      %2987 = vst.msk [vmem:[%s231 + $0x90] sm:$0xff] %vm1394, %v2955
      %2988 = vst.msk [vmem:[%s231 + $0x98] sm:$0xff] %vm1394, %v2956
      %2989 = vst.msk [vmem:[%s231 + $0xa0] sm:$0xff] %vm1394, %v2957
      %2990 = vst.msk [vmem:[%s231 + $0xa8] sm:$0xff] %vm1394, %v2958
      %2991 = vst.msk [vmem:[%s231 + $0xb0] sm:$0xff] %vm1394, %v2959
      %2992 = vst.msk [vmem:[%s231 + $0xb8] sm:$0xff] %vm1394, %v2960
      %2993 = vst.msk [vmem:[%s231 + $0xc0] sm:$0xff] %vm1394, %v2961
      %2994 = vst.msk [vmem:[%s231 + $0xc8] sm:$0xff] %vm1394, %v2962
      %2995 = vst.msk [vmem:[%s231 + $0xd0] sm:$0xff] %vm1394, %v2963
      %2996 = vst.msk [vmem:[%s231 + $0xd8] sm:$0xff] %vm1394, %v2964
      %2997 = vst.msk [vmem:[%s231 + $0xe0] sm:$0xff] %vm1394, %v2965
      %2998 = vst.msk [vmem:[%s231 + $0xe8] sm:$0xff] %vm1394, %v2966
      %2999 = vst.msk [vmem:[%s231 + $0xf0] sm:$0xff] %vm1394, %v2967
      %3000 = vst.msk [vmem:[%s231 + $0xf8] sm:$0xff] %vm1394, %v2968
      %v3001 = vsel %vm1394, %v2937, 0.0
      %v3002 = vsel %vm1394, %v2938, 0.0
      %v3003 = vadd.f32 %v3001, %v3002
      %v3004 = vsel %vm1394, %v2939, 0.0
      %v3005 = vadd.f32 %v3003, %v3004
      %v3006 = vsel %vm1394, %v2940, 0.0
      %v3007 = vadd.f32 %v3005, %v3006
      %v3008 = vsel %vm1394, %v2941, 0.0
      %v3009 = vadd.f32 %v3007, %v3008
      %v3010 = vsel %vm1394, %v2942, 0.0
      %v3011 = vadd.f32 %v3009, %v3010
      %v3012 = vsel %vm1394, %v2943, 0.0
      %v3013 = vadd.f32 %v3011, %v3012
      %v3014 = vsel %vm1394, %v2944, 0.0
      %v3015 = vadd.f32 %v3013, %v3014
      %v3016 = vsel %vm1394, %v2945, 0.0
      %v3017 = vadd.f32 %v3015, %v3016
      %v3018 = vsel %vm1394, %v2946, 0.0
      %v3019 = vadd.f32 %v3017, %v3018
      %v3020 = vsel %vm1394, %v2947, 0.0
      %v3021 = vadd.f32 %v3019, %v3020
      %v3022 = vsel %vm1394, %v2948, 0.0
      %v3023 = vadd.f32 %v3021, %v3022
      %v3024 = vsel %vm1394, %v2949, 0.0
      %v3025 = vadd.f32 %v3023, %v3024
      %v3026 = vsel %vm1394, %v2950, 0.0
      %v3027 = vadd.f32 %v3025, %v3026
      %v3028 = vsel %vm1394, %v2951, 0.0
      %v3029 = vadd.f32 %v3027, %v3028
      %v3030 = vsel %vm1394, %v2952, 0.0
      %v3031 = vadd.f32 %v3029, %v3030
      %v3032 = vsel %vm1394, %v2953, 0.0
      %v3033 = vadd.f32 %v3031, %v3032
      %v3034 = vsel %vm1394, %v2954, 0.0
      %v3035 = vadd.f32 %v3033, %v3034
      %v3036 = vsel %vm1394, %v2955, 0.0
      %v3037 = vadd.f32 %v3035, %v3036
      %v3038 = vsel %vm1394, %v2956, 0.0
      %v3039 = vadd.f32 %v3037, %v3038
      %v3040 = vsel %vm1394, %v2957, 0.0
      %v3041 = vadd.f32 %v3039, %v3040
      %v3042 = vsel %vm1394, %v2958, 0.0
      %v3043 = vadd.f32 %v3041, %v3042
      %v3044 = vsel %vm1394, %v2959, 0.0
      %v3045 = vadd.f32 %v3043, %v3044
      %v3046 = vsel %vm1394, %v2960, 0.0
      %v3047 = vadd.f32 %v3045, %v3046
      %v3048 = vsel %vm1394, %v2961, 0.0
      %v3049 = vadd.f32 %v3047, %v3048
      %v3050 = vsel %vm1394, %v2962, 0.0
      %v3051 = vadd.f32 %v3049, %v3050
      %v3052 = vsel %vm1394, %v2963, 0.0
      %v3053 = vadd.f32 %v3051, %v3052
      %v3054 = vsel %vm1394, %v2964, 0.0
      %v3055 = vadd.f32 %v3053, %v3054
      %v3056 = vsel %vm1394, %v2965, 0.0
      %v3057 = vadd.f32 %v3055, %v3056
      %v3058 = vsel %vm1394, %v2966, 0.0
      %v3059 = vadd.f32 %v3057, %v3058
      %v3060 = vsel %vm1394, %v2967, 0.0
      %v3061 = vadd.f32 %v3059, %v3060
      %v3062 = vsel %vm1394, %v2968, 0.0
      %v3063 = vadd.f32 %v3061, %v3062
      %v3064 = vrot.slane %v3063, 4
      %v3065 = vadd.f32 %v3063, %v3064
      %v3066 = vrot.slane %v3065, 2
      %v3067 = vadd.f32 %v3065, %v3066
      %v3068 = vrot.slane %v3067, 1
      %v3069 = vadd.f32 %v3067, %v3068
      %3070 = vst.msk [vmem:[%s235] sm:$0x1] %vm376, %v3069
      %v3071 = vmul.f32 %v2937, %v2937
      %v3072 = vmul.f32 %v2938, %v2938
      %v3073 = vmul.f32 %v2939, %v2939
      %v3074 = vmul.f32 %v2940, %v2940
      %v3075 = vmul.f32 %v2941, %v2941
      %v3076 = vmul.f32 %v2942, %v2942
      %v3077 = vmul.f32 %v2943, %v2943
      %v3078 = vmul.f32 %v2944, %v2944
      %v3079 = vmul.f32 %v2945, %v2945
      %v3080 = vmul.f32 %v2946, %v2946
      %v3081 = vmul.f32 %v2947, %v2947
      %v3082 = vmul.f32 %v2948, %v2948
      %v3083 = vmul.f32 %v2949, %v2949
      %v3084 = vmul.f32 %v2950, %v2950
      %v3085 = vmul.f32 %v2951, %v2951
      %v3086 = vmul.f32 %v2952, %v2952
      %v3087 = vmul.f32 %v2953, %v2953
      %v3088 = vmul.f32 %v2954, %v2954
      %v3089 = vmul.f32 %v2955, %v2955
      %v3090 = vmul.f32 %v2956, %v2956
      %v3091 = vmul.f32 %v2957, %v2957
      %v3092 = vmul.f32 %v2958, %v2958
      %v3093 = vmul.f32 %v2959, %v2959
      %v3094 = vmul.f32 %v2960, %v2960
      %v3095 = vmul.f32 %v2961, %v2961
      %v3096 = vmul.f32 %v2962, %v2962
      %v3097 = vmul.f32 %v2963, %v2963
      %v3098 = vmul.f32 %v2964, %v2964
      %v3099 = vmul.f32 %v2965, %v2965
      %v3100 = vmul.f32 %v2966, %v2966
      %v3101 = vmul.f32 %v2967, %v2967
      %v3102 = vmul.f32 %v2968, %v2968
      %v3103 = vsel %vm1394, %v3071, 0.0
      %v3104 = vsel %vm1394, %v3072, 0.0
      %v3105 = vadd.f32 %v3103, %v3104
      %v3106 = vsel %vm1394, %v3073, 0.0
      %v3107 = vadd.f32 %v3105, %v3106
      %v3108 = vsel %vm1394, %v3074, 0.0
      %v3109 = vadd.f32 %v3107, %v3108
      %v3110 = vsel %vm1394, %v3075, 0.0
      %v3111 = vadd.f32 %v3109, %v3110
      %v3112 = vsel %vm1394, %v3076, 0.0
      %v3113 = vadd.f32 %v3111, %v3112
      %v3114 = vsel %vm1394, %v3077, 0.0
      %v3115 = vadd.f32 %v3113, %v3114
      %v3116 = vsel %vm1394, %v3078, 0.0
      %v3117 = vadd.f32 %v3115, %v3116
      %v3118 = vsel %vm1394, %v3079, 0.0
      %v3119 = vadd.f32 %v3117, %v3118
      %v3120 = vsel %vm1394, %v3080, 0.0
      %v3121 = vadd.f32 %v3119, %v3120
      %v3122 = vsel %vm1394, %v3081, 0.0
      %v3123 = vadd.f32 %v3121, %v3122
      %v3124 = vsel %vm1394, %v3082, 0.0
      %v3125 = vadd.f32 %v3123, %v3124
      %v3126 = vsel %vm1394, %v3083, 0.0
      %v3127 = vadd.f32 %v3125, %v3126
      %v3128 = vsel %vm1394, %v3084, 0.0
      %v3129 = vadd.f32 %v3127, %v3128
      %v3130 = vsel %vm1394, %v3085, 0.0
      %v3131 = vadd.f32 %v3129, %v3130
      %v3132 = vsel %vm1394, %v3086, 0.0
      %v3133 = vadd.f32 %v3131, %v3132
      %v3134 = vsel %vm1394, %v3087, 0.0
      %v3135 = vadd.f32 %v3133, %v3134
      %v3136 = vsel %vm1394, %v3088, 0.0
      %v3137 = vadd.f32 %v3135, %v3136
      %v3138 = vsel %vm1394, %v3089, 0.0
      %v3139 = vadd.f32 %v3137, %v3138
      %v3140 = vsel %vm1394, %v3090, 0.0
      %v3141 = vadd.f32 %v3139, %v3140
      %v3142 = vsel %vm1394, %v3091, 0.0
      %v3143 = vadd.f32 %v3141, %v3142
      %v3144 = vsel %vm1394, %v3092, 0.0
      %v3145 = vadd.f32 %v3143, %v3144
      %v3146 = vsel %vm1394, %v3093, 0.0
      %v3147 = vadd.f32 %v3145, %v3146
      %v3148 = vsel %vm1394, %v3094, 0.0
      %v3149 = vadd.f32 %v3147, %v3148
      %v3150 = vsel %vm1394, %v3095, 0.0
      %v3151 = vadd.f32 %v3149, %v3150
      %v3152 = vsel %vm1394, %v3096, 0.0
      %v3153 = vadd.f32 %v3151, %v3152
      %v3154 = vsel %vm1394, %v3097, 0.0
      %v3155 = vadd.f32 %v3153, %v3154
      %v3156 = vsel %vm1394, %v3098, 0.0
      %v3157 = vadd.f32 %v3155, %v3156
      %v3158 = vsel %vm1394, %v3099, 0.0
      %v3159 = vadd.f32 %v3157, %v3158
      %v3160 = vsel %vm1394, %v3100, 0.0
      %v3161 = vadd.f32 %v3159, %v3160
      %v3162 = vsel %vm1394, %v3101, 0.0
      %v3163 = vadd.f32 %v3161, %v3162
      %v3164 = vsel %vm1394, %v3102, 0.0
      %v3165 = vadd.f32 %v3163, %v3164
      %v3166 = vrot.slane %v3165, 4
      %v3167 = vadd.f32 %v3165, %v3166
      %v3168 = vrot.slane %v3167, 2
      %v3169 = vadd.f32 %v3167, %v3168
      %v3170 = vrot.slane %v3169, 1
      %v3171 = vadd.f32 %v3169, %v3170
      %3172 = vst.msk [vmem:[%s235 + $0x1] sm:$0x1] %vm376, %v3171
      %p3173 = scmp.lt.s32.totalorder %s17, 1
      %s3174 = scalar_select %p3173, %s17, 1
      %s3175 = smul.addr %s3174, 32
      %s3176 = smul.addr %s3175, 8
      %s3177 = scalar_lea.vmem %s4, %s3176
      %p3178 = scmp.lt.s32.totalorder %s17, 1
      %s3179 = scalar_select %p3178, %s17, 1
      %s3180 = smul.addr %s3179, 2
      %s3181 = scalar_lea.vmem %s5, %s3180
      // Predicated region
      $region37: #{residual_block_forward.4} parent=35 // pred_check
        %p3182 = pneg %p124
      $region38: #{residual_block_forward.4} parent=35 // pred_check_branch
        %3184 = sbr.rel (%p3182) target = $region40
      $region39: #{residual_block_forward.4} parent=35 // pred_region
        _
      $region40: #{residual_block_forward.4} parent=35 // pred_fallthru
        _
      // Predicated region
      $region41: #{residual_block_forward.4} parent=35 // pred_check
        %p3185 = pneg %p150
      $region42: #{residual_block_forward.4} parent=35 // pred_check_branch
        %3187 = sbr.rel (%p3185) target = $region44
      $region43: #{residual_block_forward.4} parent=35 // pred_region
        _
      $region44: #{residual_block_forward.4} parent=35 // pred_fallthru
        _
    $region36: #{residual_block_forward.4} parent=5 // pred_fallthru
      _
    %p3188 = scmp.le.s32.totalorder 2, %s12
    // Predicated region
    $region45: #{residual_block_forward.4} parent=5 // pred_check
      %p3189 = pneg %p3188
    $region46: #{residual_block_forward.4} parent=5 // pred_check_branch
      %3191 = sbr.rel (%p3189) target = $region48
    $region47: #{residual_block_forward.4} parent=5 // pred_region
      %s3192 = ssub.s32 %s12, 2
      // Predicated region
      $region49: #{residual_block_forward.4} parent=47 // pred_check
        %p3193 = pneg %p130
      $region50: #{residual_block_forward.4} parent=47 // pred_check_branch
        %3195 = sbr.rel (%p3193) target = $region52
      $region51: #{residual_block_forward.4} parent=47 // pred_region
        %p3196 = scmp.lt.s32.totalorder %s18, 1
        %s3197 = scalar_select %p3196, %s18, 1
        %s3198 = smul.addr %s3197, 32
        %s3199 = smul.addr %s3198, 8
        %s3200 = scalar_lea.vmem %s4, %s3199
      $region52: #{residual_block_forward.4} parent=47 // pred_fallthru
        _
      // Predicated region
      $region53: #{residual_block_forward.4} parent=47 // pred_check
        %p3201 = pneg %p156
      $region54: #{residual_block_forward.4} parent=47 // pred_check_branch
        %3203 = sbr.rel (%p3201) target = $region56
      $region55: #{residual_block_forward.4} parent=47 // pred_region
        %p3204 = scmp.lt.s32.totalorder %s18, 1
        %s3205 = scalar_select %p3204, %s18, 1
        %s3206 = smul.addr %s3205, 2
        %s3207 = scalar_lea.vmem %s5, %s3206
      $region56: #{residual_block_forward.4} parent=47 // pred_fallthru
        _
    $region48: #{residual_block_forward.4} parent=5 // pred_fallthru
      _
  $region6: #{residual_block_forward.4} parent=0 // loop_footer
    %s16 = sadd.s32 1, %s12
  $region7: #{residual_block_forward.4} parent=0 // loop_footer_branch
    %11 = sbr.rel target = $region3
  $region8: #{residual_block_forward.4} parent=0 // loop_exit
    _

</llo_original>
